<compile_context>
chip_gen: v6e
topology: v6e:2x2x1
jax: 0.10.0
libtpu: 0.0.40
codegen_flags: <defaults>
</compile_context>

<pallas_src>
import functools

import jax
import jax.numpy as jnp
from jax import lax
from jax.experimental import pallas as pl
from jax.experimental.pallas import tpu as pltpu

_LANE = 128
_TOPK_LANES = 128  # lane-padded width of the running top-k value scratch (>= knn)


def _round_up(x, m):
    return ((x + m - 1) // m) * m


def _pad_to(x, shape):
    pads = [(0, t - s) for s, t in zip(x.shape, shape)]
    if not any(p[1] for p in pads):
        return x
    return jnp.pad(x, pads)


# --------------------------- smooth-loss kernel -----------------------------
def _invnet_loss_kernel(x_ref, em_ref, lab_ref, loss_ref,
                        topv_ref, lsum_ref, labsc_ref,
                        *, knn, num_classes):
    c = pl.program_id(1)
    num_c = pl.num_programs(1)
    tb = x_ref.shape[0]
    tc = em_ref.shape[0]
    kp = topv_ref.shape[1]
    neg_inf = jnp.float32(-jnp.inf)

    @pl.when(c == 0)
    def _init():
        topv_ref[...] = jnp.full(topv_ref.shape, neg_inf, jnp.float32)
        lsum_ref[...] = jnp.zeros(lsum_ref.shape, jnp.float32)
        labsc_ref[...] = jnp.zeros(labsc_ref.shape, jnp.float32)

    # Scores for this class tile: contract over F with em in native [C, F]
    # layout (bf16 operands, f32 accumulation on the MXU).  1/beta is already
    # folded into the x operand on the host.
    # TODO(synk): check with pl.lower_as_mlir whether this A.B^T form inserts a
    # per-tile transpose of the em tile; if so, keep the shadow as [F, C].
    s = lax.dot_general(
        x_ref[...], em_ref[...],
        dimension_numbers=(((1,), (1,)), ((), ())),
        preferred_element_type=jnp.float32)                       # [tb, tc] f32

    col = lax.broadcasted_iota(jnp.int32, (tb, tc), 1) + c * tc   # global class id
    s = jnp.where(col < num_classes, s, neg_inf)                  # mask padded classes

    # Accumulate the score at each row's label (label column visits one tile).
    lab = lab_ref[...]                                            # [tb, 1] int32
    labsc_ref[...] += jnp.sum(jnp.where(col == lab, s, 0.0),
                              axis=1, keepdims=True)

    m_old = topv_ref[:, 0:1]          # previous running global max (lane 0)

    # Merge the running top-knn values with this tile's scores in registers.
    w = jnp.concatenate([topv_ref[...], s], axis=1)               # [tb, kp+tc]

    # Tie-robust streaming top-k: each iteration takes the max and the count of
    # entries equal to it, filling that many slots (so exact ties — e.g. the
    # zero-initialized memory — keep the correct value multiset and the loss
    # stays finite).
    kcol = lax.broadcasted_iota(jnp.int32, (tb, kp), 1)
    newtop = jnp.full((tb, kp), neg_inf, jnp.float32)
    filled = jnp.zeros((tb, 1), jnp.int32)
    m_new = None
    for t in range(knn):                                          # knn is small/static
        mt = jnp.max(w, axis=1, keepdims=True)                    # 1 XLU max / iter
        if t == 0:
            m_new = mt                                            # new global max
        eq = (w == mt)
        cnt = jnp.sum(eq.astype(jnp.int32), axis=1, keepdims=True)
        fill = jnp.logical_and(kcol >= filled,
                               kcol < jnp.minimum(filled + cnt, knn))
        newtop = jnp.where(fill, mt, newtop)
        filled = filled + cnt
        w = jnp.where(eq, neg_inf, w)
    topv_ref[...] = newtop

    # Streamed (online) logsumexp over the class dimension.
    lsum_ref[...] = (lsum_ref[...] * jnp.exp(m_old - m_new)
                     + jnp.sum(jnp.exp(s - m_new), axis=1, keepdims=True))

    @pl.when(c == num_c - 1)
    def _finalize():
        tv = topv_ref[...]
        top_sum = jnp.sum(jnp.where(kcol < knn, tv, 0.0), axis=1, keepdims=True)
        kth = tv[:, knn - 1:knn]
        lse = tv[:, 0:1] + jnp.log(lsum_ref[...])
        s_lab = labsc_ref[...]
        # TODO(synk): membership at an exact tie with the kth value is decided
        # by value here, not by torch.topk's lowest-index tie-break.
        in_top = (s_lab >= kth).astype(jnp.float32)     # label inside top-knn?
        logp_top_sum = top_sum - jnp.float32(knn) * lse
        logp_lab = s_lab - lse
        # mask = 1.0 at top-knn positions, overwritten to 2.0 at the label.
        loss_ref[...] = -(logp_top_sum - in_top * logp_lab) - 2.0 * logp_lab


# ----------------------- exemplar-memory EMA update -------------------------
def _em_update_kernel(lab_ref, x_hbm, em_f32_in, em_bf16_in,
                      em_f32_out, em_bf16_out,
                      em_rd, x_rd, wr_f32, wr_bf16, sem,
                      *, alpha_eff, num_samples):
    """Sequential per-sample EMA + L2 renorm, software-pipelined.

    Per step j: wait the (em row, x row) reads prefetched at step j-1, compute,
    stage the new row (f32 + bf16 shadow), start both write-backs, retire step
    j-1's writes, then prefetch step j+1's rows.  If lab[j]==lab[j-1] the em
    read was skipped (RAW hazard against the in-flight write) and the staged
    row from step j-1 is reused, so repeated labels see the updated value.
    """
    del em_f32_in, em_bf16_in        # aliased with the outputs
    a = jnp.float32(alpha_eff)
    one_m_a = jnp.float32(1.0 - alpha_eff)

    def em_read(i, slot):
        return pltpu.make_async_copy(
            em_f32_out.at[pl.ds(lab_ref[i], 1), :], em_rd.at[slot], sem.at[0, slot])

    def x_read(i, slot):
        return pltpu.make_async_copy(
            x_hbm.at[pl.ds(i, 1), :], x_rd.at[slot], sem.at[1, slot])

    def f32_write(i, slot):
        return pltpu.make_async_copy(
            wr_f32.at[slot], em_f32_out.at[pl.ds(lab_ref[i], 1), :], sem.at[2, slot])

    def bf16_write(i, slot):
        return pltpu.make_async_copy(
            wr_bf16.at[slot], em_bf16_out.at[pl.ds(lab_ref[i], 1), :], sem.at[3, slot])

    # Prime the pipeline with sample 0.
    em_read(0, 0).start()
    x_read(0, 0).start()

    @pl.loop(0, num_samples)
    def _(j):
        slot = j & 1
        nslot = 1 - slot
        cur = lab_ref[j]
        prev = lab_ref[jnp.maximum(j - 1, 0)]
        fresh = jnp.logical_or(j == 0, cur != prev)   # em row was prefetched?

        # 1. wait for this sample's rows (issued one step earlier).
        x_read(j, slot).wait()

        @pl.when(fresh)
        def _():
            em_read(j, slot).wait()

        # 2. compute.  On a repeated label reuse the staged row from step j-1
        #    (it holds exactly the value written back to HBM, full f32).
        old = jnp.where(fresh, em_rd[slot], wr_f32[nslot])
        new = a * old + one_m_a * x_rd[slot]
        new = new / jnp.sqrt(jnp.sum(new * new, axis=1, keepdims=True))
        wr_f32[slot] = new
        wr_bf16[slot] = new.astype(jnp.bfloat16)

        # 3. write back row lab[j]: f32 memory + bf16 shadow.  Don't wait yet.
        f32_write(j, slot).start()
        bf16_write(j, slot).start()

        # 4. retire step j-1's writes (frees its staging buffers and makes its
        #    row visible to the prefetch below), then prefetch step j+1.
        @pl.when(j >= 1)
        def _():
            jm1 = jnp.maximum(j - 1, 0)
            f32_write(jm1, nslot).wait()
            bf16_write(jm1, nslot).wait()

        @pl.when(j + 1 < num_samples)
        def _():
            nxt = j + 1
            x_read(nxt, nslot).start()

            @pl.when(lab_ref[nxt] != cur)
            def _():
                # lab[j+1] != lab[j] (whose write is still in flight) and every
                # older write has been retired above, so this read is safe.
                em_read(nxt, nslot).start()

    last = num_samples - 1
    f32_write(last, last & 1).wait()
    bf16_write(last, last & 1).wait()


# --------------------------- persistent em state -----------------------------
def init_invnet_state(em, *, tile_c=256):
    """Pad the exemplar memory ONCE into persistent [C_pad, F_pad] f32 storage
    plus a bf16 shadow used by the loss kernel.  Carry both across steps (under
    jit, donate them so the aliased update is truly in place)."""
    C, F = em.shape
    C_pad = _round_up(C, max(tile_c, _LANE))
    F_pad = _round_up(F, _LANE)
    em_f32 = _pad_to(em.astype(jnp.float32), (C_pad, F_pad))
    em_bf16 = em_f32.astype(jnp.bfloat16)
    return em_f32, em_bf16


# --------------------------------- wrapper ----------------------------------
def invnet_office_forward(inputs, label, em_f32_pad, em_bf16_pad, *,
                          num_classes, beta=0.05, knn=6, alpha=0.01, epoch=1,
                          tile_b=128, tile_c=256):
    """Returns (loss, new em_f32_pad, new em_bf16_pad) — mirrors
    InvNet_office.forward (model=None) on the persistent padded state."""
    B, F = inputs.shape
    C_pad, F_pad = em_f32_pad.shape
    C = int(num_classes)
    assert em_bf16_pad.shape == (C_pad, F_pad)
    assert B >= 1 and C <= C_pad and F <= F_pad
    assert 1 <= knn <= _TOPK_LANES and C >= knn
    tile_c = min(tile_c, C_pad)
    assert C_pad % tile_c == 0
    B_pad = _round_up(B, tile_b)

    # ---- smooth loss, streamed over class tiles ----
    # 1/beta is folded into the (small, per-call) x cast; the bf16 em shadow is
    # persistent and used directly, with no per-call pad/cast of the C x F memory.
    inv_beta = float(1.0 / beta)
    x_loss = _pad_to(inputs.astype(jnp.float32) * inv_beta,
                     (B_pad, F_pad)).astype(jnp.bfloat16)
    lab2d = _pad_to(label.astype(jnp.int32), (B_pad,)).reshape(B_pad, 1)

    # TODO(synk): on v7x (2 TCs) ensure B_pad // tile_b >= 2 (or split the class
    # range per core) so the second TensorCore is not idle for small batches.
    grid = (B_pad // tile_b, C_pad // tile_c)
    loss_kernel = functools.partial(
        _invnet_loss_kernel, knn=int(knn), num_classes=C)
    row_losses = pl.pallas_call(
        loss_kernel,
        out_shape=jax.ShapeDtypeStruct((B_pad, 1), jnp.float32),
        grid=grid,
        in_specs=[
            pl.BlockSpec((tile_b, F_pad), lambda b, c: (b, 0)),   # inputs (bf16, /beta)
            pl.BlockSpec((tile_c, F_pad), lambda b, c: (c, 0)),   # em bf16 shadow [C, F]
            pl.BlockSpec((tile_b, 1), lambda b, c: (b, 0)),       # labels
        ],
        out_specs=pl.BlockSpec((tile_b, 1), lambda b, c: (b, 0)),
        scratch_shapes=[
            pltpu.VMEM((tile_b, _TOPK_LANES), jnp.float32),       # running top-knn
            pltpu.VMEM((tile_b, 1), jnp.float32),                 # running sum(exp)
            pltpu.VMEM((tile_b, 1), jnp.float32),                 # score at label
        ],
        compiler_params=pltpu.CompilerParams(
            dimension_semantics=("parallel", "arbitrary"),
            vmem_limit_bytes=48 * 1024 * 1024),
    )(x_loss, em_bf16_pad, lab2d)
    loss = jnp.mean(row_losses[:B, 0])

    # ---- exemplar-memory EMA update: in place on the persistent padded state ----
    alpha_eff = float(alpha * epoch)
    x_ema = _pad_to(inputs.astype(jnp.float32), (B, F_pad))   # stays in HBM
    lab1d = label.astype(jnp.int32)
    update_kernel = functools.partial(
        _em_update_kernel, alpha_eff=alpha_eff, num_samples=int(B))
    em_f32_new, em_bf16_new = pl.pallas_call(
        update_kernel,
        out_shape=(jax.ShapeDtypeStruct((C_pad, F_pad), jnp.float32),
                   jax.ShapeDtypeStruct((C_pad, F_pad), jnp.bfloat16)),
        in_specs=[
            pl.BlockSpec(memory_space=pltpu.MemorySpace.SMEM),    # labels (scalars)
            pl.BlockSpec(memory_space=pl.ANY),                    # x rows stay in HBM
            pl.BlockSpec(memory_space=pl.ANY),                    # em f32 (aliased)
            pl.BlockSpec(memory_space=pl.ANY),                    # em bf16 shadow (aliased)
        ],
        out_specs=(pl.BlockSpec(memory_space=pl.ANY),
                   pl.BlockSpec(memory_space=pl.ANY)),
        scratch_shapes=[
            pltpu.VMEM((2, 1, F_pad), jnp.float32),   # em row read double buffer
            pltpu.VMEM((2, 1, F_pad), jnp.float32),   # x row read double buffer
            pltpu.VMEM((2, 1, F_pad), jnp.float32),   # f32 write staging
            pltpu.VMEM((2, 1, F_pad), jnp.bfloat16),  # bf16 shadow write staging
            pltpu.SemaphoreType.DMA((4, 2)),          # [em-rd, x-rd, f32-wr, bf16-wr] x slot
        ],
        input_output_aliases={2: 0, 3: 1},            # in-place f32 memory + bf16 shadow
    )(lab1d, x_ema, em_f32_pad, em_bf16_pad)
    return loss, em_f32_new, em_bf16_new


# ------------------------------- references ---------------------------------
def _reference_loss_from_scores(scores, label, knn):
    Bn, Cn = scores.shape
    _, topk = lax.top_k(scores, knn)
    mask = jnp.zeros((Bn, Cn), jnp.float32)
    mask = mask.at[jnp.arange(Bn)[:, None], topk].set(1.0)
    mask = mask.at[jnp.arange(Bn), label].set(2.0)
    log_probs = jax.nn.log_softmax(scores, axis=1)
    return jnp.mean(-jnp.sum(mask * log_probs, axis=1))


def _reference_em_update(inputs, label, em, alpha_eff):
    def body(i, em_cur):
        y = label[i]
        new_row = alpha_eff * em_cur[y] + (1.0 - alpha_eff) * inputs[i]
        new_row = new_row / jnp.sqrt(jnp.sum(new_row * new_row))
        return em_cur.at[y].set(new_row)
    return lax.fori_loop(0, inputs.shape[0], body, em)


if __name__ == "__main__":
    # small, deterministic synthetic setup
    B, F, C = 20, 128, 384          # batch, num_features, num_classes
    beta, knn, alpha, epoch = 0.05, 6, 0.01, 2
    tile_b, tile_c = 128, 256

    key = jax.random.PRNGKey(0)
    k_in, k_em, k_lab = jax.random.split(key, 3)

    inputs = jax.random.normal(k_in, (B, F), dtype=jnp.float32)
    inputs = inputs / jnp.linalg.norm(inputs, axis=1, keepdims=True)

    em = jax.random.normal(k_em, (C, F), dtype=jnp.float32)
    em = em / jnp.linalg.norm(em, axis=1, keepdims=True)

    label = jax.random.randint(k_lab, (B,), 0, C, dtype=jnp.int32)
    # Force repeated labels (adjacent and 2 apart) so the pipelined EMA kernel's
    # same-row hazard paths are exercised against the sequential reference.
    label = label.at[5].set(label[4])
    label = label.at[6].set(label[4])
    label = label.at[10].set(label[8])

    em_f32_pad, em_bf16_pad = init_invnet_state(em, tile_c=tile_c)

    loss, em_f32_new, em_bf16_new = invnet_office_forward(
        inputs, label, em_f32_pad, em_bf16_pad, num_classes=C,
        beta=beta, knn=knn, alpha=alpha, epoch=epoch,
        tile_b=tile_b, tile_c=tile_c)
    jax.block_until_ready((loss, em_f32_new, em_bf16_new))

    # Reference loss on the same bf16-rounded operands the kernel multiplies
    # (1/beta folded into the x cast).
    x_q = (inputs * (1.0 / beta)).astype(jnp.bfloat16).astype(jnp.float32)
    em_q = em.astype(jnp.bfloat16).astype(jnp.float32)
    scores = jnp.matmul(x_q, em_q.T, precision=lax.Precision.HIGHEST)
    ref_loss = _reference_loss_from_scores(scores, label, knn)
    assert jnp.allclose(loss, ref_loss, rtol=2e-3, atol=2e-3), (loss, ref_loss)

    # Reference memory update (sequential, full precision like the torch loop).
    ref_em = _reference_em_update(inputs, label, em, alpha * epoch)
    em_new = em_f32_new[:C, :F]
    assert jnp.allclose(em_new, ref_em, rtol=1e-4, atol=1e-5), float(
        jnp.max(jnp.abs(em_new - ref_em)))

    # The persistent bf16 shadow must track the f32 memory.
    assert jnp.allclose(em_bf16_new.astype(jnp.float32),
                        em_f32_new.astype(jnp.bfloat16).astype(jnp.float32),
                        rtol=1e-2, atol=1e-3)

    # Degenerate all-tie case (torch zero-initialized memory): loss stays finite.
    z_f32, z_bf16 = init_invnet_state(jnp.zeros((C, F), jnp.float32), tile_c=tile_c)
    z_loss, _, _ = invnet_office_forward(
        inputs, label, z_f32, z_bf16, num_classes=C,
        beta=beta, knn=knn, alpha=alpha, epoch=epoch,
        tile_b=tile_b, tile_c=tile_c)
    jax.block_until_ready(z_loss)
    assert bool(jnp.isfinite(z_loss)), z_loss

    print("KERNEL_OK")
</pallas_src>

<mosaic_0001>
module attributes {stable_mosaic.version = 11 : i64} {
  func.func @_invnet_loss_kernel(%arg0: i32, %arg1: i32, %arg2: memref<128x128xbf16, #tpu.memory_space<vmem>>, %arg3: memref<256x128xbf16, #tpu.memory_space<vmem>>, %arg4: memref<128x1xi32, #tpu.memory_space<vmem>>, %arg5: memref<128x1xf32, #tpu.memory_space<vmem>>, %arg6: memref<128x128xf32, #tpu.memory_space<vmem>>, %arg7: memref<128x1xf32, #tpu.memory_space<vmem>>, %arg8: memref<128x1xf32, #tpu.memory_space<vmem>>) attributes {dimension_semantics = [#tpu.dimension_semantics<parallel>, #tpu.dimension_semantics<arbitrary>], iteration_bounds = array<i64: 1, 2>, scalar_prefetch = 0 : i64, scratch_operands = 3 : i64, tpu.core_type = #tpu.core_type<tc>, window_params = [{transform_indices = @transform_0, window_bounds = array<i64: 128, 128>}, {transform_indices = @transform_1, window_bounds = array<i64: 256, 128>}, {transform_indices = @transform_2, window_bounds = array<i64: 128, 1>}, {transform_indices = @transform_3, window_bounds = array<i64: 128, 1>}]} {
    %c0_i32 = arith.constant 0 : i32
    %0 = arith.cmpi eq, %arg1, %c0_i32 : i32
    %1 = arith.extui %0 : i1 to i32
    %cst = arith.constant 0xFF800000 : f32
    %c0_i32_0 = arith.constant 0 : i32
    %2 = arith.cmpi ne, %1, %c0_i32_0 : i32
    scf.if %2 {
      %168 = vector.broadcast %cst : f32 to vector<128x128xf32>
      %c0_50 = arith.constant 0 : index
      %c0_51 = arith.constant 0 : index
      %169 = vector.load %arg6[%c0_50, %c0_51] : memref<128x128xf32, #tpu.memory_space<vmem>>, vector<128x128xf32>
      tpu.vector_store %arg6[%c0_50, %c0_51], %168 {strides = array<i32>} : memref<128x128xf32, #tpu.memory_space<vmem>>, vector<128x128xf32>,
      %cst_52 = arith.constant 0.000000e+00 : f32
      %170 = vector.broadcast %cst_52 : f32 to vector<128x1xf32>
      %c0_53 = arith.constant 0 : index
      %c0_54 = arith.constant 0 : index
      %171 = vector.load %arg7[%c0_53, %c0_54] : memref<128x1xf32, #tpu.memory_space<vmem>>, vector<128x1xf32>
      tpu.vector_store %arg7[%c0_53, %c0_54], %170 {strides = array<i32>} : memref<128x1xf32, #tpu.memory_space<vmem>>, vector<128x1xf32>,
      %cst_55 = arith.constant 0.000000e+00 : f32
      %172 = vector.broadcast %cst_55 : f32 to vector<128x1xf32>
      %c0_56 = arith.constant 0 : index
      %c0_57 = arith.constant 0 : index
      %173 = vector.load %arg8[%c0_56, %c0_57] : memref<128x1xf32, #tpu.memory_space<vmem>>, vector<128x1xf32>
      tpu.vector_store %arg8[%c0_56, %c0_57], %172 {strides = array<i32>} : memref<128x1xf32, #tpu.memory_space<vmem>>, vector<128x1xf32>,
    } else {
    }
    %c0 = arith.constant 0 : index
    %c0_1 = arith.constant 0 : index
    %3 = vector.load %arg2[%c0, %c0_1] : memref<128x128xbf16, #tpu.memory_space<vmem>>, vector<128x128xbf16>
    %c0_2 = arith.constant 0 : index
    %c0_3 = arith.constant 0 : index
    %4 = vector.load %arg3[%c0_2, %c0_3] : memref<256x128xbf16, #tpu.memory_space<vmem>>, vector<256x128xbf16>
    %cst_4 = arith.constant dense<0.000000e+00> : vector<128x256xf32>
    %5 = tpu.matmul %3, %4, %cst_4 {dimension_numbers = #tpu.dot_dimension_numbers<[1], [1], [0], [0], [0, 0, 1, 0], [], []>} : vector<128x128xbf16>, vector<256x128xbf16>, vector<128x256xf32> -> vector<128x256xf32>
    %6 = tpu.iota {dimensions = array<i32: 1>} : vector<128x256xi32>
    %c256_i32 = arith.constant 256 : i32
    %7 = arith.muli %arg1, %c256_i32 : i32
    %8 = vector.broadcast %7 : i32 to vector<128x256xi32>
    %9 = arith.addi %6, %8 : vector<128x256xi32>
    %c384_i32 = arith.constant 384 : i32
    %10 = vector.broadcast %c384_i32 : i32 to vector<128x256xi32>
    %11 = arith.cmpi slt, %9, %10 : vector<128x256xi32>
    %cst_5 = arith.constant 0xFF800000 : f32
    %12 = vector.broadcast %cst_5 : f32 to vector<128x256xf32>
    %13 = arith.select %11, %5, %12 : vector<128x256xi1>, vector<128x256xf32>
    %c0_6 = arith.constant 0 : index
    %c0_7 = arith.constant 0 : index
    %14 = vector.load %arg4[%c0_6, %c0_7] : memref<128x1xi32, #tpu.memory_space<vmem>>, vector<128x1xi32>
    %c0_8 = arith.constant 0 : index
    %c0_9 = arith.constant 0 : index
    %15 = vector.load %arg8[%c0_8, %c0_9] : memref<128x1xf32, #tpu.memory_space<vmem>>, vector<128x1xf32>
    %16 = vector.broadcast %14 : vector<128x1xi32> to vector<128x256xi32>
    %17 = arith.cmpi eq, %9, %16 : vector<128x256xi32>
    %cst_10 = arith.constant 0.000000e+00 : f32
    %18 = vector.broadcast %cst_10 : f32 to vector<128x256xf32>
    %19 = arith.select %17, %13, %18 : vector<128x256xi1>, vector<128x256xf32>
    %cst_11 = arith.constant dense<0.000000e+00> : vector<128xf32>
    %20 = vector.multi_reduction <add>, %19, %cst_11 [1] : vector<128x256xf32> to vector<128xf32>
    %21 = vector.shape_cast %20 : vector<128xf32> to vector<128x1xf32>
    %22 = arith.addf %15, %21 : vector<128x1xf32>
    %c0_12 = arith.constant 0 : index
    %c0_13 = arith.constant 0 : index
    %23 = vector.load %arg8[%c0_12, %c0_13] : memref<128x1xf32, #tpu.memory_space<vmem>>, vector<128x1xf32>
    tpu.vector_store %arg8[%c0_12, %c0_13], %22 {strides = array<i32>} : memref<128x1xf32, #tpu.memory_space<vmem>>, vector<128x1xf32>,
    %c0_14 = arith.constant 0 : index
    %c0_15 = arith.constant 0 : index
    %24 = vector.load %arg6[%c0_14, %c0_15] : memref<128x128xf32, #tpu.memory_space<vmem>>, vector<128x1xf32>
    %c0_16 = arith.constant 0 : index
    %c0_17 = arith.constant 0 : index
    %25 = vector.load %arg6[%c0_16, %c0_17] : memref<128x128xf32, #tpu.memory_space<vmem>>, vector<128x128xf32>
    %26 = tpu.concatenate %25, %13 in 1 : vector<128x128xf32>, vector<128x256xf32> -> vector<128x384xf32>
    %27 = tpu.iota {dimensions = array<i32: 1>} : vector<128x128xi32>
    %cst_18 = arith.constant 0xFF800000 : f32
    %28 = vector.broadcast %cst_18 : f32 to vector<128x128xf32>
    %c0_i32_19 = arith.constant 0 : i32
    %29 = vector.broadcast %c0_i32_19 : i32 to vector<128x1xi32>
    %cst_20 = arith.constant dense<0xFF800000> : vector<128xf32>
    %30 = vector.multi_reduction <maximumf>, %26, %cst_20 [1] : vector<128x384xf32> to vector<128xf32>
    %31 = vector.shape_cast %30 : vector<128xf32> to vector<128x1xf32>
    %32 = vector.broadcast %31 : vector<128x1xf32> to vector<128x384xf32>
    %33 = arith.cmpf oeq, %26, %32 : vector<128x384xf32>
    %34 = arith.extui %33 : vector<128x384xi1> to vector<128x384xi32>
    %cst_21 = arith.constant dense<0> : vector<128xi32>
    %35 = vector.multi_reduction <add>, %34, %cst_21 [1] : vector<128x384xi32> to vector<128xi32>
    %36 = vector.shape_cast %35 : vector<128xi32> to vector<128x1xi32>
    %37 = vector.broadcast %29 : vector<128x1xi32> to vector<128x128xi32>
    %38 = arith.cmpi sge, %27, %37 : vector<128x128xi32>
    %39 = arith.addi %29, %36 : vector<128x1xi32>
    %c6_i32 = arith.constant 6 : i32
    %40 = vector.broadcast %c6_i32 : i32 to vector<128x1xi32>
    %41 = arith.minsi %39, %40 : vector<128x1xi32>
    %42 = vector.broadcast %41 : vector<128x1xi32> to vector<128x128xi32>
    %43 = arith.cmpi slt, %27, %42 : vector<128x128xi32>
    %44 = arith.andi %38, %43 : vector<128x128xi1>
    %45 = vector.shape_cast %31 : vector<128x1xf32> to vector<128x1xf32>
    %46 = vector.broadcast %45 : vector<128x1xf32> to vector<128x128xf32>
    %47 = arith.select %44, %46, %28 : vector<128x128xi1>, vector<128x128xf32>
    %48 = arith.addi %29, %36 : vector<128x1xi32>
    %cst_22 = arith.constant 0xFF800000 : f32
    %49 = vector.broadcast %cst_22 : f32 to vector<128x384xf32>
    %50 = arith.select %33, %49, %26 : vector<128x384xi1>, vector<128x384xf32>
    %cst_23 = arith.constant dense<0xFF800000> : vector<128xf32>
    %51 = vector.multi_reduction <maximumf>, %50, %cst_23 [1] : vector<128x384xf32> to vector<128xf32>
    %52 = vector.shape_cast %51 : vector<128xf32> to vector<128x1xf32>
    %53 = vector.broadcast %52 : vector<128x1xf32> to vector<128x384xf32>
    %54 = arith.cmpf oeq, %50, %53 : vector<128x384xf32>
    %55 = arith.extui %54 : vector<128x384xi1> to vector<128x384xi32>
    %cst_24 = arith.constant dense<0> : vector<128xi32>
    %56 = vector.multi_reduction <add>, %55, %cst_24 [1] : vector<128x384xi32> to vector<128xi32>
    %57 = vector.shape_cast %56 : vector<128xi32> to vector<128x1xi32>
    %58 = vector.broadcast %48 : vector<128x1xi32> to vector<128x128xi32>
    %59 = arith.cmpi sge, %27, %58 : vector<128x128xi32>
    %60 = arith.addi %48, %57 : vector<128x1xi32>
    %c6_i32_25 = arith.constant 6 : i32
    %61 = vector.broadcast %c6_i32_25 : i32 to vector<128x1xi32>
    %62 = arith.minsi %60, %61 : vector<128x1xi32>
    %63 = vector.broadcast %62 : vector<128x1xi32> to vector<128x128xi32>
    %64 = arith.cmpi slt, %27, %63 : vector<128x128xi32>
    %65 = arith.andi %59, %64 : vector<128x128xi1>
    %66 = vector.shape_cast %52 : vector<128x1xf32> to vector<128x1xf32>
    %67 = vector.broadcast %66 : vector<128x1xf32> to vector<128x128xf32>
    %68 = arith.select %65, %67, %47 : vector<128x128xi1>, vector<128x128xf32>
    %69 = arith.addi %48, %57 : vector<128x1xi32>
    %cst_26 = arith.constant 0xFF800000 : f32
    %70 = vector.broadcast %cst_26 : f32 to vector<128x384xf32>
    %71 = arith.select %54, %70, %50 : vector<128x384xi1>, vector<128x384xf32>
    %cst_27 = arith.constant dense<0xFF800000> : vector<128xf32>
    %72 = vector.multi_reduction <maximumf>, %71, %cst_27 [1] : vector<128x384xf32> to vector<128xf32>
    %73 = vector.shape_cast %72 : vector<128xf32> to vector<128x1xf32>
    %74 = vector.broadcast %73 : vector<128x1xf32> to vector<128x384xf32>
    %75 = arith.cmpf oeq, %71, %74 : vector<128x384xf32>
    %76 = arith.extui %75 : vector<128x384xi1> to vector<128x384xi32>
    %cst_28 = arith.constant dense<0> : vector<128xi32>
    %77 = vector.multi_reduction <add>, %76, %cst_28 [1] : vector<128x384xi32> to vector<128xi32>
    %78 = vector.shape_cast %77 : vector<128xi32> to vector<128x1xi32>
    %79 = vector.broadcast %69 : vector<128x1xi32> to vector<128x128xi32>
    %80 = arith.cmpi sge, %27, %79 : vector<128x128xi32>
    %81 = arith.addi %69, %78 : vector<128x1xi32>
    %c6_i32_29 = arith.constant 6 : i32
    %82 = vector.broadcast %c6_i32_29 : i32 to vector<128x1xi32>
    %83 = arith.minsi %81, %82 : vector<128x1xi32>
    %84 = vector.broadcast %83 : vector<128x1xi32> to vector<128x128xi32>
    %85 = arith.cmpi slt, %27, %84 : vector<128x128xi32>
    %86 = arith.andi %80, %85 : vector<128x128xi1>
    %87 = vector.shape_cast %73 : vector<128x1xf32> to vector<128x1xf32>
    %88 = vector.broadcast %87 : vector<128x1xf32> to vector<128x128xf32>
    %89 = arith.select %86, %88, %68 : vector<128x128xi1>, vector<128x128xf32>
    %90 = arith.addi %69, %78 : vector<128x1xi32>
    %cst_30 = arith.constant 0xFF800000 : f32
    %91 = vector.broadcast %cst_30 : f32 to vector<128x384xf32>
    %92 = arith.select %75, %91, %71 : vector<128x384xi1>, vector<128x384xf32>
    %cst_31 = arith.constant dense<0xFF800000> : vector<128xf32>
    %93 = vector.multi_reduction <maximumf>, %92, %cst_31 [1] : vector<128x384xf32> to vector<128xf32>
    %94 = vector.shape_cast %93 : vector<128xf32> to vector<128x1xf32>
    %95 = vector.broadcast %94 : vector<128x1xf32> to vector<128x384xf32>
    %96 = arith.cmpf oeq, %92, %95 : vector<128x384xf32>
    %97 = arith.extui %96 : vector<128x384xi1> to vector<128x384xi32>
    %cst_32 = arith.constant dense<0> : vector<128xi32>
    %98 = vector.multi_reduction <add>, %97, %cst_32 [1] : vector<128x384xi32> to vector<128xi32>
    %99 = vector.shape_cast %98 : vector<128xi32> to vector<128x1xi32>
    %100 = vector.broadcast %90 : vector<128x1xi32> to vector<128x128xi32>
    %101 = arith.cmpi sge, %27, %100 : vector<128x128xi32>
    %102 = arith.addi %90, %99 : vector<128x1xi32>
    %c6_i32_33 = arith.constant 6 : i32
    %103 = vector.broadcast %c6_i32_33 : i32 to vector<128x1xi32>
    %104 = arith.minsi %102, %103 : vector<128x1xi32>
    %105 = vector.broadcast %104 : vector<128x1xi32> to vector<128x128xi32>
    %106 = arith.cmpi slt, %27, %105 : vector<128x128xi32>
    %107 = arith.andi %101, %106 : vector<128x128xi1>
    %108 = vector.shape_cast %94 : vector<128x1xf32> to vector<128x1xf32>
    %109 = vector.broadcast %108 : vector<128x1xf32> to vector<128x128xf32>
    %110 = arith.select %107, %109, %89 : vector<128x128xi1>, vector<128x128xf32>
    %111 = arith.addi %90, %99 : vector<128x1xi32>
    %cst_34 = arith.constant 0xFF800000 : f32
    %112 = vector.broadcast %cst_34 : f32 to vector<128x384xf32>
    %113 = arith.select %96, %112, %92 : vector<128x384xi1>, vector<128x384xf32>
    %cst_35 = arith.constant dense<0xFF800000> : vector<128xf32>
    %114 = vector.multi_reduction <maximumf>, %113, %cst_35 [1] : vector<128x384xf32> to vector<128xf32>
    %115 = vector.shape_cast %114 : vector<128xf32> to vector<128x1xf32>
    %116 = vector.broadcast %115 : vector<128x1xf32> to vector<128x384xf32>
    %117 = arith.cmpf oeq, %113, %116 : vector<128x384xf32>
    %118 = arith.extui %117 : vector<128x384xi1> to vector<128x384xi32>
    %cst_36 = arith.constant dense<0> : vector<128xi32>
    %119 = vector.multi_reduction <add>, %118, %cst_36 [1] : vector<128x384xi32> to vector<128xi32>
    %120 = vector.shape_cast %119 : vector<128xi32> to vector<128x1xi32>
    %121 = vector.broadcast %111 : vector<128x1xi32> to vector<128x128xi32>
    %122 = arith.cmpi sge, %27, %121 : vector<128x128xi32>
    %123 = arith.addi %111, %120 : vector<128x1xi32>
    %c6_i32_37 = arith.constant 6 : i32
    %124 = vector.broadcast %c6_i32_37 : i32 to vector<128x1xi32>
    %125 = arith.minsi %123, %124 : vector<128x1xi32>
    %126 = vector.broadcast %125 : vector<128x1xi32> to vector<128x128xi32>
    %127 = arith.cmpi slt, %27, %126 : vector<128x128xi32>
    %128 = arith.andi %122, %127 : vector<128x128xi1>
    %129 = vector.shape_cast %115 : vector<128x1xf32> to vector<128x1xf32>
    %130 = vector.broadcast %129 : vector<128x1xf32> to vector<128x128xf32>
    %131 = arith.select %128, %130, %110 : vector<128x128xi1>, vector<128x128xf32>
    %132 = arith.addi %111, %120 : vector<128x1xi32>
    %cst_38 = arith.constant 0xFF800000 : f32
    %133 = vector.broadcast %cst_38 : f32 to vector<128x384xf32>
    %134 = arith.select %117, %133, %113 : vector<128x384xi1>, vector<128x384xf32>
    %cst_39 = arith.constant dense<0xFF800000> : vector<128xf32>
    %135 = vector.multi_reduction <maximumf>, %134, %cst_39 [1] : vector<128x384xf32> to vector<128xf32>
    %136 = vector.shape_cast %135 : vector<128xf32> to vector<128x1xf32>
    %137 = vector.broadcast %136 : vector<128x1xf32> to vector<128x384xf32>
    %138 = arith.cmpf oeq, %134, %137 : vector<128x384xf32>
    %139 = arith.extui %138 : vector<128x384xi1> to vector<128x384xi32>
    %cst_40 = arith.constant dense<0> : vector<128xi32>
    %140 = vector.multi_reduction <add>, %139, %cst_40 [1] : vector<128x384xi32> to vector<128xi32>
    %141 = vector.shape_cast %140 : vector<128xi32> to vector<128x1xi32>
    %142 = vector.broadcast %132 : vector<128x1xi32> to vector<128x128xi32>
    %143 = arith.cmpi sge, %27, %142 : vector<128x128xi32>
    %144 = arith.addi %132, %141 : vector<128x1xi32>
    %c6_i32_41 = arith.constant 6 : i32
    %145 = vector.broadcast %c6_i32_41 : i32 to vector<128x1xi32>
    %146 = arith.minsi %144, %145 : vector<128x1xi32>
    %147 = vector.broadcast %146 : vector<128x1xi32> to vector<128x128xi32>
    %148 = arith.cmpi slt, %27, %147 : vector<128x128xi32>
    %149 = arith.andi %143, %148 : vector<128x128xi1>
    %150 = vector.shape_cast %136 : vector<128x1xf32> to vector<128x1xf32>
    %151 = vector.broadcast %150 : vector<128x1xf32> to vector<128x128xf32>
    %152 = arith.select %149, %151, %131 : vector<128x128xi1>, vector<128x128xf32>
    %c0_42 = arith.constant 0 : index
    %c0_43 = arith.constant 0 : index
    %153 = vector.load %arg6[%c0_42, %c0_43] : memref<128x128xf32, #tpu.memory_space<vmem>>, vector<128x128xf32>
    tpu.vector_store %arg6[%c0_42, %c0_43], %152 {strides = array<i32>} : memref<128x128xf32, #tpu.memory_space<vmem>>, vector<128x128xf32>,
    %c0_44 = arith.constant 0 : index
    %c0_45 = arith.constant 0 : index
    %154 = vector.load %arg7[%c0_44, %c0_45] : memref<128x1xf32, #tpu.memory_space<vmem>>, vector<128x1xf32>
    %155 = arith.subf %24, %31 : vector<128x1xf32>
    %156 = math.exp %155 : vector<128x1xf32>
    %157 = arith.mulf %154, %156 : vector<128x1xf32>
    %158 = vector.broadcast %31 : vector<128x1xf32> to vector<128x256xf32>
    %159 = arith.subf %13, %158 : vector<128x256xf32>
    %160 = math.exp %159 : vector<128x256xf32>
    %cst_46 = arith.constant dense<0.000000e+00> : vector<128xf32>
    %161 = vector.multi_reduction <add>, %160, %cst_46 [1] : vector<128x256xf32> to vector<128xf32>
    %162 = vector.shape_cast %161 : vector<128xf32> to vector<128x1xf32>
    %163 = arith.addf %157, %162 : vector<128x1xf32>
    %c0_47 = arith.constant 0 : index
    %c0_48 = arith.constant 0 : index
    %164 = vector.load %arg7[%c0_47, %c0_48] : memref<128x1xf32, #tpu.memory_space<vmem>>, vector<128x1xf32>
    tpu.vector_store %arg7[%c0_47, %c0_48], %163 {strides = array<i32>} : memref<128x1xf32, #tpu.memory_space<vmem>>, vector<128x1xf32>,
    %c1_i32 = arith.constant 1 : i32
    %165 = arith.cmpi eq, %arg1, %c1_i32 : i32
    %166 = arith.extui %165 : i1 to i32
    %c0_i32_49 = arith.constant 0 : i32
    %167 = arith.cmpi ne, %166, %c0_i32_49 : i32
    scf.if %167 {
      %c0_50 = arith.constant 0 : index
      %c0_51 = arith.constant 0 : index
      %168 = vector.load %arg6[%c0_50, %c0_51] : memref<128x128xf32, #tpu.memory_space<vmem>>, vector<128x128xf32>
      %c6_i32_52 = arith.constant 6 : i32
      %169 = vector.broadcast %c6_i32_52 : i32 to vector<128x128xi32>
      %170 = arith.cmpi slt, %27, %169 : vector<128x128xi32>
      %cst_53 = arith.constant 0.000000e+00 : f32
      %171 = vector.broadcast %cst_53 : f32 to vector<128x128xf32>
      %172 = arith.select %170, %168, %171 : vector<128x128xi1>, vector<128x128xf32>
      %cst_54 = arith.constant dense<0.000000e+00> : vector<128xf32>
      %173 = vector.multi_reduction <add>, %172, %cst_54 [1] : vector<128x128xf32> to vector<128xf32>
      %174 = vector.shape_cast %173 : vector<128xf32> to vector<128x1xf32>
      %175 = vector.extract_strided_slice %168 {offsets = [0, 5], sizes = [128, 1], strides = [1, 1]} : vector<128x128xf32> to vector<128x1xf32>
      %176 = vector.extract_strided_slice %168 {offsets = [0, 0], sizes = [128, 1], strides = [1, 1]} : vector<128x128xf32> to vector<128x1xf32>
      %c0_55 = arith.constant 0 : index
      %c0_56 = arith.constant 0 : index
      %177 = vector.load %arg7[%c0_55, %c0_56] : memref<128x1xf32, #tpu.memory_space<vmem>>, vector<128x1xf32>
      %178 = math.log %177 : vector<128x1xf32>
      %179 = arith.addf %176, %178 : vector<128x1xf32>
      %c0_57 = arith.constant 0 : index
      %c0_58 = arith.constant 0 : index
      %180 = vector.load %arg8[%c0_57, %c0_58] : memref<128x1xf32, #tpu.memory_space<vmem>>, vector<128x1xf32>
      %181 = arith.cmpf oge, %180, %175 : vector<128x1xf32>
      %182 = arith.extui %181 : vector<128x1xi1> to vector<128x1xi32>
      %183 = arith.sitofp %182 : vector<128x1xi32> to vector<128x1xf32>
      %cst_59 = arith.constant 6.000000e+00 : f32
      %184 = vector.broadcast %cst_59 : f32 to vector<128x1xf32>
      %185 = arith.mulf %184, %179 : vector<128x1xf32>
      %186 = arith.subf %174, %185 : vector<128x1xf32>
      %187 = arith.subf %180, %179 : vector<128x1xf32>
      %188 = arith.mulf %183, %187 : vector<128x1xf32>
      %189 = arith.subf %186, %188 : vector<128x1xf32>
      %cst_60 = arith.constant 0.000000e+00 : f32
      %190 = vector.broadcast %cst_60 : f32 to vector<128x1xf32>
      %191 = arith.subf %190, %189 : vector<128x1xf32>
      %cst_61 = arith.constant 2.000000e+00 : f32
      %192 = vector.broadcast %cst_61 : f32 to vector<128x1xf32>
      %193 = arith.mulf %192, %187 : vector<128x1xf32>
      %194 = arith.subf %191, %193 : vector<128x1xf32>
      %c0_62 = arith.constant 0 : index
      %c0_63 = arith.constant 0 : index
      %195 = vector.load %arg5[%c0_62, %c0_63] : memref<128x1xf32, #tpu.memory_space<vmem>>, vector<128x1xf32>
      tpu.vector_store %arg5[%c0_62, %c0_63], %194 {strides = array<i32>} : memref<128x1xf32, #tpu.memory_space<vmem>>, vector<128x1xf32>,
    } else {
    }
    return
  }
  func.func @transform_0(%arg0: i32, %arg1: i32) -> (i32, i32) {
    %c0_i32 = arith.constant 0 : i32
    %c0_i32_0 = arith.constant 0 : i32
    return %arg0, %c0_i32 : i32, i32
  }
  func.func @transform_1(%arg0: i32, %arg1: i32) -> (i32, i32) {
    %c0_i32 = arith.constant 0 : i32
    %c0_i32_0 = arith.constant 0 : i32
    return %arg1, %c0_i32 : i32, i32
  }
  func.func @transform_2(%arg0: i32, %arg1: i32) -> (i32, i32) {
    %c0_i32 = arith.constant 0 : i32
    %c0_i32_0 = arith.constant 0 : i32
    return %arg0, %c0_i32 : i32, i32
  }
  func.func @transform_3(%arg0: i32, %arg1: i32) -> (i32, i32) {
    %c0_i32 = arith.constant 0 : i32
    %c0_i32_0 = arith.constant 0 : i32
    return %arg0, %c0_i32 : i32, i32
  }
}

</mosaic_0001>

<llo_original>
// kernel: tpu_custom_call.1
$region0: #{tpu_custom_call.1}
  #allocation0 [shape = 'u32[]', space=smem, size = 0x4, offset = 0x4, fixed_abs, tag = 'smem constant byte address 0x4 - core index']
  #allocation1 [shape = 'u32[144,128]{1,0:T(1,128)}', space=vmem, size = 0x12000, scoped, tag = 'internal scratch']
  #allocation2 [shape = 'f32[128,128]{1,0:T(8,128)}', space=vmem, size = 0x10000, scoped, tag = 'scratch operand']
  #allocation3 [shape = 'f32[128,1]{1,0:T(8,128)}', space=vmem, size = 0x10000, scoped, tag = 'scratch operand']
  #allocation4 [shape = 'f32[128,1]{1,0:T(8,128)}', space=vmem, size = 0x10000, scoped, tag = 'scratch operand']
  %s0 = inlined_call_operand.vmem [shape: bf16[128,128], index: 0, kind: input, shape index: {}]
  %s1 = inlined_call_operand.hbm [shape: bf16[512,128], index: 1, kind: input, shape index: {}]
  %s2 = inlined_call_operand.vmem [shape: s32[128,1], index: 2, kind: input, shape index: {}]
  %s3 = inlined_call_operand.vmem [shape: f32[128,1], index: 3, kind: output, shape index: {}]
  %s4 = sld [smem:[#allocation0]]
  $region57: #{tpu_custom_call.1} parent=0
    _
  %s6 = ssub.s32 1, %s4
  %s7 = scalar_select 0, %s6, %s4
  $region1: #{tpu_custom_call.1} parent=0
    #allocation5 [shape = 'u8[131072]{0}', space=vmem, size = 0x20000, scoped, tag = 'input window, operand 1']
    #allocation6 [shape = 's32[2]{0}', space=sflag, size = 0x8, scoped, tag = 'scoped memory for tpu_custom_call.1']
    %8 = vsyncpa [#allocation6], 0
    %s9 = scalar_lea.sflag [#allocation6], 1
    %10 = vsyncpa %s9, 0
    loop: start=0, step=1, limit=4
    $region2: #{tpu_custom_call.1} parent=1 // loop_pre_header
      _
    $region3: #{tpu_custom_call.1} parent=1 // loop_header
      %s12 = sphi 0, %s16
      %p13 = scmp.ge.s32.totalorder %s12, 4
      %s19 = sphi 0, %s31
      %s20 = sphi 0, %s27
      %s21 = sphi 0, %s19
      %s22 = sphi 0, %s20
      %s23 = sphi 0, %s21
      %s24 = sphi 0, %s22
      %s34 = sphi 0, %s36
      %s37 = sphi 0, %s34
      %s38 = sphi 0, %s37
      %s54 = sphi 0, %s38
      %s60 = sphi 0, %s62
      %s63 = sphi 0, %s60
      %s64 = sphi 0, %s63
      %s80 = sphi 0, %s64
      %s86 = sphi 0, %s88
      %s89 = sphi 0, %s86
      %s90 = sphi 0, %s89
      %s106 = sphi 0, %s90
      %s112 = sphi 0, %s114
      %s115 = sphi 0, %s112
      %s116 = sphi 0, %s115
      %s132 = sphi 0, %s116
    $region4: #{tpu_custom_call.1} parent=1 // loop_header_branch
      %15 = sbr.rel (%p13) target = $region8
    $region5: #{tpu_custom_call.1} parent=1 // loop_body
      %s17 = ssub.s32 %s12, 1
      %s18 = ssub.s32 %s12, 2
      %s25 = sadd.s32 1, %s20
      %p26 = scmp.ge.s32.totalorder %s25, 2
      %s27 = scalar_select %p26, 0, %s25
      %s28 = sadd.s32 1, %s19
      %s29 = scalar_select %p26, %s28, %s19
      %p30 = scmp.ge.s32.totalorder %s29, 1
      %s31 = scalar_select %p30, 0, %s29
      %s32 = ssub.s32 %s19, %s31
      %p33 = scmp.eq.s32.totalorder %s32, 0
      %s35 = sadd.s32 %s34, 1
      %s36 = scalar_select %p33, %s34, %s35
      %p39 = pneg %p33
      %p40 = scmp.eq.s32.totalorder %s12, 1
      %p41 = por %p39, %p40
      %p42 = scmp.ne.s32.totalorder %s34, %s37
      %p43 = scmp.eq.s32.totalorder %s12, 0
      %p44 = por %p42, %p43
      %p45 = scmp.ne.s32.totalorder %s34, %s37
      %p46 = scmp.eq.s32.totalorder %s17, 1
      %p47 = por %p45, %p46
      %p48 = scmp.ne.s32.totalorder %s37, %s38
      %p49 = scmp.eq.s32.totalorder %s17, 0
      %p50 = por %p48, %p49
      %p51 = scmp.ne.s32.totalorder %s37, %s38
      %p52 = scmp.eq.s32.totalorder %s18, 1
      %p53 = por %p51, %p52
      %p55 = scmp.ne.s32.totalorder %s38, %s54
      %p56 = scmp.eq.s32.totalorder %s18, 0
      %p57 = por %p55, %p56
      %s58 = ssub.s32 %s20, %s27
      %p59 = scmp.eq.s32.totalorder %s58, 0
      %s61 = sadd.s32 %s60, 1
      %s62 = scalar_select %p59, %s60, %s61
      %p65 = pneg %p59
      %p66 = scmp.eq.s32.totalorder %s12, 1
      %p67 = por %p65, %p66
      %p68 = scmp.ne.s32.totalorder %s60, %s63
      %p69 = scmp.eq.s32.totalorder %s12, 0
      %p70 = por %p68, %p69
      %p71 = scmp.ne.s32.totalorder %s60, %s63
      %p72 = scmp.eq.s32.totalorder %s17, 1
      %p73 = por %p71, %p72
      %p74 = scmp.ne.s32.totalorder %s63, %s64
      %p75 = scmp.eq.s32.totalorder %s17, 0
      %p76 = por %p74, %p75
      %p77 = scmp.ne.s32.totalorder %s63, %s64
      %p78 = scmp.eq.s32.totalorder %s18, 1
      %p79 = por %p77, %p78
      %p81 = scmp.ne.s32.totalorder %s64, %s80
      %p82 = scmp.eq.s32.totalorder %s18, 0
      %p83 = por %p81, %p82
      %s84 = ssub.s32 %s19, %s31
      %p85 = scmp.eq.s32.totalorder %s84, 0
      %s87 = sadd.s32 %s86, 1
      %s88 = scalar_select %p85, %s86, %s87
      %p91 = pneg %p85
      %p92 = scmp.eq.s32.totalorder %s12, 1
      %p93 = por %p91, %p92
      %p94 = scmp.ne.s32.totalorder %s86, %s89
      %p95 = scmp.eq.s32.totalorder %s12, 0
      %p96 = por %p94, %p95
      %p97 = scmp.ne.s32.totalorder %s86, %s89
      %p98 = scmp.eq.s32.totalorder %s17, 1
      %p99 = por %p97, %p98
      %p100 = scmp.ne.s32.totalorder %s89, %s90
      %p101 = scmp.eq.s32.totalorder %s17, 0
      %p102 = por %p100, %p101
      %p103 = scmp.ne.s32.totalorder %s89, %s90
      %p104 = scmp.eq.s32.totalorder %s18, 1
      %p105 = por %p103, %p104
      %p107 = scmp.ne.s32.totalorder %s90, %s106
      %p108 = scmp.eq.s32.totalorder %s18, 0
      %p109 = por %p107, %p108
      %s110 = ssub.s32 %s19, %s31
      %p111 = scmp.eq.s32.totalorder %s110, 0
      %s113 = sadd.s32 %s112, 1
      %s114 = scalar_select %p111, %s112, %s113
      %p117 = pneg %p111
      %p118 = scmp.eq.s32.totalorder %s12, 1
      %p119 = por %p117, %p118
      %p120 = scmp.ne.s32.totalorder %s112, %s115
      %p121 = scmp.eq.s32.totalorder %s12, 0
      %p122 = por %p120, %p121
      %p123 = scmp.ne.s32.totalorder %s112, %s115
      %p124 = scmp.eq.s32.totalorder %s17, 1
      %p125 = por %p123, %p124
      %p126 = scmp.ne.s32.totalorder %s115, %s116
      %p127 = scmp.eq.s32.totalorder %s17, 0
      %p128 = por %p126, %p127
      %p129 = scmp.ne.s32.totalorder %s115, %s116
      %p130 = scmp.eq.s32.totalorder %s18, 1
      %p131 = por %p129, %p130
      %p133 = scmp.ne.s32.totalorder %s116, %s132
      %p134 = scmp.eq.s32.totalorder %s18, 0
      %p135 = por %p133, %p134
      %p136 = scmp.le.s32.totalorder 1, %s12
      %p137 = scmp.lt.s32.totalorder %s12, 3
      %p138 = pnand %p136, %p137
      %p139 = pneg %p138
      // Predicated region
      $region9: #{tpu_custom_call.1} parent=5 // pred_check
        _
      $region10: #{tpu_custom_call.1} parent=5 // pred_check_branch
        %141 = sbr.rel (%p138) target = $region12
      $region11: #{tpu_custom_call.1} parent=5 // pred_region
        %s142 = ssub.s32 %s12, 1
        // Predicated region
        $region13: #{tpu_custom_call.1} parent=11 // pred_check
          %p143 = pneg %p50
        $region14: #{tpu_custom_call.1} parent=11 // pred_check_branch
          %145 = sbr.rel (%p143) target = $region16
        $region15: #{tpu_custom_call.1} parent=11 // pred_region
          %s146 = smul.u32 16, %s21
          %p147 = scmp.lt.s32.totalorder %s146, 15
          %s148 = scalar_select %p147, %s146, 15
          %s149 = smul.addr %s148, 4
          %s150 = scalar_lea.vmem %s0, %s149
          %s151 = smul.u32 16, %s21
        $region16: #{tpu_custom_call.1} parent=11 // pred_fallthru
          _
        // Predicated region
        $region17: #{tpu_custom_call.1} parent=11 // pred_check
          %p152 = pneg %p102
        $region18: #{tpu_custom_call.1} parent=11 // pred_check_branch
          %154 = sbr.rel (%p152) target = $region20
        $region19: #{tpu_custom_call.1} parent=11 // pred_region
          %s155 = smul.u32 16, %s21
          %p156 = scmp.lt.s32.totalorder %s155, 15
          %s157 = scalar_select %p156, %s155, 15
          %s158 = smul.addr %s157, 8
          %s159 = scalar_lea.vmem %s2, %s158
          %s160 = smul.u32 16, %s21
        $region20: #{tpu_custom_call.1} parent=11 // pred_fallthru
          _
      $region12: #{tpu_custom_call.1} parent=5 // pred_fallthru
        _
      %p161 = scmp.lt.s32.totalorder %s12, 2
      // Predicated region
      $region21: #{tpu_custom_call.1} parent=5 // pred_check
        %p162 = pneg %p161
      $region22: #{tpu_custom_call.1} parent=5 // pred_check_branch
        %164 = sbr.rel (%p162) target = $region24
      $region23: #{tpu_custom_call.1} parent=5 // pred_region
        // Predicated region
        $region25: #{tpu_custom_call.1} parent=23 // pred_check
          %p165 = pneg %p70
        $region26: #{tpu_custom_call.1} parent=23 // pred_check_branch
          %167 = sbr.rel (%p165) target = $region28
        $region27: #{tpu_custom_call.1} parent=23 // pred_region
          %s168 = sand.u32 %s60, 1
          %s169 = scalar_lea.sflag [#allocation6], %s168
          %s170 = sand.u32 %s60, 1
          %s171 = smul.addr %s170, 128
          %s172 = scalar_lea.vmem [#allocation5], %s171
          %s173 = smul.u32 32, %s20
          %s175 = ssub.s32 2048, 2048
          %176 = vsyncadd %s169, %s175
          %s177 = smul.addr %s173, 64
          %s178 = scalar_lea.hbm %s1, %s177
          %s179 = sshll.u32 %s172, 4
          %s180 = int_to_ptr.vmem [resolvable:$true] %s179
          %185 = dma.hbm_to_vmem [thread:$0]  %s178, 2048, %s180, %s169, 64, 64, 4
        $region28: #{tpu_custom_call.1} parent=23 // pred_fallthru
          _
      $region24: #{tpu_custom_call.1} parent=5 // pred_fallthru
        _
      %p186 = scmp.le.s32.totalorder 1, %s12
      %p187 = scmp.lt.s32.totalorder %s12, 3
      %p188 = pnand %p186, %p187
      %p189 = pneg %p188
      // Predicated region
      $region29: #{tpu_custom_call.1} parent=5 // pred_check
        _
      $region30: #{tpu_custom_call.1} parent=5 // pred_check_branch
        %191 = sbr.rel (%p188) target = $region32
      $region31: #{tpu_custom_call.1} parent=5 // pred_region
        %s192 = ssub.s32 %s12, 1
        %s193 = sand.u32 %s63, 1
        %s194 = scalar_lea.sflag [#allocation6], %s193
        %s195 = sand.u32 %s63, 1
        %s196 = smul.addr %s195, 128
        %s197 = scalar_lea.vmem [#allocation5], %s196
        // Predicated region
        $region33: #{tpu_custom_call.1} parent=31 // pred_check
          %p198 = pneg %p76
        $region34: #{tpu_custom_call.1} parent=31 // pred_check_branch
          %200 = sbr.rel (%p198) target = $region36
        $region35: #{tpu_custom_call.1} parent=31 // pred_region
          %201 = dma.done %s194, 2048
        $region36: #{tpu_custom_call.1} parent=31 // pred_fallthru
          _
        %s202 = smul.u32 16, %s21
        %p203 = scmp.lt.s32.totalorder %s202, 15
        %s204 = scalar_select %p203, %s202, 15
        %s205 = smul.addr %s204, 4
        %s206 = scalar_lea.vmem %s0, %s205
        %p207 = pneg %p50
        %p208 = pneg %p47
        %s209 = sand.u32 %s63, 1
        %s210 = scalar_lea.sflag [#allocation6], %s209
        %s211 = sand.u32 %s63, 1
        %s212 = smul.addr %s211, 128
        %s213 = scalar_lea.vmem [#allocation5], %s212
        %p214 = pneg %p76
        %p215 = pneg %p73
        %s216 = smul.u32 16, %s21
        %p217 = scmp.lt.s32.totalorder %s216, 15
        %s218 = scalar_select %p217, %s216, 15
        %s219 = smul.addr %s218, 8
        %s220 = scalar_lea.vmem %s2, %s219
        %p221 = pneg %p102
        %p222 = pneg %p99
        %p223 = pneg %p128
        %p224 = pneg %p125
        %s225 = smul.u32 16, %s21
        %p226 = scmp.lt.s32.totalorder %s225, 15
        %s227 = scalar_select %p226, %s225, 15
        %s228 = smul.addr %s227, 8
        %s229 = scalar_lea.vmem %s3, %s228
        %s230 = smul.u32 16, %s21
        %p231 = scmp.lt.s32.totalorder %s230, 15
        %s232 = scalar_select %p231, %s230, 15
        %s233 = smul.addr %s232, 4
        %s234 = scalar_lea.vmem %s0, %s233
        %s235 = smul.u32 16, %s21
        %s236 = smul.u32 32, %s22
        %s237 = smul.u32 16, %s21
        %p238 = scmp.lt.s32.totalorder %s237, 15
        %s239 = scalar_select %p238, %s237, 15
        %s240 = smul.addr %s239, 8
        %s241 = scalar_lea.vmem %s2, %s240
        %s242 = smul.u32 16, %s21
        %s243 = smul.u32 16, %s21
        %p244 = scmp.lt.s32.totalorder %s243, 15
        %s245 = scalar_select %p244, %s243, 15
        %s246 = smul.addr %s245, 8
        %s247 = scalar_lea.vmem %s3, %s246
        %s248 = smul.u32 16, %s21
        %p250 = scmp.eq.s32.totalorder %s22, 0
        // Predicated region
        $region37: #{tpu_custom_call.1} parent=31 // pred_check
          %p251 = pneg %p250
        $region38: #{tpu_custom_call.1} parent=31 // pred_check_branch
          %253 = sbr.rel (%p251) target = $region40
        $region39: #{tpu_custom_call.1} parent=31 // pred_region
          %254 = vst [vmem:[#allocation2] sm:$0xff] -inf
          %255 = vst [vmem:[#allocation2 + $0x8] sm:$0xff] -inf
          %256 = vst [vmem:[#allocation2 + $0x10] sm:$0xff] -inf
          %257 = vst [vmem:[#allocation2 + $0x18] sm:$0xff] -inf
          %258 = vst [vmem:[#allocation2 + $0x20] sm:$0xff] -inf
          %259 = vst [vmem:[#allocation2 + $0x28] sm:$0xff] -inf
          %260 = vst [vmem:[#allocation2 + $0x30] sm:$0xff] -inf
          %261 = vst [vmem:[#allocation2 + $0x38] sm:$0xff] -inf
          %262 = vst [vmem:[#allocation2 + $0x40] sm:$0xff] -inf
          %263 = vst [vmem:[#allocation2 + $0x48] sm:$0xff] -inf
          %264 = vst [vmem:[#allocation2 + $0x50] sm:$0xff] -inf
          %265 = vst [vmem:[#allocation2 + $0x58] sm:$0xff] -inf
          %266 = vst [vmem:[#allocation2 + $0x60] sm:$0xff] -inf
          %267 = vst [vmem:[#allocation2 + $0x68] sm:$0xff] -inf
          %268 = vst [vmem:[#allocation2 + $0x70] sm:$0xff] -inf
          %269 = vst [vmem:[#allocation2 + $0x78] sm:$0xff] -inf
          %vm270 = vcmask 7168
          %271 = vst.msk [vmem:[#allocation3] sm:$0xff] %vm270, 0.0
          %272 = vst.msk [vmem:[#allocation3 + $0x8] sm:$0xff] %vm270, 0.0
          %273 = vst.msk [vmem:[#allocation3 + $0x10] sm:$0xff] %vm270, 0.0
          %274 = vst.msk [vmem:[#allocation3 + $0x18] sm:$0xff] %vm270, 0.0
          %275 = vst.msk [vmem:[#allocation3 + $0x20] sm:$0xff] %vm270, 0.0
          %276 = vst.msk [vmem:[#allocation3 + $0x28] sm:$0xff] %vm270, 0.0
          %277 = vst.msk [vmem:[#allocation3 + $0x30] sm:$0xff] %vm270, 0.0
          %278 = vst.msk [vmem:[#allocation3 + $0x38] sm:$0xff] %vm270, 0.0
          %279 = vst.msk [vmem:[#allocation3 + $0x40] sm:$0xff] %vm270, 0.0
          %280 = vst.msk [vmem:[#allocation3 + $0x48] sm:$0xff] %vm270, 0.0
          %281 = vst.msk [vmem:[#allocation3 + $0x50] sm:$0xff] %vm270, 0.0
          %282 = vst.msk [vmem:[#allocation3 + $0x58] sm:$0xff] %vm270, 0.0
          %283 = vst.msk [vmem:[#allocation3 + $0x60] sm:$0xff] %vm270, 0.0
          %284 = vst.msk [vmem:[#allocation3 + $0x68] sm:$0xff] %vm270, 0.0
          %285 = vst.msk [vmem:[#allocation3 + $0x70] sm:$0xff] %vm270, 0.0
          %286 = vst.msk [vmem:[#allocation3 + $0x78] sm:$0xff] %vm270, 0.0
          %287 = vst.msk [vmem:[#allocation4] sm:$0xff] %vm270, 0.0
          %288 = vst.msk [vmem:[#allocation4 + $0x8] sm:$0xff] %vm270, 0.0
          %289 = vst.msk [vmem:[#allocation4 + $0x10] sm:$0xff] %vm270, 0.0
          %290 = vst.msk [vmem:[#allocation4 + $0x18] sm:$0xff] %vm270, 0.0
          %291 = vst.msk [vmem:[#allocation4 + $0x20] sm:$0xff] %vm270, 0.0
          %292 = vst.msk [vmem:[#allocation4 + $0x28] sm:$0xff] %vm270, 0.0
          %293 = vst.msk [vmem:[#allocation4 + $0x30] sm:$0xff] %vm270, 0.0
          %294 = vst.msk [vmem:[#allocation4 + $0x38] sm:$0xff] %vm270, 0.0
          %295 = vst.msk [vmem:[#allocation4 + $0x40] sm:$0xff] %vm270, 0.0
          %296 = vst.msk [vmem:[#allocation4 + $0x48] sm:$0xff] %vm270, 0.0
          %297 = vst.msk [vmem:[#allocation4 + $0x50] sm:$0xff] %vm270, 0.0
          %298 = vst.msk [vmem:[#allocation4 + $0x58] sm:$0xff] %vm270, 0.0
          %299 = vst.msk [vmem:[#allocation4 + $0x60] sm:$0xff] %vm270, 0.0
          %300 = vst.msk [vmem:[#allocation4 + $0x68] sm:$0xff] %vm270, 0.0
          %301 = vst.msk [vmem:[#allocation4 + $0x70] sm:$0xff] %vm270, 0.0
          %302 = vst.msk [vmem:[#allocation4 + $0x78] sm:$0xff] %vm270, 0.0
        $region40: #{tpu_custom_call.1} parent=31 // pred_fallthru
          _
        %v303 = vld [vmem:[%s234] sm:$0xf]
        %v304 = vld [vmem:[%s234 + $0x4] sm:$0xf]
        %v305 = vld [vmem:[%s234 + $0x8] sm:$0xf]
        %v306 = vld [vmem:[%s234 + $0xc] sm:$0xf]
        %v307 = vld [vmem:[%s234 + $0x10] sm:$0xf]
        %v308 = vld [vmem:[%s234 + $0x14] sm:$0xf]
        %v309 = vld [vmem:[%s234 + $0x18] sm:$0xf]
        %v310 = vld [vmem:[%s234 + $0x1c] sm:$0xf]
        %v311 = vld [vmem:[%s234 + $0x20] sm:$0xf]
        %v312 = vld [vmem:[%s234 + $0x24] sm:$0xf]
        %v313 = vld [vmem:[%s234 + $0x28] sm:$0xf]
        %v314 = vld [vmem:[%s234 + $0x2c] sm:$0xf]
        %v315 = vld [vmem:[%s234 + $0x30] sm:$0xf]
        %v316 = vld [vmem:[%s234 + $0x34] sm:$0xf]
        %v317 = vld [vmem:[%s234 + $0x38] sm:$0xf]
        %v318 = vld [vmem:[%s234 + $0x3c] sm:$0xf]
        %v319 = vld [vmem:[%s197] sm:$0xf]
        %v320 = vld [vmem:[%s197 + $0x4] sm:$0xf]
        %v321 = vld [vmem:[%s197 + $0x8] sm:$0xf]
        %v322 = vld [vmem:[%s197 + $0xc] sm:$0xf]
        %v323 = vld [vmem:[%s197 + $0x10] sm:$0xf]
        %v324 = vld [vmem:[%s197 + $0x14] sm:$0xf]
        %v325 = vld [vmem:[%s197 + $0x18] sm:$0xf]
        %v326 = vld [vmem:[%s197 + $0x1c] sm:$0xf]
        %v327 = vld [vmem:[%s197 + $0x20] sm:$0xf]
        %v328 = vld [vmem:[%s197 + $0x24] sm:$0xf]
        %v329 = vld [vmem:[%s197 + $0x28] sm:$0xf]
        %v330 = vld [vmem:[%s197 + $0x2c] sm:$0xf]
        %v331 = vld [vmem:[%s197 + $0x30] sm:$0xf]
        %v332 = vld [vmem:[%s197 + $0x34] sm:$0xf]
        %v333 = vld [vmem:[%s197 + $0x38] sm:$0xf]
        %v334 = vld [vmem:[%s197 + $0x3c] sm:$0xf]
        %v335 = vld [vmem:[%s197 + $0x40] sm:$0xf]
        %v336 = vld [vmem:[%s197 + $0x44] sm:$0xf]
        %v337 = vld [vmem:[%s197 + $0x48] sm:$0xf]
        %v338 = vld [vmem:[%s197 + $0x4c] sm:$0xf]
        %v339 = vld [vmem:[%s197 + $0x50] sm:$0xf]
        %v340 = vld [vmem:[%s197 + $0x54] sm:$0xf]
        %v341 = vld [vmem:[%s197 + $0x58] sm:$0xf]
        %v342 = vld [vmem:[%s197 + $0x5c] sm:$0xf]
        %v343 = vld [vmem:[%s197 + $0x60] sm:$0xf]
        %v344 = vld [vmem:[%s197 + $0x64] sm:$0xf]
        %v345 = vld [vmem:[%s197 + $0x68] sm:$0xf]
        %v346 = vld [vmem:[%s197 + $0x6c] sm:$0xf]
        %v347 = vld [vmem:[%s197 + $0x70] sm:$0xf]
        %v348 = vld [vmem:[%s197 + $0x74] sm:$0xf]
        %v349 = vld [vmem:[%s197 + $0x78] sm:$0xf]
        %v350 = vld [vmem:[%s197 + $0x7c] sm:$0xf]
        %v367 = vunpack.c.l.b16 %v303
        %v368 = vunpack.c.l.b16 %v304
        %v369 = vunpack.c.l.b16 %v305
        %v370 = vunpack.c.l.b16 %v306
        %v371 = vunpack.c.l.b16 %v307
        %v372 = vunpack.c.l.b16 %v308
        %v373 = vunpack.c.l.b16 %v309
        %v374 = vunpack.c.l.b16 %v310
        %v375 = vunpack.c.l.b16 %v311
        %v376 = vunpack.c.l.b16 %v312
        %v377 = vunpack.c.l.b16 %v313
        %v378 = vunpack.c.l.b16 %v314
        %v379 = vunpack.c.l.b16 %v315
        %v380 = vunpack.c.l.b16 %v316
        %v381 = vunpack.c.l.b16 %v317
        %v382 = vunpack.c.l.b16 %v318
        %v383 = vpack.c.b16 %v368, %v367
        %v384 = vpack.c.b16 %v370, %v369
        %v385 = vpack.c.b16 %v372, %v371
        %v386 = vpack.c.b16 %v374, %v373
        %v387 = vpack.c.b16 %v376, %v375
        %v388 = vpack.c.b16 %v378, %v377
        %v389 = vpack.c.b16 %v380, %v379
        %v390 = vpack.c.b16 %v382, %v381
        %v431 = vunpack.c.l.b16 %v319
        %v432 = vunpack.c.l.b16 %v320
        %v433 = vunpack.c.l.b16 %v321
        %v434 = vunpack.c.l.b16 %v322
        %v435 = vunpack.c.l.b16 %v323
        %v436 = vunpack.c.l.b16 %v324
        %v437 = vunpack.c.l.b16 %v325
        %v438 = vunpack.c.l.b16 %v326
        %v439 = vunpack.c.l.b16 %v327
        %v440 = vunpack.c.l.b16 %v328
        %v441 = vunpack.c.l.b16 %v329
        %v442 = vunpack.c.l.b16 %v330
        %v443 = vunpack.c.l.b16 %v331
        %v444 = vunpack.c.l.b16 %v332
        %v445 = vunpack.c.l.b16 %v333
        %v446 = vunpack.c.l.b16 %v334
        %v447 = vunpack.c.l.b16 %v335
        %v448 = vunpack.c.l.b16 %v336
        %v449 = vunpack.c.l.b16 %v337
        %v450 = vunpack.c.l.b16 %v338
        %v451 = vunpack.c.l.b16 %v339
        %v452 = vunpack.c.l.b16 %v340
        %v453 = vunpack.c.l.b16 %v341
        %v454 = vunpack.c.l.b16 %v342
        %v455 = vunpack.c.l.b16 %v343
        %v456 = vunpack.c.l.b16 %v344
        %v457 = vunpack.c.l.b16 %v345
        %v458 = vunpack.c.l.b16 %v346
        %v459 = vunpack.c.l.b16 %v347
        %v460 = vunpack.c.l.b16 %v348
        %v461 = vunpack.c.l.b16 %v349
        %v462 = vunpack.c.l.b16 %v350
        %v463 = vpack.c.b16 %v432, %v431
        %v464 = vpack.c.b16 %v434, %v433
        %v465 = vpack.c.b16 %v436, %v435
        %v466 = vpack.c.b16 %v438, %v437
        %v467 = vpack.c.b16 %v440, %v439
        %v468 = vpack.c.b16 %v442, %v441
        %v469 = vpack.c.b16 %v444, %v443
        %v470 = vpack.c.b16 %v446, %v445
        %v471 = vpack.c.b16 %v448, %v447
        %v472 = vpack.c.b16 %v450, %v449
        %v473 = vpack.c.b16 %v452, %v451
        %v474 = vpack.c.b16 %v454, %v453
        %v475 = vpack.c.b16 %v456, %v455
        %v476 = vpack.c.b16 %v458, %v457
        %v477 = vpack.c.b16 %v460, %v459
        %v478 = vpack.c.b16 %v462, %v461
        %495 = vmatprep.subr.bf16.mxu0 0
        %496 = vmatpush1.bf16.xpose.msra.mxu0 %v470
        %497 = vmatprep.subr.bf16.mxu0 0
        %498 = vmatpush1.bf16.xpose.msra.mxu0 %v469
        %499 = vmatprep.subr.bf16.mxu0 0
        %500 = vmatpush1.bf16.xpose.msra.mxu0 %v468
        %501 = vmatprep.subr.bf16.mxu0 0
        %502 = vmatpush1.bf16.xpose.msra.mxu0 %v467
        %503 = vmatprep.subr.bf16.mxu0 0
        %504 = vmatpush1.bf16.xpose.msra.mxu0 %v466
        %505 = vmatprep.subr.bf16.mxu0 0
        %506 = vmatpush1.bf16.xpose.msra.mxu0 %v465
        %507 = vmatprep.subr.bf16.mxu0 0
        %508 = vmatpush1.bf16.xpose.msra.mxu0 %v464
        %509 = vmatprep.subr.bf16.mxu0 0
        %510 = vmatpush1.bf16.xpose.msra.mxu0 %v463
        %511 = vmatprep.subr.bf16.mxu0 0
        %512 = vmatpush2.bf16.xpose.msra.mxu0 %v478
        %513 = vmatprep.subr.bf16.mxu0 0
        %514 = vmatpush2.bf16.xpose.msra.mxu0 %v477
        %515 = vmatprep.subr.bf16.mxu0 0
        %516 = vmatpush2.bf16.xpose.msra.mxu0 %v476
        %517 = vmatprep.subr.bf16.mxu0 0
        %518 = vmatpush2.bf16.xpose.msra.mxu0 %v475
        %519 = vmatprep.subr.bf16.mxu0 0
        %520 = vmatpush2.bf16.xpose.msra.mxu0 %v474
        %521 = vmatprep.subr.bf16.mxu0 0
        %522 = vmatpush2.bf16.xpose.msra.mxu0 %v473
        %523 = vmatprep.subr.bf16.mxu0 0
        %524 = vmatpush2.bf16.xpose.msra.mxu0 %v472
        %525 = vmatprep.subr.bf16.mxu0 0
        %526 = vmatpush2.bf16.xpose.msra.mxu0 %v471
        %527 = vmatprep.mubr.bf16.mxu0 0
        %528 = vmatmul.mubr.bf16.gmra.mxu0 %v383
        %v529 = vpop.f32.mrf.mxu0
        %v530 = vadd.f32 0.0, %v529
        %v531 = vpop.f32.mrf.mxu0
        %v532 = vadd.f32 0.0, %v531
        %v533 = vpop.f32.mrf.mxu0
        %v534 = vadd.f32 0.0, %v533
        %v535 = vpop.f32.mrf.mxu0
        %v536 = vadd.f32 0.0, %v535
        %537 = vmatprep.mubr.bf16.mxu0 0
        %538 = vmatmul.mubr.bf16.gmra.mxu0 %v384
        %v539 = vpop.f32.mrf.mxu0
        %v540 = vadd.f32 0.0, %v539
        %v541 = vpop.f32.mrf.mxu0
        %v542 = vadd.f32 0.0, %v541
        %v543 = vpop.f32.mrf.mxu0
        %v544 = vadd.f32 0.0, %v543
        %v545 = vpop.f32.mrf.mxu0
        %v546 = vadd.f32 0.0, %v545
        %547 = vmatprep.mubr.bf16.mxu0 0
        %548 = vmatmul.mubr.bf16.gmra.mxu0 %v385
        %v549 = vpop.f32.mrf.mxu0
        %v550 = vadd.f32 0.0, %v549
        %v551 = vpop.f32.mrf.mxu0
        %v552 = vadd.f32 0.0, %v551
        %v553 = vpop.f32.mrf.mxu0
        %v554 = vadd.f32 0.0, %v553
        %v555 = vpop.f32.mrf.mxu0
        %v556 = vadd.f32 0.0, %v555
        %557 = vmatprep.mubr.bf16.mxu0 0
        %558 = vmatmul.mubr.bf16.gmra.mxu0 %v386
        %v559 = vpop.f32.mrf.mxu0
        %v560 = vadd.f32 0.0, %v559
        %v561 = vpop.f32.mrf.mxu0
        %v562 = vadd.f32 0.0, %v561
        %v563 = vpop.f32.mrf.mxu0
        %v564 = vadd.f32 0.0, %v563
        %v565 = vpop.f32.mrf.mxu0
        %v566 = vadd.f32 0.0, %v565
        %567 = vmatprep.mubr.bf16.mxu0 0
        %568 = vmatmul.mubr.bf16.gmra.mxu0 %v387
        %v569 = vpop.f32.mrf.mxu0
        %v570 = vadd.f32 0.0, %v569
        %v571 = vpop.f32.mrf.mxu0
        %v572 = vadd.f32 0.0, %v571
        %v573 = vpop.f32.mrf.mxu0
        %v574 = vadd.f32 0.0, %v573
        %v575 = vpop.f32.mrf.mxu0
        %v576 = vadd.f32 0.0, %v575
        %577 = vmatprep.mubr.bf16.mxu0 0
        %578 = vmatmul.mubr.bf16.gmra.mxu0 %v388
        %v579 = vpop.f32.mrf.mxu0
        %v580 = vadd.f32 0.0, %v579
        %v581 = vpop.f32.mrf.mxu0
        %v582 = vadd.f32 0.0, %v581
        %v583 = vpop.f32.mrf.mxu0
        %v584 = vadd.f32 0.0, %v583
        %v585 = vpop.f32.mrf.mxu0
        %v586 = vadd.f32 0.0, %v585
        %587 = vmatprep.mubr.bf16.mxu0 0
        %588 = vmatmul.mubr.bf16.gmra.mxu0 %v389
        %v589 = vpop.f32.mrf.mxu0
        %v590 = vadd.f32 0.0, %v589
        %v591 = vpop.f32.mrf.mxu0
        %v592 = vadd.f32 0.0, %v591
        %v593 = vpop.f32.mrf.mxu0
        %v594 = vadd.f32 0.0, %v593
        %v595 = vpop.f32.mrf.mxu0
        %v596 = vadd.f32 0.0, %v595
        %597 = vmatprep.mubr.bf16.mxu0 0
        %598 = vmatmul.mubr.bf16.gmra.mxu0 %v390
        %v599 = vpop.f32.mrf.mxu0
        %v600 = vadd.f32 0.0, %v599
        %v601 = vpop.f32.mrf.mxu0
        %v602 = vadd.f32 0.0, %v601
        %v603 = vpop.f32.mrf.mxu0
        %v604 = vadd.f32 0.0, %v603
        %v605 = vpop.f32.mrf.mxu0
        %v606 = vadd.f32 0.0, %v605
        %607 = vdwg.mxu0
        %v608 = vlaneseq
        %v609 = vand.u32 %v608, 127
        %v610 = vadd.s32 %v609, 128
        %s611 = smul.u32 %s22, 256
        %v612 = vstv %s611
        %v613 = vadd.s32 %v609, %v612
        %v614 = vadd.s32 %v610, %v612
        %vm615 = vcmp.lt.s32.totalorder %v613, 384
        %vm616 = vcmp.lt.s32.totalorder %v614, 384
        %v617 = vsel %vm615, %v530, -inf
        %v618 = vsel %vm616, %v532, -inf
        %v619 = vsel %vm615, %v534, -inf
        %v620 = vsel %vm616, %v536, -inf
        %v621 = vsel %vm615, %v540, -inf
        %v622 = vsel %vm616, %v542, -inf
        %v623 = vsel %vm615, %v544, -inf
        %v624 = vsel %vm616, %v546, -inf
        %v625 = vsel %vm615, %v550, -inf
        %v626 = vsel %vm616, %v552, -inf
        %v627 = vsel %vm615, %v554, -inf
        %v628 = vsel %vm616, %v556, -inf
        %v629 = vsel %vm615, %v560, -inf
        %v630 = vsel %vm616, %v562, -inf
        %v631 = vsel %vm615, %v564, -inf
        %v632 = vsel %vm616, %v566, -inf
        %v633 = vsel %vm615, %v570, -inf
        %v634 = vsel %vm616, %v572, -inf
        %v635 = vsel %vm615, %v574, -inf
        %v636 = vsel %vm616, %v576, -inf
        %v637 = vsel %vm615, %v580, -inf
        %v638 = vsel %vm616, %v582, -inf
        %v639 = vsel %vm615, %v584, -inf
        %v640 = vsel %vm616, %v586, -inf
        %v641 = vsel %vm615, %v590, -inf
        %v642 = vsel %vm616, %v592, -inf
        %v643 = vsel %vm615, %v594, -inf
        %v644 = vsel %vm616, %v596, -inf
        %v645 = vsel %vm615, %v600, -inf
        %v646 = vsel %vm616, %v602, -inf
        %v647 = vsel %vm615, %v604, -inf
        %v648 = vsel %vm616, %v606, -inf
        %v649 = vld [vmem:[%s241] sm:$0xff]
        %v650 = vld [vmem:[%s241 + $0x8] sm:$0xff]
        %v651 = vld [vmem:[%s241 + $0x10] sm:$0xff]
        %v652 = vld [vmem:[%s241 + $0x18] sm:$0xff]
        %v653 = vld [vmem:[%s241 + $0x20] sm:$0xff]
        %v654 = vld [vmem:[%s241 + $0x28] sm:$0xff]
        %v655 = vld [vmem:[%s241 + $0x30] sm:$0xff]
        %v656 = vld [vmem:[%s241 + $0x38] sm:$0xff]
        %v657 = vld [vmem:[%s241 + $0x40] sm:$0xff]
        %v658 = vld [vmem:[%s241 + $0x48] sm:$0xff]
        %v659 = vld [vmem:[%s241 + $0x50] sm:$0xff]
        %v660 = vld [vmem:[%s241 + $0x58] sm:$0xff]
        %v661 = vld [vmem:[%s241 + $0x60] sm:$0xff]
        %v662 = vld [vmem:[%s241 + $0x68] sm:$0xff]
        %v663 = vld [vmem:[%s241 + $0x70] sm:$0xff]
        %v664 = vld [vmem:[%s241 + $0x78] sm:$0xff]
        %v665 = vld [vmem:[#allocation4] sm:$0xff]
        %v666 = vld [vmem:[#allocation4 + $0x8] sm:$0xff]
        %v667 = vld [vmem:[#allocation4 + $0x10] sm:$0xff]
        %v668 = vld [vmem:[#allocation4 + $0x18] sm:$0xff]
        %v669 = vld [vmem:[#allocation4 + $0x20] sm:$0xff]
        %v670 = vld [vmem:[#allocation4 + $0x28] sm:$0xff]
        %v671 = vld [vmem:[#allocation4 + $0x30] sm:$0xff]
        %v672 = vld [vmem:[#allocation4 + $0x38] sm:$0xff]
        %v673 = vld [vmem:[#allocation4 + $0x40] sm:$0xff]
        %v674 = vld [vmem:[#allocation4 + $0x48] sm:$0xff]
        %v675 = vld [vmem:[#allocation4 + $0x50] sm:$0xff]
        %v676 = vld [vmem:[#allocation4 + $0x58] sm:$0xff]
        %v677 = vld [vmem:[#allocation4 + $0x60] sm:$0xff]
        %v678 = vld [vmem:[#allocation4 + $0x68] sm:$0xff]
        %v679 = vld [vmem:[#allocation4 + $0x70] sm:$0xff]
        %v680 = vld [vmem:[#allocation4 + $0x78] sm:$0xff]
        %681 = vset.pattern.permute.xlu0 0
        %682 = vperm.xlu0 %681, %v649
        %v683 = vpop.permute.xlu0 %682
        %684 = vset.pattern.permute.xlu0 0
        %685 = vperm.xlu0 %684, %v650
        %v686 = vpop.permute.xlu0 %685
        %687 = vset.pattern.permute.xlu0 0
        %688 = vperm.xlu0 %687, %v651
        %v689 = vpop.permute.xlu0 %688
        %690 = vset.pattern.permute.xlu0 0
        %691 = vperm.xlu0 %690, %v652
        %v692 = vpop.permute.xlu0 %691
        %693 = vset.pattern.permute.xlu0 0
        %694 = vperm.xlu0 %693, %v653
        %v695 = vpop.permute.xlu0 %694
        %696 = vset.pattern.permute.xlu0 0
        %697 = vperm.xlu0 %696, %v654
        %v698 = vpop.permute.xlu0 %697
        %699 = vset.pattern.permute.xlu0 0
        %700 = vperm.xlu0 %699, %v655
        %v701 = vpop.permute.xlu0 %700
        %702 = vset.pattern.permute.xlu0 0
        %703 = vperm.xlu0 %702, %v656
        %v704 = vpop.permute.xlu0 %703
        %705 = vset.pattern.permute.xlu0 0
        %706 = vperm.xlu0 %705, %v657
        %v707 = vpop.permute.xlu0 %706
        %708 = vset.pattern.permute.xlu0 0
        %709 = vperm.xlu0 %708, %v658
        %v710 = vpop.permute.xlu0 %709
        %711 = vset.pattern.permute.xlu0 0
        %712 = vperm.xlu0 %711, %v659
        %v713 = vpop.permute.xlu0 %712
        %714 = vset.pattern.permute.xlu0 0
        %715 = vperm.xlu0 %714, %v660
        %v716 = vpop.permute.xlu0 %715
        %717 = vset.pattern.permute.xlu0 0
        %718 = vperm.xlu0 %717, %v661
        %v719 = vpop.permute.xlu0 %718
        %720 = vset.pattern.permute.xlu0 0
        %721 = vperm.xlu0 %720, %v662
        %v722 = vpop.permute.xlu0 %721
        %723 = vset.pattern.permute.xlu0 0
        %724 = vperm.xlu0 %723, %v663
        %v725 = vpop.permute.xlu0 %724
        %726 = vset.pattern.permute.xlu0 0
        %727 = vperm.xlu0 %726, %v664
        %v728 = vpop.permute.xlu0 %727
        %vm729 = vcmp.eq.s32.totalorder %v613, %v683
        %vm730 = vcmp.eq.s32.totalorder %v614, %v683
        %vm731 = vcmp.eq.s32.totalorder %v613, %v686
        %vm732 = vcmp.eq.s32.totalorder %v614, %v686
        %vm733 = vcmp.eq.s32.totalorder %v613, %v689
        %vm734 = vcmp.eq.s32.totalorder %v614, %v689
        %vm735 = vcmp.eq.s32.totalorder %v613, %v692
        %vm736 = vcmp.eq.s32.totalorder %v614, %v692
        %vm737 = vcmp.eq.s32.totalorder %v613, %v695
        %vm738 = vcmp.eq.s32.totalorder %v614, %v695
        %vm739 = vcmp.eq.s32.totalorder %v613, %v698
        %vm740 = vcmp.eq.s32.totalorder %v614, %v698
        %vm741 = vcmp.eq.s32.totalorder %v613, %v701
        %vm742 = vcmp.eq.s32.totalorder %v614, %v701
        %vm743 = vcmp.eq.s32.totalorder %v613, %v704
        %vm744 = vcmp.eq.s32.totalorder %v614, %v704
        %vm745 = vcmp.eq.s32.totalorder %v613, %v707
        %vm746 = vcmp.eq.s32.totalorder %v614, %v707
        %vm747 = vcmp.eq.s32.totalorder %v613, %v710
        %vm748 = vcmp.eq.s32.totalorder %v614, %v710
        %vm749 = vcmp.eq.s32.totalorder %v613, %v713
        %vm750 = vcmp.eq.s32.totalorder %v614, %v713
        %vm751 = vcmp.eq.s32.totalorder %v613, %v716
        %vm752 = vcmp.eq.s32.totalorder %v614, %v716
        %vm753 = vcmp.eq.s32.totalorder %v613, %v719
        %vm754 = vcmp.eq.s32.totalorder %v614, %v719
        %vm755 = vcmp.eq.s32.totalorder %v613, %v722
        %vm756 = vcmp.eq.s32.totalorder %v614, %v722
        %vm757 = vcmp.eq.s32.totalorder %v613, %v725
        %vm758 = vcmp.eq.s32.totalorder %v614, %v725
        %vm759 = vcmp.eq.s32.totalorder %v613, %v728
        %vm760 = vcmp.eq.s32.totalorder %v614, %v728
        %v761 = vsel %vm729, %v617, 0.0
        %v762 = vsel %vm730, %v618, 0.0
        %v763 = vsel %vm731, %v619, 0.0
        %v764 = vsel %vm732, %v620, 0.0
        %v765 = vsel %vm733, %v621, 0.0
        %v766 = vsel %vm734, %v622, 0.0
        %v767 = vsel %vm735, %v623, 0.0
        %v768 = vsel %vm736, %v624, 0.0
        %v769 = vsel %vm737, %v625, 0.0
        %v770 = vsel %vm738, %v626, 0.0
        %v771 = vsel %vm739, %v627, 0.0
        %v772 = vsel %vm740, %v628, 0.0
        %v773 = vsel %vm741, %v629, 0.0
        %v774 = vsel %vm742, %v630, 0.0
        %v775 = vsel %vm743, %v631, 0.0
        %v776 = vsel %vm744, %v632, 0.0
        %v777 = vsel %vm745, %v633, 0.0
        %v778 = vsel %vm746, %v634, 0.0
        %v779 = vsel %vm747, %v635, 0.0
        %v780 = vsel %vm748, %v636, 0.0
        %v781 = vsel %vm749, %v637, 0.0
        %v782 = vsel %vm750, %v638, 0.0
        %v783 = vsel %vm751, %v639, 0.0
        %v784 = vsel %vm752, %v640, 0.0
        %v785 = vsel %vm753, %v641, 0.0
        %v786 = vsel %vm754, %v642, 0.0
        %v787 = vsel %vm755, %v643, 0.0
        %v788 = vsel %vm756, %v644, 0.0
        %v789 = vsel %vm757, %v645, 0.0
        %v790 = vsel %vm758, %v646, 0.0
        %v791 = vsel %vm759, %v647, 0.0
        %v792 = vsel %vm760, %v648, 0.0
        %v793 = vadd.f32 %v761, %v762
        %794 = vadd.xlane.f32.xlu0 %v793
        %v795 = vpop.xlane.xlu0 %794
        %v796 = vadd.f32 %v763, %v764
        %797 = vadd.xlane.f32.xlu0 %v796
        %v798 = vpop.xlane.xlu0 %797
        %v799 = vadd.f32 %v765, %v766
        %800 = vadd.xlane.f32.xlu0 %v799
        %v801 = vpop.xlane.xlu0 %800
        %v802 = vadd.f32 %v767, %v768
        %803 = vadd.xlane.f32.xlu0 %v802
        %v804 = vpop.xlane.xlu0 %803
        %v805 = vadd.f32 %v769, %v770
        %806 = vadd.xlane.f32.xlu0 %v805
        %v807 = vpop.xlane.xlu0 %806
        %v808 = vadd.f32 %v771, %v772
        %809 = vadd.xlane.f32.xlu0 %v808
        %v810 = vpop.xlane.xlu0 %809
        %v811 = vadd.f32 %v773, %v774
        %812 = vadd.xlane.f32.xlu0 %v811
        %v813 = vpop.xlane.xlu0 %812
        %v814 = vadd.f32 %v775, %v776
        %815 = vadd.xlane.f32.xlu0 %v814
        %v816 = vpop.xlane.xlu0 %815
        %v817 = vadd.f32 %v777, %v778
        %818 = vadd.xlane.f32.xlu0 %v817
        %v819 = vpop.xlane.xlu0 %818
        %v820 = vadd.f32 %v779, %v780
        %821 = vadd.xlane.f32.xlu0 %v820
        %v822 = vpop.xlane.xlu0 %821
        %v823 = vadd.f32 %v781, %v782
        %824 = vadd.xlane.f32.xlu0 %v823
        %v825 = vpop.xlane.xlu0 %824
        %v826 = vadd.f32 %v783, %v784
        %827 = vadd.xlane.f32.xlu0 %v826
        %v828 = vpop.xlane.xlu0 %827
        %v829 = vadd.f32 %v785, %v786
        %830 = vadd.xlane.f32.xlu0 %v829
        %v831 = vpop.xlane.xlu0 %830
        %v832 = vadd.f32 %v787, %v788
        %833 = vadd.xlane.f32.xlu0 %v832
        %v834 = vpop.xlane.xlu0 %833
        %v835 = vadd.f32 %v789, %v790
        %836 = vadd.xlane.f32.xlu0 %v835
        %v837 = vpop.xlane.xlu0 %836
        %v838 = vadd.f32 %v791, %v792
        %839 = vadd.xlane.f32.xlu0 %v838
        %v840 = vpop.xlane.xlu0 %839
        %v841 = vadd.f32 %v665, %v795
        %v842 = vadd.f32 %v666, %v798
        %v843 = vadd.f32 %v667, %v801
        %v844 = vadd.f32 %v668, %v804
        %v845 = vadd.f32 %v669, %v807
        %v846 = vadd.f32 %v670, %v810
        %v847 = vadd.f32 %v671, %v813
        %v848 = vadd.f32 %v672, %v816
        %v849 = vadd.f32 %v673, %v819
        %v850 = vadd.f32 %v674, %v822
        %v851 = vadd.f32 %v675, %v825
        %v852 = vadd.f32 %v676, %v828
        %v853 = vadd.f32 %v677, %v831
        %v854 = vadd.f32 %v678, %v834
        %v855 = vadd.f32 %v679, %v837
        %v856 = vadd.f32 %v680, %v840
        %vm857 = vcmask 7168
        %858 = vst.msk [vmem:[#allocation4] sm:$0xff] %vm857, %v841
        %859 = vst.msk [vmem:[#allocation4 + $0x8] sm:$0xff] %vm857, %v842
        %860 = vst.msk [vmem:[#allocation4 + $0x10] sm:$0xff] %vm857, %v843
        %861 = vst.msk [vmem:[#allocation4 + $0x18] sm:$0xff] %vm857, %v844
        %862 = vst.msk [vmem:[#allocation4 + $0x20] sm:$0xff] %vm857, %v845
        %863 = vst.msk [vmem:[#allocation4 + $0x28] sm:$0xff] %vm857, %v846
        %864 = vst.msk [vmem:[#allocation4 + $0x30] sm:$0xff] %vm857, %v847
        %865 = vst.msk [vmem:[#allocation4 + $0x38] sm:$0xff] %vm857, %v848
        %866 = vst.msk [vmem:[#allocation4 + $0x40] sm:$0xff] %vm857, %v849
        %867 = vst.msk [vmem:[#allocation4 + $0x48] sm:$0xff] %vm857, %v850
        %868 = vst.msk [vmem:[#allocation4 + $0x50] sm:$0xff] %vm857, %v851
        %869 = vst.msk [vmem:[#allocation4 + $0x58] sm:$0xff] %vm857, %v852
        %870 = vst.msk [vmem:[#allocation4 + $0x60] sm:$0xff] %vm857, %v853
        %871 = vst.msk [vmem:[#allocation4 + $0x68] sm:$0xff] %vm857, %v854
        %872 = vst.msk [vmem:[#allocation4 + $0x70] sm:$0xff] %vm857, %v855
        %873 = vst.msk [vmem:[#allocation4 + $0x78] sm:$0xff] %vm857, %v856
        %v874 = vld [vmem:[#allocation2] sm:$0xff]
        %v875 = vld [vmem:[#allocation2 + $0x8] sm:$0xff]
        %v876 = vld [vmem:[#allocation2 + $0x10] sm:$0xff]
        %v877 = vld [vmem:[#allocation2 + $0x18] sm:$0xff]
        %v878 = vld [vmem:[#allocation2 + $0x20] sm:$0xff]
        %v879 = vld [vmem:[#allocation2 + $0x28] sm:$0xff]
        %v880 = vld [vmem:[#allocation2 + $0x30] sm:$0xff]
        %v881 = vld [vmem:[#allocation2 + $0x38] sm:$0xff]
        %v882 = vld [vmem:[#allocation2 + $0x40] sm:$0xff]
        %v883 = vld [vmem:[#allocation2 + $0x48] sm:$0xff]
        %v884 = vld [vmem:[#allocation2 + $0x50] sm:$0xff]
        %v885 = vld [vmem:[#allocation2 + $0x58] sm:$0xff]
        %v886 = vld [vmem:[#allocation2 + $0x60] sm:$0xff]
        %v887 = vld [vmem:[#allocation2 + $0x68] sm:$0xff]
        %v888 = vld [vmem:[#allocation2 + $0x70] sm:$0xff]
        %v889 = vld [vmem:[#allocation2 + $0x78] sm:$0xff]
        %v890 = vmax.f32 %v874, %v617
        %v891 = vmax.f32 %v890, %v618
        %892 = vmax.xlane.f32.xlu0 %v891
        %v893 = vpop.xlane.xlu0 %892
        %v894 = vmax.f32 %v875, %v619
        %v895 = vmax.f32 %v894, %v620
        %896 = vmax.xlane.f32.xlu0 %v895
        %v897 = vpop.xlane.xlu0 %896
        %v898 = vmax.f32 %v876, %v621
        %v899 = vmax.f32 %v898, %v622
        %900 = vmax.xlane.f32.xlu0 %v899
        %v901 = vpop.xlane.xlu0 %900
        %v902 = vmax.f32 %v877, %v623
        %v903 = vmax.f32 %v902, %v624
        %904 = vmax.xlane.f32.xlu0 %v903
        %v905 = vpop.xlane.xlu0 %904
        %v906 = vmax.f32 %v878, %v625
        %v907 = vmax.f32 %v906, %v626
        %908 = vmax.xlane.f32.xlu0 %v907
        %v909 = vpop.xlane.xlu0 %908
        %v910 = vmax.f32 %v879, %v627
        %v911 = vmax.f32 %v910, %v628
        %912 = vmax.xlane.f32.xlu0 %v911
        %v913 = vpop.xlane.xlu0 %912
        %v914 = vmax.f32 %v880, %v629
        %v915 = vmax.f32 %v914, %v630
        %916 = vmax.xlane.f32.xlu0 %v915
        %v917 = vpop.xlane.xlu0 %916
        %v918 = vmax.f32 %v881, %v631
        %v919 = vmax.f32 %v918, %v632
        %920 = vmax.xlane.f32.xlu0 %v919
        %v921 = vpop.xlane.xlu0 %920
        %v922 = vmax.f32 %v882, %v633
        %v923 = vmax.f32 %v922, %v634
        %924 = vmax.xlane.f32.xlu0 %v923
        %v925 = vpop.xlane.xlu0 %924
        %v926 = vmax.f32 %v883, %v635
        %v927 = vmax.f32 %v926, %v636
        %928 = vmax.xlane.f32.xlu0 %v927
        %v929 = vpop.xlane.xlu0 %928
        %v930 = vmax.f32 %v884, %v637
        %v931 = vmax.f32 %v930, %v638
        %932 = vmax.xlane.f32.xlu0 %v931
        %v933 = vpop.xlane.xlu0 %932
        %v934 = vmax.f32 %v885, %v639
        %v935 = vmax.f32 %v934, %v640
        %936 = vmax.xlane.f32.xlu0 %v935
        %v937 = vpop.xlane.xlu0 %936
        %v938 = vmax.f32 %v886, %v641
        %v939 = vmax.f32 %v938, %v642
        %940 = vmax.xlane.f32.xlu0 %v939
        %v941 = vpop.xlane.xlu0 %940
        %v942 = vmax.f32 %v887, %v643
        %v943 = vmax.f32 %v942, %v644
        %944 = vmax.xlane.f32.xlu0 %v943
        %v945 = vpop.xlane.xlu0 %944
        %v946 = vmax.f32 %v888, %v645
        %v947 = vmax.f32 %v946, %v646
        %948 = vmax.xlane.f32.xlu0 %v947
        %v949 = vpop.xlane.xlu0 %948
        %v950 = vmax.f32 %v889, %v647
        %v951 = vmax.f32 %v950, %v648
        %952 = vmax.xlane.f32.xlu0 %v951
        %v953 = vpop.xlane.xlu0 %952
        %vm954 = vcmp.eq.f32.partialorder %v874, %v893
        %vm955 = vcmp.eq.f32.partialorder %v617, %v893
        %vm956 = vcmp.eq.f32.partialorder %v618, %v893
        %vm957 = vcmp.eq.f32.partialorder %v875, %v897
        %vm958 = vcmp.eq.f32.partialorder %v619, %v897
        %vm959 = vcmp.eq.f32.partialorder %v620, %v897
        %vm960 = vcmp.eq.f32.partialorder %v876, %v901
        %vm961 = vcmp.eq.f32.partialorder %v621, %v901
        %vm962 = vcmp.eq.f32.partialorder %v622, %v901
        %vm963 = vcmp.eq.f32.partialorder %v877, %v905
        %vm964 = vcmp.eq.f32.partialorder %v623, %v905
        %vm965 = vcmp.eq.f32.partialorder %v624, %v905
        %vm966 = vcmp.eq.f32.partialorder %v878, %v909
        %vm967 = vcmp.eq.f32.partialorder %v625, %v909
        %vm968 = vcmp.eq.f32.partialorder %v626, %v909
        %vm969 = vcmp.eq.f32.partialorder %v879, %v913
        %vm970 = vcmp.eq.f32.partialorder %v627, %v913
        %vm971 = vcmp.eq.f32.partialorder %v628, %v913
        %vm972 = vcmp.eq.f32.partialorder %v880, %v917
        %vm973 = vcmp.eq.f32.partialorder %v629, %v917
        %vm974 = vcmp.eq.f32.partialorder %v630, %v917
        %vm975 = vcmp.eq.f32.partialorder %v881, %v921
        %vm976 = vcmp.eq.f32.partialorder %v631, %v921
        %vm977 = vcmp.eq.f32.partialorder %v632, %v921
        %vm978 = vcmp.eq.f32.partialorder %v882, %v925
        %vm979 = vcmp.eq.f32.partialorder %v633, %v925
        %vm980 = vcmp.eq.f32.partialorder %v634, %v925
        %vm981 = vcmp.eq.f32.partialorder %v883, %v929
        %vm982 = vcmp.eq.f32.partialorder %v635, %v929
        %vm983 = vcmp.eq.f32.partialorder %v636, %v929
        %vm984 = vcmp.eq.f32.partialorder %v884, %v933
        %vm985 = vcmp.eq.f32.partialorder %v637, %v933
        %vm986 = vcmp.eq.f32.partialorder %v638, %v933
        %vm987 = vcmp.eq.f32.partialorder %v885, %v937
        %vm988 = vcmp.eq.f32.partialorder %v639, %v937
        %vm989 = vcmp.eq.f32.partialorder %v640, %v937
        %vm990 = vcmp.eq.f32.partialorder %v886, %v941
        %vm991 = vcmp.eq.f32.partialorder %v641, %v941
        %vm992 = vcmp.eq.f32.partialorder %v642, %v941
        %vm993 = vcmp.eq.f32.partialorder %v887, %v945
        %vm994 = vcmp.eq.f32.partialorder %v643, %v945
        %vm995 = vcmp.eq.f32.partialorder %v644, %v945
        %vm996 = vcmp.eq.f32.partialorder %v888, %v949
        %vm997 = vcmp.eq.f32.partialorder %v645, %v949
        %vm998 = vcmp.eq.f32.partialorder %v646, %v949
        %vm999 = vcmp.eq.f32.partialorder %v889, %v953
        %vm1000 = vcmp.eq.f32.partialorder %v647, %v953
        %vm1001 = vcmp.eq.f32.partialorder %v648, %v953
        %v1002 = vsel %vm954, 1, 0
        %v1003 = vsel %vm955, 1, 0
        %v1004 = vsel %vm956, 1, 0
        %v1005 = vsel %vm957, 1, 0
        %v1006 = vsel %vm958, 1, 0
        %v1007 = vsel %vm959, 1, 0
        %v1008 = vsel %vm960, 1, 0
        %v1009 = vsel %vm961, 1, 0
        %v1010 = vsel %vm962, 1, 0
        %v1011 = vsel %vm963, 1, 0
        %v1012 = vsel %vm964, 1, 0
        %v1013 = vsel %vm965, 1, 0
        %v1014 = vsel %vm966, 1, 0
        %v1015 = vsel %vm967, 1, 0
        %v1016 = vsel %vm968, 1, 0
        %v1017 = vsel %vm969, 1, 0
        %v1018 = vsel %vm970, 1, 0
        %v1019 = vsel %vm971, 1, 0
        %v1020 = vsel %vm972, 1, 0
        %v1021 = vsel %vm973, 1, 0
        %v1022 = vsel %vm974, 1, 0
        %v1023 = vsel %vm975, 1, 0
        %v1024 = vsel %vm976, 1, 0
        %v1025 = vsel %vm977, 1, 0
        %v1026 = vsel %vm978, 1, 0
        %v1027 = vsel %vm979, 1, 0
        %v1028 = vsel %vm980, 1, 0
        %v1029 = vsel %vm981, 1, 0
        %v1030 = vsel %vm982, 1, 0
        %v1031 = vsel %vm983, 1, 0
        %v1032 = vsel %vm984, 1, 0
        %v1033 = vsel %vm985, 1, 0
        %v1034 = vsel %vm986, 1, 0
        %v1035 = vsel %vm987, 1, 0
        %v1036 = vsel %vm988, 1, 0
        %v1037 = vsel %vm989, 1, 0
        %v1038 = vsel %vm990, 1, 0
        %v1039 = vsel %vm991, 1, 0
        %v1040 = vsel %vm992, 1, 0
        %v1041 = vsel %vm993, 1, 0
        %v1042 = vsel %vm994, 1, 0
        %v1043 = vsel %vm995, 1, 0
        %v1044 = vsel %vm996, 1, 0
        %v1045 = vsel %vm997, 1, 0
        %v1046 = vsel %vm998, 1, 0
        %v1047 = vsel %vm999, 1, 0
        %v1048 = vsel %vm1000, 1, 0
        %v1049 = vsel %vm1001, 1, 0
        %v1050 = vadd.s32 %v1002, %v1003
        %v1051 = vadd.s32 %v1050, %v1004
        %v1052 = vand.u32 %v1051, 65535
        %v1053 = vshrl.u32 %v1051, 16
        %v1054 = vcvt.s32.f32 %v1052
        %v1055 = vcvt.s32.f32 %v1053
        %1056 = vadd.xlane.f32.xlu0 %v1054
        %v1057 = vpop.xlane.xlu0 %1056
        %1058 = vadd.xlane.f32.xlu0 %v1055
        %v1059 = vpop.xlane.xlu0 %1058
        %v1060 = vcvt.f32.s32 %v1057
        %v1061 = vcvt.f32.s32 %v1059
        %v1062 = vshll.u32 %v1061, 16
        %v1063 = vadd.s32 %v1062, %v1060
        %v1064 = vadd.s32 %v1005, %v1006
        %v1065 = vadd.s32 %v1064, %v1007
        %v1066 = vand.u32 %v1065, 65535
        %v1067 = vshrl.u32 %v1065, 16
        %v1068 = vcvt.s32.f32 %v1066
        %v1069 = vcvt.s32.f32 %v1067
        %1070 = vadd.xlane.f32.xlu0 %v1068
        %v1071 = vpop.xlane.xlu0 %1070
        %1072 = vadd.xlane.f32.xlu0 %v1069
        %v1073 = vpop.xlane.xlu0 %1072
        %v1074 = vcvt.f32.s32 %v1071
        %v1075 = vcvt.f32.s32 %v1073
        %v1076 = vshll.u32 %v1075, 16
        %v1077 = vadd.s32 %v1076, %v1074
        %v1078 = vadd.s32 %v1008, %v1009
        %v1079 = vadd.s32 %v1078, %v1010
        %v1080 = vand.u32 %v1079, 65535
        %v1081 = vshrl.u32 %v1079, 16
        %v1082 = vcvt.s32.f32 %v1080
        %v1083 = vcvt.s32.f32 %v1081
        %1084 = vadd.xlane.f32.xlu0 %v1082
        %v1085 = vpop.xlane.xlu0 %1084
        %1086 = vadd.xlane.f32.xlu0 %v1083
        %v1087 = vpop.xlane.xlu0 %1086
        %v1088 = vcvt.f32.s32 %v1085
        %v1089 = vcvt.f32.s32 %v1087
        %v1090 = vshll.u32 %v1089, 16
        %v1091 = vadd.s32 %v1090, %v1088
        %v1092 = vadd.s32 %v1011, %v1012
        %v1093 = vadd.s32 %v1092, %v1013
        %v1094 = vand.u32 %v1093, 65535
        %v1095 = vshrl.u32 %v1093, 16
        %v1096 = vcvt.s32.f32 %v1094
        %v1097 = vcvt.s32.f32 %v1095
        %1098 = vadd.xlane.f32.xlu0 %v1096
        %v1099 = vpop.xlane.xlu0 %1098
        %1100 = vadd.xlane.f32.xlu0 %v1097
        %v1101 = vpop.xlane.xlu0 %1100
        %v1102 = vcvt.f32.s32 %v1099
        %v1103 = vcvt.f32.s32 %v1101
        %v1104 = vshll.u32 %v1103, 16
        %v1105 = vadd.s32 %v1104, %v1102
        %v1106 = vadd.s32 %v1014, %v1015
        %v1107 = vadd.s32 %v1106, %v1016
        %v1108 = vand.u32 %v1107, 65535
        %v1109 = vshrl.u32 %v1107, 16
        %v1110 = vcvt.s32.f32 %v1108
        %v1111 = vcvt.s32.f32 %v1109
        %1112 = vadd.xlane.f32.xlu0 %v1110
        %v1113 = vpop.xlane.xlu0 %1112
        %1114 = vadd.xlane.f32.xlu0 %v1111
        %v1115 = vpop.xlane.xlu0 %1114
        %v1116 = vcvt.f32.s32 %v1113
        %v1117 = vcvt.f32.s32 %v1115
        %v1118 = vshll.u32 %v1117, 16
        %v1119 = vadd.s32 %v1118, %v1116
        %v1120 = vadd.s32 %v1017, %v1018
        %v1121 = vadd.s32 %v1120, %v1019
        %v1122 = vand.u32 %v1121, 65535
        %v1123 = vshrl.u32 %v1121, 16
        %v1124 = vcvt.s32.f32 %v1122
        %v1125 = vcvt.s32.f32 %v1123
        %1126 = vadd.xlane.f32.xlu0 %v1124
        %v1127 = vpop.xlane.xlu0 %1126
        %1128 = vadd.xlane.f32.xlu0 %v1125
        %v1129 = vpop.xlane.xlu0 %1128
        %v1130 = vcvt.f32.s32 %v1127
        %v1131 = vcvt.f32.s32 %v1129
        %v1132 = vshll.u32 %v1131, 16
        %v1133 = vadd.s32 %v1132, %v1130
        %v1134 = vadd.s32 %v1020, %v1021
        %v1135 = vadd.s32 %v1134, %v1022
        %v1136 = vand.u32 %v1135, 65535
        %v1137 = vshrl.u32 %v1135, 16
        %v1138 = vcvt.s32.f32 %v1136
        %v1139 = vcvt.s32.f32 %v1137
        %1140 = vadd.xlane.f32.xlu0 %v1138
        %v1141 = vpop.xlane.xlu0 %1140
        %1142 = vadd.xlane.f32.xlu0 %v1139
        %v1143 = vpop.xlane.xlu0 %1142
        %v1144 = vcvt.f32.s32 %v1141
        %v1145 = vcvt.f32.s32 %v1143
        %v1146 = vshll.u32 %v1145, 16
        %v1147 = vadd.s32 %v1146, %v1144
        %v1148 = vadd.s32 %v1023, %v1024
        %v1149 = vadd.s32 %v1148, %v1025
        %v1150 = vand.u32 %v1149, 65535
        %v1151 = vshrl.u32 %v1149, 16
        %v1152 = vcvt.s32.f32 %v1150
        %v1153 = vcvt.s32.f32 %v1151
        %1154 = vadd.xlane.f32.xlu0 %v1152
        %v1155 = vpop.xlane.xlu0 %1154
        %1156 = vadd.xlane.f32.xlu0 %v1153
        %v1157 = vpop.xlane.xlu0 %1156
        %v1158 = vcvt.f32.s32 %v1155
        %v1159 = vcvt.f32.s32 %v1157
        %v1160 = vshll.u32 %v1159, 16
        %v1161 = vadd.s32 %v1160, %v1158
        %v1162 = vadd.s32 %v1026, %v1027
        %v1163 = vadd.s32 %v1162, %v1028
        %v1164 = vand.u32 %v1163, 65535
        %v1165 = vshrl.u32 %v1163, 16
        %v1166 = vcvt.s32.f32 %v1164
        %v1167 = vcvt.s32.f32 %v1165
        %1168 = vadd.xlane.f32.xlu0 %v1166
        %v1169 = vpop.xlane.xlu0 %1168
        %1170 = vadd.xlane.f32.xlu0 %v1167
        %v1171 = vpop.xlane.xlu0 %1170
        %v1172 = vcvt.f32.s32 %v1169
        %v1173 = vcvt.f32.s32 %v1171
        %v1174 = vshll.u32 %v1173, 16
        %v1175 = vadd.s32 %v1174, %v1172
        %v1176 = vadd.s32 %v1029, %v1030
        %v1177 = vadd.s32 %v1176, %v1031
        %v1178 = vand.u32 %v1177, 65535
        %v1179 = vshrl.u32 %v1177, 16
        %v1180 = vcvt.s32.f32 %v1178
        %v1181 = vcvt.s32.f32 %v1179
        %1182 = vadd.xlane.f32.xlu0 %v1180
        %v1183 = vpop.xlane.xlu0 %1182
        %1184 = vadd.xlane.f32.xlu0 %v1181
        %v1185 = vpop.xlane.xlu0 %1184
        %v1186 = vcvt.f32.s32 %v1183
        %v1187 = vcvt.f32.s32 %v1185
        %v1188 = vshll.u32 %v1187, 16
        %v1189 = vadd.s32 %v1188, %v1186
        %v1190 = vadd.s32 %v1032, %v1033
        %v1191 = vadd.s32 %v1190, %v1034
        %v1192 = vand.u32 %v1191, 65535
        %v1193 = vshrl.u32 %v1191, 16
        %v1194 = vcvt.s32.f32 %v1192
        %v1195 = vcvt.s32.f32 %v1193
        %1196 = vadd.xlane.f32.xlu0 %v1194
        %v1197 = vpop.xlane.xlu0 %1196
        %1198 = vadd.xlane.f32.xlu0 %v1195
        %v1199 = vpop.xlane.xlu0 %1198
        %v1200 = vcvt.f32.s32 %v1197
        %v1201 = vcvt.f32.s32 %v1199
        %v1202 = vshll.u32 %v1201, 16
        %v1203 = vadd.s32 %v1202, %v1200
        %v1204 = vadd.s32 %v1035, %v1036
        %v1205 = vadd.s32 %v1204, %v1037
        %v1206 = vand.u32 %v1205, 65535
        %v1207 = vshrl.u32 %v1205, 16
        %v1208 = vcvt.s32.f32 %v1206
        %v1209 = vcvt.s32.f32 %v1207
        %1210 = vadd.xlane.f32.xlu0 %v1208
        %v1211 = vpop.xlane.xlu0 %1210
        %1212 = vadd.xlane.f32.xlu0 %v1209
        %v1213 = vpop.xlane.xlu0 %1212
        %v1214 = vcvt.f32.s32 %v1211
        %v1215 = vcvt.f32.s32 %v1213
        %v1216 = vshll.u32 %v1215, 16
        %v1217 = vadd.s32 %v1216, %v1214
        %v1218 = vadd.s32 %v1038, %v1039
        %v1219 = vadd.s32 %v1218, %v1040
        %v1220 = vand.u32 %v1219, 65535
        %v1221 = vshrl.u32 %v1219, 16
        %v1222 = vcvt.s32.f32 %v1220
        %v1223 = vcvt.s32.f32 %v1221
        %1224 = vadd.xlane.f32.xlu0 %v1222
        %v1225 = vpop.xlane.xlu0 %1224
        %1226 = vadd.xlane.f32.xlu0 %v1223
        %v1227 = vpop.xlane.xlu0 %1226
        %v1228 = vcvt.f32.s32 %v1225
        %v1229 = vcvt.f32.s32 %v1227
        %v1230 = vshll.u32 %v1229, 16
        %v1231 = vadd.s32 %v1230, %v1228
        %v1232 = vadd.s32 %v1041, %v1042
        %v1233 = vadd.s32 %v1232, %v1043
        %v1234 = vand.u32 %v1233, 65535
        %v1235 = vshrl.u32 %v1233, 16
        %v1236 = vcvt.s32.f32 %v1234
        %v1237 = vcvt.s32.f32 %v1235
        %1238 = vadd.xlane.f32.xlu0 %v1236
        %v1239 = vpop.xlane.xlu0 %1238
        %1240 = vadd.xlane.f32.xlu0 %v1237
        %v1241 = vpop.xlane.xlu0 %1240
        %v1242 = vcvt.f32.s32 %v1239
        %v1243 = vcvt.f32.s32 %v1241
        %v1244 = vshll.u32 %v1243, 16
        %v1245 = vadd.s32 %v1244, %v1242
        %v1246 = vadd.s32 %v1044, %v1045
        %v1247 = vadd.s32 %v1246, %v1046
        %v1248 = vand.u32 %v1247, 65535
        %v1249 = vshrl.u32 %v1247, 16
        %v1250 = vcvt.s32.f32 %v1248
        %v1251 = vcvt.s32.f32 %v1249
        %1252 = vadd.xlane.f32.xlu0 %v1250
        %v1253 = vpop.xlane.xlu0 %1252
        %1254 = vadd.xlane.f32.xlu0 %v1251
        %v1255 = vpop.xlane.xlu0 %1254
        %v1256 = vcvt.f32.s32 %v1253
        %v1257 = vcvt.f32.s32 %v1255
        %v1258 = vshll.u32 %v1257, 16
        %v1259 = vadd.s32 %v1258, %v1256
        %v1260 = vadd.s32 %v1047, %v1048
        %v1261 = vadd.s32 %v1260, %v1049
        %v1262 = vand.u32 %v1261, 65535
        %v1263 = vshrl.u32 %v1261, 16
        %v1264 = vcvt.s32.f32 %v1262
        %v1265 = vcvt.s32.f32 %v1263
        %1266 = vadd.xlane.f32.xlu0 %v1264
        %v1267 = vpop.xlane.xlu0 %1266
        %1268 = vadd.xlane.f32.xlu0 %v1265
        %v1269 = vpop.xlane.xlu0 %1268
        %v1270 = vcvt.f32.s32 %v1267
        %v1271 = vcvt.f32.s32 %v1269
        %v1272 = vshll.u32 %v1271, 16
        %v1273 = vadd.s32 %v1272, %v1270
        %vm1274 = vcmp.ge.s32.totalorder %v609, 0
        %vm1275 = vcmp.lt.s32.totalorder %v1063, 6
        %v1276 = vsel %vm1275, %v1063, 6
        %vm1277 = vcmp.lt.s32.totalorder %v1077, 6
        %v1278 = vsel %vm1277, %v1077, 6
        %vm1279 = vcmp.lt.s32.totalorder %v1091, 6
        %v1280 = vsel %vm1279, %v1091, 6
        %vm1281 = vcmp.lt.s32.totalorder %v1105, 6
        %v1282 = vsel %vm1281, %v1105, 6
        %vm1283 = vcmp.lt.s32.totalorder %v1119, 6
        %v1284 = vsel %vm1283, %v1119, 6
        %vm1285 = vcmp.lt.s32.totalorder %v1133, 6
        %v1286 = vsel %vm1285, %v1133, 6
        %vm1287 = vcmp.lt.s32.totalorder %v1147, 6
        %v1288 = vsel %vm1287, %v1147, 6
        %vm1289 = vcmp.lt.s32.totalorder %v1161, 6
        %v1290 = vsel %vm1289, %v1161, 6
        %vm1291 = vcmp.lt.s32.totalorder %v1175, 6
        %v1292 = vsel %vm1291, %v1175, 6
        %vm1293 = vcmp.lt.s32.totalorder %v1189, 6
        %v1294 = vsel %vm1293, %v1189, 6
        %vm1295 = vcmp.lt.s32.totalorder %v1203, 6
        %v1296 = vsel %vm1295, %v1203, 6
        %vm1297 = vcmp.lt.s32.totalorder %v1217, 6
        %v1298 = vsel %vm1297, %v1217, 6
        %vm1299 = vcmp.lt.s32.totalorder %v1231, 6
        %v1300 = vsel %vm1299, %v1231, 6
        %vm1301 = vcmp.lt.s32.totalorder %v1245, 6
        %v1302 = vsel %vm1301, %v1245, 6
        %vm1303 = vcmp.lt.s32.totalorder %v1259, 6
        %v1304 = vsel %vm1303, %v1259, 6
        %vm1305 = vcmp.lt.s32.totalorder %v1273, 6
        %v1306 = vsel %vm1305, %v1273, 6
        %vm1307 = vcmp.lt.s32.totalorder %v609, %v1276
        %vm1308 = vcmp.lt.s32.totalorder %v609, %v1278
        %vm1309 = vcmp.lt.s32.totalorder %v609, %v1280
        %vm1310 = vcmp.lt.s32.totalorder %v609, %v1282
        %vm1311 = vcmp.lt.s32.totalorder %v609, %v1284
        %vm1312 = vcmp.lt.s32.totalorder %v609, %v1286
        %vm1313 = vcmp.lt.s32.totalorder %v609, %v1288
        %vm1314 = vcmp.lt.s32.totalorder %v609, %v1290
        %vm1315 = vcmp.lt.s32.totalorder %v609, %v1292
        %vm1316 = vcmp.lt.s32.totalorder %v609, %v1294
        %vm1317 = vcmp.lt.s32.totalorder %v609, %v1296
        %vm1318 = vcmp.lt.s32.totalorder %v609, %v1298
        %vm1319 = vcmp.lt.s32.totalorder %v609, %v1300
        %vm1320 = vcmp.lt.s32.totalorder %v609, %v1302
        %vm1321 = vcmp.lt.s32.totalorder %v609, %v1304
        %vm1322 = vcmp.lt.s32.totalorder %v609, %v1306
        %vm1323 = vmand %vm1274, %vm1307
        %vm1324 = vmand %vm1274, %vm1308
        %vm1325 = vmand %vm1274, %vm1309
        %vm1326 = vmand %vm1274, %vm1310
        %vm1327 = vmand %vm1274, %vm1311
        %vm1328 = vmand %vm1274, %vm1312
        %vm1329 = vmand %vm1274, %vm1313
        %vm1330 = vmand %vm1274, %vm1314
        %vm1331 = vmand %vm1274, %vm1315
        %vm1332 = vmand %vm1274, %vm1316
        %vm1333 = vmand %vm1274, %vm1317
        %vm1334 = vmand %vm1274, %vm1318
        %vm1335 = vmand %vm1274, %vm1319
        %vm1336 = vmand %vm1274, %vm1320
        %vm1337 = vmand %vm1274, %vm1321
        %vm1338 = vmand %vm1274, %vm1322
        %v1339 = vsel %vm1323, %v893, -inf
        %v1340 = vsel %vm1324, %v897, -inf
        %v1341 = vsel %vm1325, %v901, -inf
        %v1342 = vsel %vm1326, %v905, -inf
        %v1343 = vsel %vm1327, %v909, -inf
        %v1344 = vsel %vm1328, %v913, -inf
        %v1345 = vsel %vm1329, %v917, -inf
        %v1346 = vsel %vm1330, %v921, -inf
        %v1347 = vsel %vm1331, %v925, -inf
        %v1348 = vsel %vm1332, %v929, -inf
        %v1349 = vsel %vm1333, %v933, -inf
        %v1350 = vsel %vm1334, %v937, -inf
        %v1351 = vsel %vm1335, %v941, -inf
        %v1352 = vsel %vm1336, %v945, -inf
        %v1353 = vsel %vm1337, %v949, -inf
        %v1354 = vsel %vm1338, %v953, -inf
        %v1355 = vsel %vm954, -inf, %v874
        %v1356 = vsel %vm955, -inf, %v617
        %v1357 = vsel %vm956, -inf, %v618
        %v1358 = vsel %vm957, -inf, %v875
        %v1359 = vsel %vm958, -inf, %v619
        %v1360 = vsel %vm959, -inf, %v620
        %v1361 = vsel %vm960, -inf, %v876
        %v1362 = vsel %vm961, -inf, %v621
        %v1363 = vsel %vm962, -inf, %v622
        %v1364 = vsel %vm963, -inf, %v877
        %v1365 = vsel %vm964, -inf, %v623
        %v1366 = vsel %vm965, -inf, %v624
        %v1367 = vsel %vm966, -inf, %v878
        %v1368 = vsel %vm967, -inf, %v625
        %v1369 = vsel %vm968, -inf, %v626
        %v1370 = vsel %vm969, -inf, %v879
        %v1371 = vsel %vm970, -inf, %v627
        %v1372 = vsel %vm971, -inf, %v628
        %v1373 = vsel %vm972, -inf, %v880
        %v1374 = vsel %vm973, -inf, %v629
        %v1375 = vsel %vm974, -inf, %v630
        %v1376 = vsel %vm975, -inf, %v881
        %v1377 = vsel %vm976, -inf, %v631
        %v1378 = vsel %vm977, -inf, %v632
        %v1379 = vsel %vm978, -inf, %v882
        %v1380 = vsel %vm979, -inf, %v633
        %v1381 = vsel %vm980, -inf, %v634
        %v1382 = vsel %vm981, -inf, %v883
        %v1383 = vsel %vm982, -inf, %v635
        %v1384 = vsel %vm983, -inf, %v636
        %v1385 = vsel %vm984, -inf, %v884
        %v1386 = vsel %vm985, -inf, %v637
        %v1387 = vsel %vm986, -inf, %v638
        %v1388 = vsel %vm987, -inf, %v885
        %v1389 = vsel %vm988, -inf, %v639
        %v1390 = vsel %vm989, -inf, %v640
        %v1391 = vsel %vm990, -inf, %v886
        %v1392 = vsel %vm991, -inf, %v641
        %v1393 = vsel %vm992, -inf, %v642
        %v1394 = vsel %vm993, -inf, %v887
        %v1395 = vsel %vm994, -inf, %v643
        %v1396 = vsel %vm995, -inf, %v644
        %v1397 = vsel %vm996, -inf, %v888
        %v1398 = vsel %vm997, -inf, %v645
        %v1399 = vsel %vm998, -inf, %v646
        %v1400 = vsel %vm999, -inf, %v889
        %v1401 = vsel %vm1000, -inf, %v647
        %v1402 = vsel %vm1001, -inf, %v648
        %v1403 = vmax.f32 %v1355, %v1356
        %v1404 = vmax.f32 %v1403, %v1357
        %1405 = vmax.xlane.f32.xlu0 %v1404
        %v1406 = vpop.xlane.xlu0 %1405
        %v1407 = vmax.f32 %v1358, %v1359
        %v1408 = vmax.f32 %v1407, %v1360
        %1409 = vmax.xlane.f32.xlu0 %v1408
        %v1410 = vpop.xlane.xlu0 %1409
        %v1411 = vmax.f32 %v1361, %v1362
        %v1412 = vmax.f32 %v1411, %v1363
        %1413 = vmax.xlane.f32.xlu0 %v1412
        %v1414 = vpop.xlane.xlu0 %1413
        %v1415 = vmax.f32 %v1364, %v1365
        %v1416 = vmax.f32 %v1415, %v1366
        %1417 = vmax.xlane.f32.xlu0 %v1416
        %v1418 = vpop.xlane.xlu0 %1417
        %v1419 = vmax.f32 %v1367, %v1368
        %v1420 = vmax.f32 %v1419, %v1369
        %1421 = vmax.xlane.f32.xlu0 %v1420
        %v1422 = vpop.xlane.xlu0 %1421
        %v1423 = vmax.f32 %v1370, %v1371
        %v1424 = vmax.f32 %v1423, %v1372
        %1425 = vmax.xlane.f32.xlu0 %v1424
        %v1426 = vpop.xlane.xlu0 %1425
        %v1427 = vmax.f32 %v1373, %v1374
        %v1428 = vmax.f32 %v1427, %v1375
        %1429 = vmax.xlane.f32.xlu0 %v1428
        %v1430 = vpop.xlane.xlu0 %1429
        %v1431 = vmax.f32 %v1376, %v1377
        %v1432 = vmax.f32 %v1431, %v1378
        %1433 = vmax.xlane.f32.xlu0 %v1432
        %v1434 = vpop.xlane.xlu0 %1433
        %v1435 = vmax.f32 %v1379, %v1380
        %v1436 = vmax.f32 %v1435, %v1381
        %1437 = vmax.xlane.f32.xlu0 %v1436
        %v1438 = vpop.xlane.xlu0 %1437
        %v1439 = vmax.f32 %v1382, %v1383
        %v1440 = vmax.f32 %v1439, %v1384
        %1441 = vmax.xlane.f32.xlu0 %v1440
        %v1442 = vpop.xlane.xlu0 %1441
        %v1443 = vmax.f32 %v1385, %v1386
        %v1444 = vmax.f32 %v1443, %v1387
        %1445 = vmax.xlane.f32.xlu0 %v1444
        %v1446 = vpop.xlane.xlu0 %1445
        %v1447 = vmax.f32 %v1388, %v1389
        %v1448 = vmax.f32 %v1447, %v1390
        %1449 = vmax.xlane.f32.xlu0 %v1448
        %v1450 = vpop.xlane.xlu0 %1449
        %v1451 = vmax.f32 %v1391, %v1392
        %v1452 = vmax.f32 %v1451, %v1393
        %1453 = vmax.xlane.f32.xlu0 %v1452
        %v1454 = vpop.xlane.xlu0 %1453
        %v1455 = vmax.f32 %v1394, %v1395
        %v1456 = vmax.f32 %v1455, %v1396
        %1457 = vmax.xlane.f32.xlu0 %v1456
        %v1458 = vpop.xlane.xlu0 %1457
        %v1459 = vmax.f32 %v1397, %v1398
        %v1460 = vmax.f32 %v1459, %v1399
        %1461 = vmax.xlane.f32.xlu0 %v1460
        %v1462 = vpop.xlane.xlu0 %1461
        %v1463 = vmax.f32 %v1400, %v1401
        %v1464 = vmax.f32 %v1463, %v1402
        %1465 = vmax.xlane.f32.xlu0 %v1464
        %v1466 = vpop.xlane.xlu0 %1465
        %vm1467 = vcmp.eq.f32.partialorder %v1355, %v1406
        %vm1468 = vcmp.eq.f32.partialorder %v1356, %v1406
        %vm1469 = vcmp.eq.f32.partialorder %v1357, %v1406
        %vm1470 = vcmp.eq.f32.partialorder %v1358, %v1410
        %vm1471 = vcmp.eq.f32.partialorder %v1359, %v1410
        %vm1472 = vcmp.eq.f32.partialorder %v1360, %v1410
        %vm1473 = vcmp.eq.f32.partialorder %v1361, %v1414
        %vm1474 = vcmp.eq.f32.partialorder %v1362, %v1414
        %vm1475 = vcmp.eq.f32.partialorder %v1363, %v1414
        %vm1476 = vcmp.eq.f32.partialorder %v1364, %v1418
        %vm1477 = vcmp.eq.f32.partialorder %v1365, %v1418
        %vm1478 = vcmp.eq.f32.partialorder %v1366, %v1418
        %vm1479 = vcmp.eq.f32.partialorder %v1367, %v1422
        %vm1480 = vcmp.eq.f32.partialorder %v1368, %v1422
        %vm1481 = vcmp.eq.f32.partialorder %v1369, %v1422
        %vm1482 = vcmp.eq.f32.partialorder %v1370, %v1426
        %vm1483 = vcmp.eq.f32.partialorder %v1371, %v1426
        %vm1484 = vcmp.eq.f32.partialorder %v1372, %v1426
        %vm1485 = vcmp.eq.f32.partialorder %v1373, %v1430
        %vm1486 = vcmp.eq.f32.partialorder %v1374, %v1430
        %vm1487 = vcmp.eq.f32.partialorder %v1375, %v1430
        %vm1488 = vcmp.eq.f32.partialorder %v1376, %v1434
        %vm1489 = vcmp.eq.f32.partialorder %v1377, %v1434
        %vm1490 = vcmp.eq.f32.partialorder %v1378, %v1434
        %vm1491 = vcmp.eq.f32.partialorder %v1379, %v1438
        %vm1492 = vcmp.eq.f32.partialorder %v1380, %v1438
        %vm1493 = vcmp.eq.f32.partialorder %v1381, %v1438
        %vm1494 = vcmp.eq.f32.partialorder %v1382, %v1442
        %vm1495 = vcmp.eq.f32.partialorder %v1383, %v1442
        %vm1496 = vcmp.eq.f32.partialorder %v1384, %v1442
        %vm1497 = vcmp.eq.f32.partialorder %v1385, %v1446
        %vm1498 = vcmp.eq.f32.partialorder %v1386, %v1446
        %vm1499 = vcmp.eq.f32.partialorder %v1387, %v1446
        %vm1500 = vcmp.eq.f32.partialorder %v1388, %v1450
        %vm1501 = vcmp.eq.f32.partialorder %v1389, %v1450
        %vm1502 = vcmp.eq.f32.partialorder %v1390, %v1450
        %vm1503 = vcmp.eq.f32.partialorder %v1391, %v1454
        %vm1504 = vcmp.eq.f32.partialorder %v1392, %v1454
        %vm1505 = vcmp.eq.f32.partialorder %v1393, %v1454
        %vm1506 = vcmp.eq.f32.partialorder %v1394, %v1458
        %vm1507 = vcmp.eq.f32.partialorder %v1395, %v1458
        %vm1508 = vcmp.eq.f32.partialorder %v1396, %v1458
        %vm1509 = vcmp.eq.f32.partialorder %v1397, %v1462
        %vm1510 = vcmp.eq.f32.partialorder %v1398, %v1462
        %vm1511 = vcmp.eq.f32.partialorder %v1399, %v1462
        %vm1512 = vcmp.eq.f32.partialorder %v1400, %v1466
        %vm1513 = vcmp.eq.f32.partialorder %v1401, %v1466
        %vm1514 = vcmp.eq.f32.partialorder %v1402, %v1466
        %v1515 = vsel %vm1467, 1, 0
        %v1516 = vsel %vm1468, 1, 0
        %v1517 = vsel %vm1469, 1, 0
        %v1518 = vsel %vm1470, 1, 0
        %v1519 = vsel %vm1471, 1, 0
        %v1520 = vsel %vm1472, 1, 0
        %v1521 = vsel %vm1473, 1, 0
        %v1522 = vsel %vm1474, 1, 0
        %v1523 = vsel %vm1475, 1, 0
        %v1524 = vsel %vm1476, 1, 0
        %v1525 = vsel %vm1477, 1, 0
        %v1526 = vsel %vm1478, 1, 0
        %v1527 = vsel %vm1479, 1, 0
        %v1528 = vsel %vm1480, 1, 0
        %v1529 = vsel %vm1481, 1, 0
        %v1530 = vsel %vm1482, 1, 0
        %v1531 = vsel %vm1483, 1, 0
        %v1532 = vsel %vm1484, 1, 0
        %v1533 = vsel %vm1485, 1, 0
        %v1534 = vsel %vm1486, 1, 0
        %v1535 = vsel %vm1487, 1, 0
        %v1536 = vsel %vm1488, 1, 0
        %v1537 = vsel %vm1489, 1, 0
        %v1538 = vsel %vm1490, 1, 0
        %v1539 = vsel %vm1491, 1, 0
        %v1540 = vsel %vm1492, 1, 0
        %v1541 = vsel %vm1493, 1, 0
        %v1542 = vsel %vm1494, 1, 0
        %v1543 = vsel %vm1495, 1, 0
        %v1544 = vsel %vm1496, 1, 0
        %v1545 = vsel %vm1497, 1, 0
        %v1546 = vsel %vm1498, 1, 0
        %v1547 = vsel %vm1499, 1, 0
        %v1548 = vsel %vm1500, 1, 0
        %v1549 = vsel %vm1501, 1, 0
        %v1550 = vsel %vm1502, 1, 0
        %v1551 = vsel %vm1503, 1, 0
        %v1552 = vsel %vm1504, 1, 0
        %v1553 = vsel %vm1505, 1, 0
        %v1554 = vsel %vm1506, 1, 0
        %v1555 = vsel %vm1507, 1, 0
        %v1556 = vsel %vm1508, 1, 0
        %v1557 = vsel %vm1509, 1, 0
        %v1558 = vsel %vm1510, 1, 0
        %v1559 = vsel %vm1511, 1, 0
        %v1560 = vsel %vm1512, 1, 0
        %v1561 = vsel %vm1513, 1, 0
        %v1562 = vsel %vm1514, 1, 0
        %v1563 = vadd.s32 %v1515, %v1516
        %v1564 = vadd.s32 %v1563, %v1517
        %v1565 = vand.u32 %v1564, 65535
        %v1566 = vshrl.u32 %v1564, 16
        %v1567 = vcvt.s32.f32 %v1565
        %v1568 = vcvt.s32.f32 %v1566
        %1569 = vadd.xlane.f32.xlu0 %v1567
        %v1570 = vpop.xlane.xlu0 %1569
        %1571 = vadd.xlane.f32.xlu0 %v1568
        %v1572 = vpop.xlane.xlu0 %1571
        %v1573 = vcvt.f32.s32 %v1570
        %v1574 = vcvt.f32.s32 %v1572
        %v1575 = vshll.u32 %v1574, 16
        %v1576 = vadd.s32 %v1575, %v1573
        %v1577 = vadd.s32 %v1518, %v1519
        %v1578 = vadd.s32 %v1577, %v1520
        %v1579 = vand.u32 %v1578, 65535
        %v1580 = vshrl.u32 %v1578, 16
        %v1581 = vcvt.s32.f32 %v1579
        %v1582 = vcvt.s32.f32 %v1580
        %1583 = vadd.xlane.f32.xlu0 %v1581
        %v1584 = vpop.xlane.xlu0 %1583
        %1585 = vadd.xlane.f32.xlu0 %v1582
        %v1586 = vpop.xlane.xlu0 %1585
        %v1587 = vcvt.f32.s32 %v1584
        %v1588 = vcvt.f32.s32 %v1586
        %v1589 = vshll.u32 %v1588, 16
        %v1590 = vadd.s32 %v1589, %v1587
        %v1591 = vadd.s32 %v1521, %v1522
        %v1592 = vadd.s32 %v1591, %v1523
        %v1593 = vand.u32 %v1592, 65535
        %v1594 = vshrl.u32 %v1592, 16
        %v1595 = vcvt.s32.f32 %v1593
        %v1596 = vcvt.s32.f32 %v1594
        %1597 = vadd.xlane.f32.xlu0 %v1595
        %v1598 = vpop.xlane.xlu0 %1597
        %1599 = vadd.xlane.f32.xlu0 %v1596
        %v1600 = vpop.xlane.xlu0 %1599
        %v1601 = vcvt.f32.s32 %v1598
        %v1602 = vcvt.f32.s32 %v1600
        %v1603 = vshll.u32 %v1602, 16
        %v1604 = vadd.s32 %v1603, %v1601
        %v1605 = vadd.s32 %v1524, %v1525
        %v1606 = vadd.s32 %v1605, %v1526
        %v1607 = vand.u32 %v1606, 65535
        %v1608 = vshrl.u32 %v1606, 16
        %v1609 = vcvt.s32.f32 %v1607
        %v1610 = vcvt.s32.f32 %v1608
        %1611 = vadd.xlane.f32.xlu0 %v1609
        %v1612 = vpop.xlane.xlu0 %1611
        %1613 = vadd.xlane.f32.xlu0 %v1610
        %v1614 = vpop.xlane.xlu0 %1613
        %v1615 = vcvt.f32.s32 %v1612
        %v1616 = vcvt.f32.s32 %v1614
        %v1617 = vshll.u32 %v1616, 16
        %v1618 = vadd.s32 %v1617, %v1615
        %v1619 = vadd.s32 %v1527, %v1528
        %v1620 = vadd.s32 %v1619, %v1529
        %v1621 = vand.u32 %v1620, 65535
        %v1622 = vshrl.u32 %v1620, 16
        %v1623 = vcvt.s32.f32 %v1621
        %v1624 = vcvt.s32.f32 %v1622
        %1625 = vadd.xlane.f32.xlu0 %v1623
        %v1626 = vpop.xlane.xlu0 %1625
        %1627 = vadd.xlane.f32.xlu0 %v1624
        %v1628 = vpop.xlane.xlu0 %1627
        %v1629 = vcvt.f32.s32 %v1626
        %v1630 = vcvt.f32.s32 %v1628
        %v1631 = vshll.u32 %v1630, 16
        %v1632 = vadd.s32 %v1631, %v1629
        %v1633 = vadd.s32 %v1530, %v1531
        %v1634 = vadd.s32 %v1633, %v1532
        %v1635 = vand.u32 %v1634, 65535
        %v1636 = vshrl.u32 %v1634, 16
        %v1637 = vcvt.s32.f32 %v1635
        %v1638 = vcvt.s32.f32 %v1636
        %1639 = vadd.xlane.f32.xlu0 %v1637
        %v1640 = vpop.xlane.xlu0 %1639
        %1641 = vadd.xlane.f32.xlu0 %v1638
        %v1642 = vpop.xlane.xlu0 %1641
        %v1643 = vcvt.f32.s32 %v1640
        %v1644 = vcvt.f32.s32 %v1642
        %v1645 = vshll.u32 %v1644, 16
        %v1646 = vadd.s32 %v1645, %v1643
        %v1647 = vadd.s32 %v1533, %v1534
        %v1648 = vadd.s32 %v1647, %v1535
        %v1649 = vand.u32 %v1648, 65535
        %v1650 = vshrl.u32 %v1648, 16
        %v1651 = vcvt.s32.f32 %v1649
        %v1652 = vcvt.s32.f32 %v1650
        %1653 = vadd.xlane.f32.xlu0 %v1651
        %v1654 = vpop.xlane.xlu0 %1653
        %1655 = vadd.xlane.f32.xlu0 %v1652
        %v1656 = vpop.xlane.xlu0 %1655
        %v1657 = vcvt.f32.s32 %v1654
        %v1658 = vcvt.f32.s32 %v1656
        %v1659 = vshll.u32 %v1658, 16
        %v1660 = vadd.s32 %v1659, %v1657
        %v1661 = vadd.s32 %v1536, %v1537
        %v1662 = vadd.s32 %v1661, %v1538
        %v1663 = vand.u32 %v1662, 65535
        %v1664 = vshrl.u32 %v1662, 16
        %v1665 = vcvt.s32.f32 %v1663
        %v1666 = vcvt.s32.f32 %v1664
        %1667 = vadd.xlane.f32.xlu0 %v1665
        %v1668 = vpop.xlane.xlu0 %1667
        %1669 = vadd.xlane.f32.xlu0 %v1666
        %v1670 = vpop.xlane.xlu0 %1669
        %v1671 = vcvt.f32.s32 %v1668
        %v1672 = vcvt.f32.s32 %v1670
        %v1673 = vshll.u32 %v1672, 16
        %v1674 = vadd.s32 %v1673, %v1671
        %v1675 = vadd.s32 %v1539, %v1540
        %v1676 = vadd.s32 %v1675, %v1541
        %v1677 = vand.u32 %v1676, 65535
        %v1678 = vshrl.u32 %v1676, 16
        %v1679 = vcvt.s32.f32 %v1677
        %v1680 = vcvt.s32.f32 %v1678
        %1681 = vadd.xlane.f32.xlu0 %v1679
        %v1682 = vpop.xlane.xlu0 %1681
        %1683 = vadd.xlane.f32.xlu0 %v1680
        %v1684 = vpop.xlane.xlu0 %1683
        %v1685 = vcvt.f32.s32 %v1682
        %v1686 = vcvt.f32.s32 %v1684
        %v1687 = vshll.u32 %v1686, 16
        %v1688 = vadd.s32 %v1687, %v1685
        %v1689 = vadd.s32 %v1542, %v1543
        %v1690 = vadd.s32 %v1689, %v1544
        %v1691 = vand.u32 %v1690, 65535
        %v1692 = vshrl.u32 %v1690, 16
        %v1693 = vcvt.s32.f32 %v1691
        %v1694 = vcvt.s32.f32 %v1692
        %1695 = vadd.xlane.f32.xlu0 %v1693
        %v1696 = vpop.xlane.xlu0 %1695
        %1697 = vadd.xlane.f32.xlu0 %v1694
        %v1698 = vpop.xlane.xlu0 %1697
        %v1699 = vcvt.f32.s32 %v1696
        %v1700 = vcvt.f32.s32 %v1698
        %v1701 = vshll.u32 %v1700, 16
        %v1702 = vadd.s32 %v1701, %v1699
        %v1703 = vadd.s32 %v1545, %v1546
        %v1704 = vadd.s32 %v1703, %v1547
        %v1705 = vand.u32 %v1704, 65535
        %v1706 = vshrl.u32 %v1704, 16
        %v1707 = vcvt.s32.f32 %v1705
        %v1708 = vcvt.s32.f32 %v1706
        %1709 = vadd.xlane.f32.xlu0 %v1707
        %v1710 = vpop.xlane.xlu0 %1709
        %1711 = vadd.xlane.f32.xlu0 %v1708
        %v1712 = vpop.xlane.xlu0 %1711
        %v1713 = vcvt.f32.s32 %v1710
        %v1714 = vcvt.f32.s32 %v1712
        %v1715 = vshll.u32 %v1714, 16
        %v1716 = vadd.s32 %v1715, %v1713
        %v1717 = vadd.s32 %v1548, %v1549
        %v1718 = vadd.s32 %v1717, %v1550
        %v1719 = vand.u32 %v1718, 65535
        %v1720 = vshrl.u32 %v1718, 16
        %v1721 = vcvt.s32.f32 %v1719
        %v1722 = vcvt.s32.f32 %v1720
        %1723 = vadd.xlane.f32.xlu0 %v1721
        %v1724 = vpop.xlane.xlu0 %1723
        %1725 = vadd.xlane.f32.xlu0 %v1722
        %v1726 = vpop.xlane.xlu0 %1725
        %v1727 = vcvt.f32.s32 %v1724
        %v1728 = vcvt.f32.s32 %v1726
        %v1729 = vshll.u32 %v1728, 16
        %v1730 = vadd.s32 %v1729, %v1727
        %v1731 = vadd.s32 %v1551, %v1552
        %v1732 = vadd.s32 %v1731, %v1553
        %v1733 = vand.u32 %v1732, 65535
        %v1734 = vshrl.u32 %v1732, 16
        %v1735 = vcvt.s32.f32 %v1733
        %v1736 = vcvt.s32.f32 %v1734
        %1737 = vadd.xlane.f32.xlu0 %v1735
        %v1738 = vpop.xlane.xlu0 %1737
        %1739 = vadd.xlane.f32.xlu0 %v1736
        %v1740 = vpop.xlane.xlu0 %1739
        %v1741 = vcvt.f32.s32 %v1738
        %v1742 = vcvt.f32.s32 %v1740
        %v1743 = vshll.u32 %v1742, 16
        %v1744 = vadd.s32 %v1743, %v1741
        %v1745 = vadd.s32 %v1554, %v1555
        %v1746 = vadd.s32 %v1745, %v1556
        %v1747 = vand.u32 %v1746, 65535
        %v1748 = vshrl.u32 %v1746, 16
        %v1749 = vcvt.s32.f32 %v1747
        %v1750 = vcvt.s32.f32 %v1748
        %1751 = vadd.xlane.f32.xlu0 %v1749
        %v1752 = vpop.xlane.xlu0 %1751
        %1753 = vadd.xlane.f32.xlu0 %v1750
        %v1754 = vpop.xlane.xlu0 %1753
        %v1755 = vcvt.f32.s32 %v1752
        %v1756 = vcvt.f32.s32 %v1754
        %v1757 = vshll.u32 %v1756, 16
        %v1758 = vadd.s32 %v1757, %v1755
        %v1759 = vadd.s32 %v1557, %v1558
        %v1760 = vadd.s32 %v1759, %v1559
        %v1761 = vand.u32 %v1760, 65535
        %v1762 = vshrl.u32 %v1760, 16
        %v1763 = vcvt.s32.f32 %v1761
        %v1764 = vcvt.s32.f32 %v1762
        %1765 = vadd.xlane.f32.xlu0 %v1763
        %v1766 = vpop.xlane.xlu0 %1765
        %1767 = vadd.xlane.f32.xlu0 %v1764
        %v1768 = vpop.xlane.xlu0 %1767
        %v1769 = vcvt.f32.s32 %v1766
        %v1770 = vcvt.f32.s32 %v1768
        %v1771 = vshll.u32 %v1770, 16
        %v1772 = vadd.s32 %v1771, %v1769
        %v1773 = vadd.s32 %v1560, %v1561
        %v1774 = vadd.s32 %v1773, %v1562
        %v1775 = vand.u32 %v1774, 65535
        %v1776 = vshrl.u32 %v1774, 16
        %v1777 = vcvt.s32.f32 %v1775
        %v1778 = vcvt.s32.f32 %v1776
        %1779 = vadd.xlane.f32.xlu0 %v1777
        %v1780 = vpop.xlane.xlu0 %1779
        %1781 = vadd.xlane.f32.xlu0 %v1778
        %v1782 = vpop.xlane.xlu0 %1781
        %v1783 = vcvt.f32.s32 %v1780
        %v1784 = vcvt.f32.s32 %v1782
        %v1785 = vshll.u32 %v1784, 16
        %v1786 = vadd.s32 %v1785, %v1783
        %vm1787 = vcmp.ge.s32.totalorder %v609, %v1063
        %vm1788 = vcmp.ge.s32.totalorder %v609, %v1077
        %vm1789 = vcmp.ge.s32.totalorder %v609, %v1091
        %vm1790 = vcmp.ge.s32.totalorder %v609, %v1105
        %vm1791 = vcmp.ge.s32.totalorder %v609, %v1119
        %vm1792 = vcmp.ge.s32.totalorder %v609, %v1133
        %vm1793 = vcmp.ge.s32.totalorder %v609, %v1147
        %vm1794 = vcmp.ge.s32.totalorder %v609, %v1161
        %vm1795 = vcmp.ge.s32.totalorder %v609, %v1175
        %vm1796 = vcmp.ge.s32.totalorder %v609, %v1189
        %vm1797 = vcmp.ge.s32.totalorder %v609, %v1203
        %vm1798 = vcmp.ge.s32.totalorder %v609, %v1217
        %vm1799 = vcmp.ge.s32.totalorder %v609, %v1231
        %vm1800 = vcmp.ge.s32.totalorder %v609, %v1245
        %vm1801 = vcmp.ge.s32.totalorder %v609, %v1259
        %vm1802 = vcmp.ge.s32.totalorder %v609, %v1273
        %v1803 = vadd.s32 %v1063, %v1576
        %v1804 = vadd.s32 %v1077, %v1590
        %v1805 = vadd.s32 %v1091, %v1604
        %v1806 = vadd.s32 %v1105, %v1618
        %v1807 = vadd.s32 %v1119, %v1632
        %v1808 = vadd.s32 %v1133, %v1646
        %v1809 = vadd.s32 %v1147, %v1660
        %v1810 = vadd.s32 %v1161, %v1674
        %v1811 = vadd.s32 %v1175, %v1688
        %v1812 = vadd.s32 %v1189, %v1702
        %v1813 = vadd.s32 %v1203, %v1716
        %v1814 = vadd.s32 %v1217, %v1730
        %v1815 = vadd.s32 %v1231, %v1744
        %v1816 = vadd.s32 %v1245, %v1758
        %v1817 = vadd.s32 %v1259, %v1772
        %v1818 = vadd.s32 %v1273, %v1786
        %vm1819 = vcmp.lt.s32.totalorder %v1803, 6
        %v1820 = vsel %vm1819, %v1803, 6
        %vm1821 = vcmp.lt.s32.totalorder %v1804, 6
        %v1822 = vsel %vm1821, %v1804, 6
        %vm1823 = vcmp.lt.s32.totalorder %v1805, 6
        %v1824 = vsel %vm1823, %v1805, 6
        %vm1825 = vcmp.lt.s32.totalorder %v1806, 6
        %v1826 = vsel %vm1825, %v1806, 6
        %vm1827 = vcmp.lt.s32.totalorder %v1807, 6
        %v1828 = vsel %vm1827, %v1807, 6
        %vm1829 = vcmp.lt.s32.totalorder %v1808, 6
        %v1830 = vsel %vm1829, %v1808, 6
        %vm1831 = vcmp.lt.s32.totalorder %v1809, 6
        %v1832 = vsel %vm1831, %v1809, 6
        %vm1833 = vcmp.lt.s32.totalorder %v1810, 6
        %v1834 = vsel %vm1833, %v1810, 6
        %vm1835 = vcmp.lt.s32.totalorder %v1811, 6
        %v1836 = vsel %vm1835, %v1811, 6
        %vm1837 = vcmp.lt.s32.totalorder %v1812, 6
        %v1838 = vsel %vm1837, %v1812, 6
        %vm1839 = vcmp.lt.s32.totalorder %v1813, 6
        %v1840 = vsel %vm1839, %v1813, 6
        %vm1841 = vcmp.lt.s32.totalorder %v1814, 6
        %v1842 = vsel %vm1841, %v1814, 6
        %vm1843 = vcmp.lt.s32.totalorder %v1815, 6
        %v1844 = vsel %vm1843, %v1815, 6
        %vm1845 = vcmp.lt.s32.totalorder %v1816, 6
        %v1846 = vsel %vm1845, %v1816, 6
        %vm1847 = vcmp.lt.s32.totalorder %v1817, 6
        %v1848 = vsel %vm1847, %v1817, 6
        %vm1849 = vcmp.lt.s32.totalorder %v1818, 6
        %v1850 = vsel %vm1849, %v1818, 6
        %vm1851 = vcmp.lt.s32.totalorder %v609, %v1820
        %vm1852 = vcmp.lt.s32.totalorder %v609, %v1822
        %vm1853 = vcmp.lt.s32.totalorder %v609, %v1824
        %vm1854 = vcmp.lt.s32.totalorder %v609, %v1826
        %vm1855 = vcmp.lt.s32.totalorder %v609, %v1828
        %vm1856 = vcmp.lt.s32.totalorder %v609, %v1830
        %vm1857 = vcmp.lt.s32.totalorder %v609, %v1832
        %vm1858 = vcmp.lt.s32.totalorder %v609, %v1834
        %vm1859 = vcmp.lt.s32.totalorder %v609, %v1836
        %vm1860 = vcmp.lt.s32.totalorder %v609, %v1838
        %vm1861 = vcmp.lt.s32.totalorder %v609, %v1840
        %vm1862 = vcmp.lt.s32.totalorder %v609, %v1842
        %vm1863 = vcmp.lt.s32.totalorder %v609, %v1844
        %vm1864 = vcmp.lt.s32.totalorder %v609, %v1846
        %vm1865 = vcmp.lt.s32.totalorder %v609, %v1848
        %vm1866 = vcmp.lt.s32.totalorder %v609, %v1850
        %vm1867 = vmand %vm1787, %vm1851
        %vm1868 = vmand %vm1788, %vm1852
        %vm1869 = vmand %vm1789, %vm1853
        %vm1870 = vmand %vm1790, %vm1854
        %vm1871 = vmand %vm1791, %vm1855
        %vm1872 = vmand %vm1792, %vm1856
        %vm1873 = vmand %vm1793, %vm1857
        %vm1874 = vmand %vm1794, %vm1858
        %vm1875 = vmand %vm1795, %vm1859
        %vm1876 = vmand %vm1796, %vm1860
        %vm1877 = vmand %vm1797, %vm1861
        %vm1878 = vmand %vm1798, %vm1862
        %vm1879 = vmand %vm1799, %vm1863
        %vm1880 = vmand %vm1800, %vm1864
        %vm1881 = vmand %vm1801, %vm1865
        %vm1882 = vmand %vm1802, %vm1866
        %v1883 = vsel %vm1867, %v1406, %v1339
        %v1884 = vsel %vm1868, %v1410, %v1340
        %v1885 = vsel %vm1869, %v1414, %v1341
        %v1886 = vsel %vm1870, %v1418, %v1342
        %v1887 = vsel %vm1871, %v1422, %v1343
        %v1888 = vsel %vm1872, %v1426, %v1344
        %v1889 = vsel %vm1873, %v1430, %v1345
        %v1890 = vsel %vm1874, %v1434, %v1346
        %v1891 = vsel %vm1875, %v1438, %v1347
        %v1892 = vsel %vm1876, %v1442, %v1348
        %v1893 = vsel %vm1877, %v1446, %v1349
        %v1894 = vsel %vm1878, %v1450, %v1350
        %v1895 = vsel %vm1879, %v1454, %v1351
        %v1896 = vsel %vm1880, %v1458, %v1352
        %v1897 = vsel %vm1881, %v1462, %v1353
        %v1898 = vsel %vm1882, %v1466, %v1354
        %v1899 = vsel %vm1467, -inf, %v1355
        %v1900 = vsel %vm1468, -inf, %v1356
        %v1901 = vsel %vm1469, -inf, %v1357
        %v1902 = vsel %vm1470, -inf, %v1358
        %v1903 = vsel %vm1471, -inf, %v1359
        %v1904 = vsel %vm1472, -inf, %v1360
        %v1905 = vsel %vm1473, -inf, %v1361
        %v1906 = vsel %vm1474, -inf, %v1362
        %v1907 = vsel %vm1475, -inf, %v1363
        %v1908 = vsel %vm1476, -inf, %v1364
        %v1909 = vsel %vm1477, -inf, %v1365
        %v1910 = vsel %vm1478, -inf, %v1366
        %v1911 = vsel %vm1479, -inf, %v1367
        %v1912 = vsel %vm1480, -inf, %v1368
        %v1913 = vsel %vm1481, -inf, %v1369
        %v1914 = vsel %vm1482, -inf, %v1370
        %v1915 = vsel %vm1483, -inf, %v1371
        %v1916 = vsel %vm1484, -inf, %v1372
        %v1917 = vsel %vm1485, -inf, %v1373
        %v1918 = vsel %vm1486, -inf, %v1374
        %v1919 = vsel %vm1487, -inf, %v1375
        %v1920 = vsel %vm1488, -inf, %v1376
        %v1921 = vsel %vm1489, -inf, %v1377
        %v1922 = vsel %vm1490, -inf, %v1378
        %v1923 = vsel %vm1491, -inf, %v1379
        %v1924 = vsel %vm1492, -inf, %v1380
        %v1925 = vsel %vm1493, -inf, %v1381
        %v1926 = vsel %vm1494, -inf, %v1382
        %v1927 = vsel %vm1495, -inf, %v1383
        %v1928 = vsel %vm1496, -inf, %v1384
        %v1929 = vsel %vm1497, -inf, %v1385
        %v1930 = vsel %vm1498, -inf, %v1386
        %v1931 = vsel %vm1499, -inf, %v1387
        %v1932 = vsel %vm1500, -inf, %v1388
        %v1933 = vsel %vm1501, -inf, %v1389
        %v1934 = vsel %vm1502, -inf, %v1390
        %v1935 = vsel %vm1503, -inf, %v1391
        %v1936 = vsel %vm1504, -inf, %v1392
        %v1937 = vsel %vm1505, -inf, %v1393
        %v1938 = vsel %vm1506, -inf, %v1394
        %v1939 = vsel %vm1507, -inf, %v1395
        %v1940 = vsel %vm1508, -inf, %v1396
        %v1941 = vsel %vm1509, -inf, %v1397
        %v1942 = vsel %vm1510, -inf, %v1398
        %v1943 = vsel %vm1511, -inf, %v1399
        %v1944 = vsel %vm1512, -inf, %v1400
        %v1945 = vsel %vm1513, -inf, %v1401
        %v1946 = vsel %vm1514, -inf, %v1402
        %v1947 = vmax.f32 %v1899, %v1900
        %v1948 = vmax.f32 %v1947, %v1901
        %1949 = vmax.xlane.f32.xlu0 %v1948
        %v1950 = vpop.xlane.xlu0 %1949
        %v1951 = vmax.f32 %v1902, %v1903
        %v1952 = vmax.f32 %v1951, %v1904
        %1953 = vmax.xlane.f32.xlu0 %v1952
        %v1954 = vpop.xlane.xlu0 %1953
        %v1955 = vmax.f32 %v1905, %v1906
        %v1956 = vmax.f32 %v1955, %v1907
        %1957 = vmax.xlane.f32.xlu0 %v1956
        %v1958 = vpop.xlane.xlu0 %1957
        %v1959 = vmax.f32 %v1908, %v1909
        %v1960 = vmax.f32 %v1959, %v1910
        %1961 = vmax.xlane.f32.xlu0 %v1960
        %v1962 = vpop.xlane.xlu0 %1961
        %v1963 = vmax.f32 %v1911, %v1912
        %v1964 = vmax.f32 %v1963, %v1913
        %1965 = vmax.xlane.f32.xlu0 %v1964
        %v1966 = vpop.xlane.xlu0 %1965
        %v1967 = vmax.f32 %v1914, %v1915
        %v1968 = vmax.f32 %v1967, %v1916
        %1969 = vmax.xlane.f32.xlu0 %v1968
        %v1970 = vpop.xlane.xlu0 %1969
        %v1971 = vmax.f32 %v1917, %v1918
        %v1972 = vmax.f32 %v1971, %v1919
        %1973 = vmax.xlane.f32.xlu0 %v1972
        %v1974 = vpop.xlane.xlu0 %1973
        %v1975 = vmax.f32 %v1920, %v1921
        %v1976 = vmax.f32 %v1975, %v1922
        %1977 = vmax.xlane.f32.xlu0 %v1976
        %v1978 = vpop.xlane.xlu0 %1977
        %v1979 = vmax.f32 %v1923, %v1924
        %v1980 = vmax.f32 %v1979, %v1925
        %1981 = vmax.xlane.f32.xlu0 %v1980
        %v1982 = vpop.xlane.xlu0 %1981
        %v1983 = vmax.f32 %v1926, %v1927
        %v1984 = vmax.f32 %v1983, %v1928
        %1985 = vmax.xlane.f32.xlu0 %v1984
        %v1986 = vpop.xlane.xlu0 %1985
        %v1987 = vmax.f32 %v1929, %v1930
        %v1988 = vmax.f32 %v1987, %v1931
        %1989 = vmax.xlane.f32.xlu0 %v1988
        %v1990 = vpop.xlane.xlu0 %1989
        %v1991 = vmax.f32 %v1932, %v1933
        %v1992 = vmax.f32 %v1991, %v1934
        %1993 = vmax.xlane.f32.xlu0 %v1992
        %v1994 = vpop.xlane.xlu0 %1993
        %v1995 = vmax.f32 %v1935, %v1936
        %v1996 = vmax.f32 %v1995, %v1937
        %1997 = vmax.xlane.f32.xlu0 %v1996
        %v1998 = vpop.xlane.xlu0 %1997
        %v1999 = vmax.f32 %v1938, %v1939
        %v2000 = vmax.f32 %v1999, %v1940
        %2001 = vmax.xlane.f32.xlu0 %v2000
        %v2002 = vpop.xlane.xlu0 %2001
        %v2003 = vmax.f32 %v1941, %v1942
        %v2004 = vmax.f32 %v2003, %v1943
        %2005 = vmax.xlane.f32.xlu0 %v2004
        %v2006 = vpop.xlane.xlu0 %2005
        %v2007 = vmax.f32 %v1944, %v1945
        %v2008 = vmax.f32 %v2007, %v1946
        %2009 = vmax.xlane.f32.xlu0 %v2008
        %v2010 = vpop.xlane.xlu0 %2009
        %vm2011 = vcmp.eq.f32.partialorder %v1899, %v1950
        %vm2012 = vcmp.eq.f32.partialorder %v1900, %v1950
        %vm2013 = vcmp.eq.f32.partialorder %v1901, %v1950
        %vm2014 = vcmp.eq.f32.partialorder %v1902, %v1954
        %vm2015 = vcmp.eq.f32.partialorder %v1903, %v1954
        %vm2016 = vcmp.eq.f32.partialorder %v1904, %v1954
        %vm2017 = vcmp.eq.f32.partialorder %v1905, %v1958
        %vm2018 = vcmp.eq.f32.partialorder %v1906, %v1958
        %vm2019 = vcmp.eq.f32.partialorder %v1907, %v1958
        %vm2020 = vcmp.eq.f32.partialorder %v1908, %v1962
        %vm2021 = vcmp.eq.f32.partialorder %v1909, %v1962
        %vm2022 = vcmp.eq.f32.partialorder %v1910, %v1962
        %vm2023 = vcmp.eq.f32.partialorder %v1911, %v1966
        %vm2024 = vcmp.eq.f32.partialorder %v1912, %v1966
        %vm2025 = vcmp.eq.f32.partialorder %v1913, %v1966
        %vm2026 = vcmp.eq.f32.partialorder %v1914, %v1970
        %vm2027 = vcmp.eq.f32.partialorder %v1915, %v1970
        %vm2028 = vcmp.eq.f32.partialorder %v1916, %v1970
        %vm2029 = vcmp.eq.f32.partialorder %v1917, %v1974
        %vm2030 = vcmp.eq.f32.partialorder %v1918, %v1974
        %vm2031 = vcmp.eq.f32.partialorder %v1919, %v1974
        %vm2032 = vcmp.eq.f32.partialorder %v1920, %v1978
        %vm2033 = vcmp.eq.f32.partialorder %v1921, %v1978
        %vm2034 = vcmp.eq.f32.partialorder %v1922, %v1978
        %vm2035 = vcmp.eq.f32.partialorder %v1923, %v1982
        %vm2036 = vcmp.eq.f32.partialorder %v1924, %v1982
        %vm2037 = vcmp.eq.f32.partialorder %v1925, %v1982
        %vm2038 = vcmp.eq.f32.partialorder %v1926, %v1986
        %vm2039 = vcmp.eq.f32.partialorder %v1927, %v1986
        %vm2040 = vcmp.eq.f32.partialorder %v1928, %v1986
        %vm2041 = vcmp.eq.f32.partialorder %v1929, %v1990
        %vm2042 = vcmp.eq.f32.partialorder %v1930, %v1990
        %vm2043 = vcmp.eq.f32.partialorder %v1931, %v1990
        %vm2044 = vcmp.eq.f32.partialorder %v1932, %v1994
        %vm2045 = vcmp.eq.f32.partialorder %v1933, %v1994
        %vm2046 = vcmp.eq.f32.partialorder %v1934, %v1994
        %vm2047 = vcmp.eq.f32.partialorder %v1935, %v1998
        %vm2048 = vcmp.eq.f32.partialorder %v1936, %v1998
        %vm2049 = vcmp.eq.f32.partialorder %v1937, %v1998
        %vm2050 = vcmp.eq.f32.partialorder %v1938, %v2002
        %vm2051 = vcmp.eq.f32.partialorder %v1939, %v2002
        %vm2052 = vcmp.eq.f32.partialorder %v1940, %v2002
        %vm2053 = vcmp.eq.f32.partialorder %v1941, %v2006
        %vm2054 = vcmp.eq.f32.partialorder %v1942, %v2006
        %vm2055 = vcmp.eq.f32.partialorder %v1943, %v2006
        %vm2056 = vcmp.eq.f32.partialorder %v1944, %v2010
        %vm2057 = vcmp.eq.f32.partialorder %v1945, %v2010
        %vm2058 = vcmp.eq.f32.partialorder %v1946, %v2010
        %v2059 = vsel %vm2011, 1, 0
        %v2060 = vsel %vm2012, 1, 0
        %v2061 = vsel %vm2013, 1, 0
        %v2062 = vsel %vm2014, 1, 0
        %v2063 = vsel %vm2015, 1, 0
        %v2064 = vsel %vm2016, 1, 0
        %v2065 = vsel %vm2017, 1, 0
        %v2066 = vsel %vm2018, 1, 0
        %v2067 = vsel %vm2019, 1, 0
        %v2068 = vsel %vm2020, 1, 0
        %v2069 = vsel %vm2021, 1, 0
        %v2070 = vsel %vm2022, 1, 0
        %v2071 = vsel %vm2023, 1, 0
        %v2072 = vsel %vm2024, 1, 0
        %v2073 = vsel %vm2025, 1, 0
        %v2074 = vsel %vm2026, 1, 0
        %v2075 = vsel %vm2027, 1, 0
        %v2076 = vsel %vm2028, 1, 0
        %v2077 = vsel %vm2029, 1, 0
        %v2078 = vsel %vm2030, 1, 0
        %v2079 = vsel %vm2031, 1, 0
        %v2080 = vsel %vm2032, 1, 0
        %v2081 = vsel %vm2033, 1, 0
        %v2082 = vsel %vm2034, 1, 0
        %v2083 = vsel %vm2035, 1, 0
        %v2084 = vsel %vm2036, 1, 0
        %v2085 = vsel %vm2037, 1, 0
        %v2086 = vsel %vm2038, 1, 0
        %v2087 = vsel %vm2039, 1, 0
        %v2088 = vsel %vm2040, 1, 0
        %v2089 = vsel %vm2041, 1, 0
        %v2090 = vsel %vm2042, 1, 0
        %v2091 = vsel %vm2043, 1, 0
        %v2092 = vsel %vm2044, 1, 0
        %v2093 = vsel %vm2045, 1, 0
        %v2094 = vsel %vm2046, 1, 0
        %v2095 = vsel %vm2047, 1, 0
        %v2096 = vsel %vm2048, 1, 0
        %v2097 = vsel %vm2049, 1, 0
        %v2098 = vsel %vm2050, 1, 0
        %v2099 = vsel %vm2051, 1, 0
        %v2100 = vsel %vm2052, 1, 0
        %v2101 = vsel %vm2053, 1, 0
        %v2102 = vsel %vm2054, 1, 0
        %v2103 = vsel %vm2055, 1, 0
        %v2104 = vsel %vm2056, 1, 0
        %v2105 = vsel %vm2057, 1, 0
        %v2106 = vsel %vm2058, 1, 0
        %v2107 = vadd.s32 %v2059, %v2060
        %v2108 = vadd.s32 %v2107, %v2061
        %v2109 = vand.u32 %v2108, 65535
        %v2110 = vshrl.u32 %v2108, 16
        %v2111 = vcvt.s32.f32 %v2109
        %v2112 = vcvt.s32.f32 %v2110
        %2113 = vadd.xlane.f32.xlu0 %v2111
        %v2114 = vpop.xlane.xlu0 %2113
        %2115 = vadd.xlane.f32.xlu0 %v2112
        %v2116 = vpop.xlane.xlu0 %2115
        %v2117 = vcvt.f32.s32 %v2114
        %v2118 = vcvt.f32.s32 %v2116
        %v2119 = vshll.u32 %v2118, 16
        %v2120 = vadd.s32 %v2119, %v2117
        %v2121 = vadd.s32 %v2062, %v2063
        %v2122 = vadd.s32 %v2121, %v2064
        %v2123 = vand.u32 %v2122, 65535
        %v2124 = vshrl.u32 %v2122, 16
        %v2125 = vcvt.s32.f32 %v2123
        %v2126 = vcvt.s32.f32 %v2124
        %2127 = vadd.xlane.f32.xlu0 %v2125
        %v2128 = vpop.xlane.xlu0 %2127
        %2129 = vadd.xlane.f32.xlu0 %v2126
        %v2130 = vpop.xlane.xlu0 %2129
        %v2131 = vcvt.f32.s32 %v2128
        %v2132 = vcvt.f32.s32 %v2130
        %v2133 = vshll.u32 %v2132, 16
        %v2134 = vadd.s32 %v2133, %v2131
        %v2135 = vadd.s32 %v2065, %v2066
        %v2136 = vadd.s32 %v2135, %v2067
        %v2137 = vand.u32 %v2136, 65535
        %v2138 = vshrl.u32 %v2136, 16
        %v2139 = vcvt.s32.f32 %v2137
        %v2140 = vcvt.s32.f32 %v2138
        %2141 = vadd.xlane.f32.xlu0 %v2139
        %v2142 = vpop.xlane.xlu0 %2141
        %2143 = vadd.xlane.f32.xlu0 %v2140
        %v2144 = vpop.xlane.xlu0 %2143
        %v2145 = vcvt.f32.s32 %v2142
        %v2146 = vcvt.f32.s32 %v2144
        %v2147 = vshll.u32 %v2146, 16
        %v2148 = vadd.s32 %v2147, %v2145
        %v2149 = vadd.s32 %v2068, %v2069
        %v2150 = vadd.s32 %v2149, %v2070
        %v2151 = vand.u32 %v2150, 65535
        %v2152 = vshrl.u32 %v2150, 16
        %v2153 = vcvt.s32.f32 %v2151
        %v2154 = vcvt.s32.f32 %v2152
        %2155 = vadd.xlane.f32.xlu0 %v2153
        %v2156 = vpop.xlane.xlu0 %2155
        %2157 = vadd.xlane.f32.xlu0 %v2154
        %v2158 = vpop.xlane.xlu0 %2157
        %v2159 = vcvt.f32.s32 %v2156
        %v2160 = vcvt.f32.s32 %v2158
        %v2161 = vshll.u32 %v2160, 16
        %v2162 = vadd.s32 %v2161, %v2159
        %v2163 = vadd.s32 %v2071, %v2072
        %v2164 = vadd.s32 %v2163, %v2073
        %v2165 = vand.u32 %v2164, 65535
        %v2166 = vshrl.u32 %v2164, 16
        %v2167 = vcvt.s32.f32 %v2165
        %v2168 = vcvt.s32.f32 %v2166
        %2169 = vadd.xlane.f32.xlu0 %v2167
        %v2170 = vpop.xlane.xlu0 %2169
        %2171 = vadd.xlane.f32.xlu0 %v2168
        %v2172 = vpop.xlane.xlu0 %2171
        %v2173 = vcvt.f32.s32 %v2170
        %v2174 = vcvt.f32.s32 %v2172
        %v2175 = vshll.u32 %v2174, 16
        %v2176 = vadd.s32 %v2175, %v2173
        %v2177 = vadd.s32 %v2074, %v2075
        %v2178 = vadd.s32 %v2177, %v2076
        %v2179 = vand.u32 %v2178, 65535
        %v2180 = vshrl.u32 %v2178, 16
        %v2181 = vcvt.s32.f32 %v2179
        %v2182 = vcvt.s32.f32 %v2180
        %2183 = vadd.xlane.f32.xlu0 %v2181
        %v2184 = vpop.xlane.xlu0 %2183
        %2185 = vadd.xlane.f32.xlu0 %v2182
        %v2186 = vpop.xlane.xlu0 %2185
        %v2187 = vcvt.f32.s32 %v2184
        %v2188 = vcvt.f32.s32 %v2186
        %v2189 = vshll.u32 %v2188, 16
        %v2190 = vadd.s32 %v2189, %v2187
        %v2191 = vadd.s32 %v2077, %v2078
        %v2192 = vadd.s32 %v2191, %v2079
        %v2193 = vand.u32 %v2192, 65535
        %v2194 = vshrl.u32 %v2192, 16
        %v2195 = vcvt.s32.f32 %v2193
        %v2196 = vcvt.s32.f32 %v2194
        %2197 = vadd.xlane.f32.xlu0 %v2195
        %v2198 = vpop.xlane.xlu0 %2197
        %2199 = vadd.xlane.f32.xlu0 %v2196
        %v2200 = vpop.xlane.xlu0 %2199
        %v2201 = vcvt.f32.s32 %v2198
        %v2202 = vcvt.f32.s32 %v2200
        %v2203 = vshll.u32 %v2202, 16
        %v2204 = vadd.s32 %v2203, %v2201
        %v2205 = vadd.s32 %v2080, %v2081
        %v2206 = vadd.s32 %v2205, %v2082
        %v2207 = vand.u32 %v2206, 65535
        %v2208 = vshrl.u32 %v2206, 16
        %v2209 = vcvt.s32.f32 %v2207
        %v2210 = vcvt.s32.f32 %v2208
        %2211 = vadd.xlane.f32.xlu0 %v2209
        %v2212 = vpop.xlane.xlu0 %2211
        %2213 = vadd.xlane.f32.xlu0 %v2210
        %v2214 = vpop.xlane.xlu0 %2213
        %v2215 = vcvt.f32.s32 %v2212
        %v2216 = vcvt.f32.s32 %v2214
        %v2217 = vshll.u32 %v2216, 16
        %v2218 = vadd.s32 %v2217, %v2215
        %v2219 = vadd.s32 %v2083, %v2084
        %v2220 = vadd.s32 %v2219, %v2085
        %v2221 = vand.u32 %v2220, 65535
        %v2222 = vshrl.u32 %v2220, 16
        %v2223 = vcvt.s32.f32 %v2221
        %v2224 = vcvt.s32.f32 %v2222
        %2225 = vadd.xlane.f32.xlu0 %v2223
        %v2226 = vpop.xlane.xlu0 %2225
        %2227 = vadd.xlane.f32.xlu0 %v2224
        %v2228 = vpop.xlane.xlu0 %2227
        %v2229 = vcvt.f32.s32 %v2226
        %v2230 = vcvt.f32.s32 %v2228
        %v2231 = vshll.u32 %v2230, 16
        %v2232 = vadd.s32 %v2231, %v2229
        %v2233 = vadd.s32 %v2086, %v2087
        %v2234 = vadd.s32 %v2233, %v2088
        %v2235 = vand.u32 %v2234, 65535
        %v2236 = vshrl.u32 %v2234, 16
        %v2237 = vcvt.s32.f32 %v2235
        %v2238 = vcvt.s32.f32 %v2236
        %2239 = vadd.xlane.f32.xlu0 %v2237
        %v2240 = vpop.xlane.xlu0 %2239
        %2241 = vadd.xlane.f32.xlu0 %v2238
        %v2242 = vpop.xlane.xlu0 %2241
        %v2243 = vcvt.f32.s32 %v2240
        %v2244 = vcvt.f32.s32 %v2242
        %v2245 = vshll.u32 %v2244, 16
        %v2246 = vadd.s32 %v2245, %v2243
        %v2247 = vadd.s32 %v2089, %v2090
        %v2248 = vadd.s32 %v2247, %v2091
        %v2249 = vand.u32 %v2248, 65535
        %v2250 = vshrl.u32 %v2248, 16
        %v2251 = vcvt.s32.f32 %v2249
        %v2252 = vcvt.s32.f32 %v2250
        %2253 = vadd.xlane.f32.xlu0 %v2251
        %v2254 = vpop.xlane.xlu0 %2253
        %2255 = vadd.xlane.f32.xlu0 %v2252
        %v2256 = vpop.xlane.xlu0 %2255
        %v2257 = vcvt.f32.s32 %v2254
        %v2258 = vcvt.f32.s32 %v2256
        %v2259 = vshll.u32 %v2258, 16
        %v2260 = vadd.s32 %v2259, %v2257
        %v2261 = vadd.s32 %v2092, %v2093
        %v2262 = vadd.s32 %v2261, %v2094
        %v2263 = vand.u32 %v2262, 65535
        %v2264 = vshrl.u32 %v2262, 16
        %v2265 = vcvt.s32.f32 %v2263
        %v2266 = vcvt.s32.f32 %v2264
        %2267 = vadd.xlane.f32.xlu0 %v2265
        %v2268 = vpop.xlane.xlu0 %2267
        %2269 = vadd.xlane.f32.xlu0 %v2266
        %v2270 = vpop.xlane.xlu0 %2269
        %v2271 = vcvt.f32.s32 %v2268
        %v2272 = vcvt.f32.s32 %v2270
        %v2273 = vshll.u32 %v2272, 16
        %v2274 = vadd.s32 %v2273, %v2271
        %v2275 = vadd.s32 %v2095, %v2096
        %v2276 = vadd.s32 %v2275, %v2097
        %v2277 = vand.u32 %v2276, 65535
        %v2278 = vshrl.u32 %v2276, 16
        %v2279 = vcvt.s32.f32 %v2277
        %v2280 = vcvt.s32.f32 %v2278
        %2281 = vadd.xlane.f32.xlu0 %v2279
        %v2282 = vpop.xlane.xlu0 %2281
        %2283 = vadd.xlane.f32.xlu0 %v2280
        %v2284 = vpop.xlane.xlu0 %2283
        %v2285 = vcvt.f32.s32 %v2282
        %v2286 = vcvt.f32.s32 %v2284
        %v2287 = vshll.u32 %v2286, 16
        %v2288 = vadd.s32 %v2287, %v2285
        %v2289 = vadd.s32 %v2098, %v2099
        %v2290 = vadd.s32 %v2289, %v2100
        %v2291 = vand.u32 %v2290, 65535
        %v2292 = vshrl.u32 %v2290, 16
        %v2293 = vcvt.s32.f32 %v2291
        %v2294 = vcvt.s32.f32 %v2292
        %2295 = vadd.xlane.f32.xlu0 %v2293
        %v2296 = vpop.xlane.xlu0 %2295
        %2297 = vadd.xlane.f32.xlu0 %v2294
        %v2298 = vpop.xlane.xlu0 %2297
        %v2299 = vcvt.f32.s32 %v2296
        %v2300 = vcvt.f32.s32 %v2298
        %v2301 = vshll.u32 %v2300, 16
        %v2302 = vadd.s32 %v2301, %v2299
        %v2303 = vadd.s32 %v2101, %v2102
        %v2304 = vadd.s32 %v2303, %v2103
        %v2305 = vand.u32 %v2304, 65535
        %v2306 = vshrl.u32 %v2304, 16
        %v2307 = vcvt.s32.f32 %v2305
        %v2308 = vcvt.s32.f32 %v2306
        %2309 = vadd.xlane.f32.xlu0 %v2307
        %v2310 = vpop.xlane.xlu0 %2309
        %2311 = vadd.xlane.f32.xlu0 %v2308
        %v2312 = vpop.xlane.xlu0 %2311
        %v2313 = vcvt.f32.s32 %v2310
        %v2314 = vcvt.f32.s32 %v2312
        %v2315 = vshll.u32 %v2314, 16
        %v2316 = vadd.s32 %v2315, %v2313
        %v2317 = vadd.s32 %v2104, %v2105
        %v2318 = vadd.s32 %v2317, %v2106
        %v2319 = vand.u32 %v2318, 65535
        %v2320 = vshrl.u32 %v2318, 16
        %v2321 = vcvt.s32.f32 %v2319
        %v2322 = vcvt.s32.f32 %v2320
        %2323 = vadd.xlane.f32.xlu0 %v2321
        %v2324 = vpop.xlane.xlu0 %2323
        %2325 = vadd.xlane.f32.xlu0 %v2322
        %v2326 = vpop.xlane.xlu0 %2325
        %v2327 = vcvt.f32.s32 %v2324
        %v2328 = vcvt.f32.s32 %v2326
        %v2329 = vshll.u32 %v2328, 16
        %v2330 = vadd.s32 %v2329, %v2327
        %vm2331 = vcmp.ge.s32.totalorder %v609, %v1803
        %vm2332 = vcmp.ge.s32.totalorder %v609, %v1804
        %vm2333 = vcmp.ge.s32.totalorder %v609, %v1805
        %vm2334 = vcmp.ge.s32.totalorder %v609, %v1806
        %vm2335 = vcmp.ge.s32.totalorder %v609, %v1807
        %vm2336 = vcmp.ge.s32.totalorder %v609, %v1808
        %vm2337 = vcmp.ge.s32.totalorder %v609, %v1809
        %vm2338 = vcmp.ge.s32.totalorder %v609, %v1810
        %vm2339 = vcmp.ge.s32.totalorder %v609, %v1811
        %vm2340 = vcmp.ge.s32.totalorder %v609, %v1812
        %vm2341 = vcmp.ge.s32.totalorder %v609, %v1813
        %vm2342 = vcmp.ge.s32.totalorder %v609, %v1814
        %vm2343 = vcmp.ge.s32.totalorder %v609, %v1815
        %vm2344 = vcmp.ge.s32.totalorder %v609, %v1816
        %vm2345 = vcmp.ge.s32.totalorder %v609, %v1817
        %vm2346 = vcmp.ge.s32.totalorder %v609, %v1818
        %v2347 = vadd.s32 %v1803, %v2120
        %v2348 = vadd.s32 %v1804, %v2134
        %v2349 = vadd.s32 %v1805, %v2148
        %v2350 = vadd.s32 %v1806, %v2162
        %v2351 = vadd.s32 %v1807, %v2176
        %v2352 = vadd.s32 %v1808, %v2190
        %v2353 = vadd.s32 %v1809, %v2204
        %v2354 = vadd.s32 %v1810, %v2218
        %v2355 = vadd.s32 %v1811, %v2232
        %v2356 = vadd.s32 %v1812, %v2246
        %v2357 = vadd.s32 %v1813, %v2260
        %v2358 = vadd.s32 %v1814, %v2274
        %v2359 = vadd.s32 %v1815, %v2288
        %v2360 = vadd.s32 %v1816, %v2302
        %v2361 = vadd.s32 %v1817, %v2316
        %v2362 = vadd.s32 %v1818, %v2330
        %vm2363 = vcmp.lt.s32.totalorder %v2347, 6
        %v2364 = vsel %vm2363, %v2347, 6
        %vm2365 = vcmp.lt.s32.totalorder %v2348, 6
        %v2366 = vsel %vm2365, %v2348, 6
        %vm2367 = vcmp.lt.s32.totalorder %v2349, 6
        %v2368 = vsel %vm2367, %v2349, 6
        %vm2369 = vcmp.lt.s32.totalorder %v2350, 6
        %v2370 = vsel %vm2369, %v2350, 6
        %vm2371 = vcmp.lt.s32.totalorder %v2351, 6
        %v2372 = vsel %vm2371, %v2351, 6
        %vm2373 = vcmp.lt.s32.totalorder %v2352, 6
        %v2374 = vsel %vm2373, %v2352, 6
        %vm2375 = vcmp.lt.s32.totalorder %v2353, 6
        %v2376 = vsel %vm2375, %v2353, 6
        %vm2377 = vcmp.lt.s32.totalorder %v2354, 6
        %v2378 = vsel %vm2377, %v2354, 6
        %vm2379 = vcmp.lt.s32.totalorder %v2355, 6
        %v2380 = vsel %vm2379, %v2355, 6
        %vm2381 = vcmp.lt.s32.totalorder %v2356, 6
        %v2382 = vsel %vm2381, %v2356, 6
        %vm2383 = vcmp.lt.s32.totalorder %v2357, 6
        %v2384 = vsel %vm2383, %v2357, 6
        %vm2385 = vcmp.lt.s32.totalorder %v2358, 6
        %v2386 = vsel %vm2385, %v2358, 6
        %vm2387 = vcmp.lt.s32.totalorder %v2359, 6
        %v2388 = vsel %vm2387, %v2359, 6
        %vm2389 = vcmp.lt.s32.totalorder %v2360, 6
        %v2390 = vsel %vm2389, %v2360, 6
        %vm2391 = vcmp.lt.s32.totalorder %v2361, 6
        %v2392 = vsel %vm2391, %v2361, 6
        %vm2393 = vcmp.lt.s32.totalorder %v2362, 6
        %v2394 = vsel %vm2393, %v2362, 6
        %vm2395 = vcmp.lt.s32.totalorder %v609, %v2364
        %vm2396 = vcmp.lt.s32.totalorder %v609, %v2366
        %vm2397 = vcmp.lt.s32.totalorder %v609, %v2368
        %vm2398 = vcmp.lt.s32.totalorder %v609, %v2370
        %vm2399 = vcmp.lt.s32.totalorder %v609, %v2372
        %vm2400 = vcmp.lt.s32.totalorder %v609, %v2374
        %vm2401 = vcmp.lt.s32.totalorder %v609, %v2376
        %vm2402 = vcmp.lt.s32.totalorder %v609, %v2378
        %vm2403 = vcmp.lt.s32.totalorder %v609, %v2380
        %vm2404 = vcmp.lt.s32.totalorder %v609, %v2382
        %vm2405 = vcmp.lt.s32.totalorder %v609, %v2384
        %vm2406 = vcmp.lt.s32.totalorder %v609, %v2386
        %vm2407 = vcmp.lt.s32.totalorder %v609, %v2388
        %vm2408 = vcmp.lt.s32.totalorder %v609, %v2390
        %vm2409 = vcmp.lt.s32.totalorder %v609, %v2392
        %vm2410 = vcmp.lt.s32.totalorder %v609, %v2394
        %vm2411 = vmand %vm2331, %vm2395
        %vm2412 = vmand %vm2332, %vm2396
        %vm2413 = vmand %vm2333, %vm2397
        %vm2414 = vmand %vm2334, %vm2398
        %vm2415 = vmand %vm2335, %vm2399
        %vm2416 = vmand %vm2336, %vm2400
        %vm2417 = vmand %vm2337, %vm2401
        %vm2418 = vmand %vm2338, %vm2402
        %vm2419 = vmand %vm2339, %vm2403
        %vm2420 = vmand %vm2340, %vm2404
        %vm2421 = vmand %vm2341, %vm2405
        %vm2422 = vmand %vm2342, %vm2406
        %vm2423 = vmand %vm2343, %vm2407
        %vm2424 = vmand %vm2344, %vm2408
        %vm2425 = vmand %vm2345, %vm2409
        %vm2426 = vmand %vm2346, %vm2410
        %v2427 = vsel %vm2411, %v1950, %v1883
        %v2428 = vsel %vm2412, %v1954, %v1884
        %v2429 = vsel %vm2413, %v1958, %v1885
        %v2430 = vsel %vm2414, %v1962, %v1886
        %v2431 = vsel %vm2415, %v1966, %v1887
        %v2432 = vsel %vm2416, %v1970, %v1888
        %v2433 = vsel %vm2417, %v1974, %v1889
        %v2434 = vsel %vm2418, %v1978, %v1890
        %v2435 = vsel %vm2419, %v1982, %v1891
        %v2436 = vsel %vm2420, %v1986, %v1892
        %v2437 = vsel %vm2421, %v1990, %v1893
        %v2438 = vsel %vm2422, %v1994, %v1894
        %v2439 = vsel %vm2423, %v1998, %v1895
        %v2440 = vsel %vm2424, %v2002, %v1896
        %v2441 = vsel %vm2425, %v2006, %v1897
        %v2442 = vsel %vm2426, %v2010, %v1898
        %v2443 = vsel %vm2011, -inf, %v1899
        %v2444 = vsel %vm2012, -inf, %v1900
        %v2445 = vsel %vm2013, -inf, %v1901
        %v2446 = vsel %vm2014, -inf, %v1902
        %v2447 = vsel %vm2015, -inf, %v1903
        %v2448 = vsel %vm2016, -inf, %v1904
        %v2449 = vsel %vm2017, -inf, %v1905
        %v2450 = vsel %vm2018, -inf, %v1906
        %v2451 = vsel %vm2019, -inf, %v1907
        %v2452 = vsel %vm2020, -inf, %v1908
        %v2453 = vsel %vm2021, -inf, %v1909
        %v2454 = vsel %vm2022, -inf, %v1910
        %v2455 = vsel %vm2023, -inf, %v1911
        %v2456 = vsel %vm2024, -inf, %v1912
        %v2457 = vsel %vm2025, -inf, %v1913
        %v2458 = vsel %vm2026, -inf, %v1914
        %v2459 = vsel %vm2027, -inf, %v1915
        %v2460 = vsel %vm2028, -inf, %v1916
        %v2461 = vsel %vm2029, -inf, %v1917
        %v2462 = vsel %vm2030, -inf, %v1918
        %v2463 = vsel %vm2031, -inf, %v1919
        %v2464 = vsel %vm2032, -inf, %v1920
        %v2465 = vsel %vm2033, -inf, %v1921
        %v2466 = vsel %vm2034, -inf, %v1922
        %v2467 = vsel %vm2035, -inf, %v1923
        %v2468 = vsel %vm2036, -inf, %v1924
        %v2469 = vsel %vm2037, -inf, %v1925
        %v2470 = vsel %vm2038, -inf, %v1926
        %v2471 = vsel %vm2039, -inf, %v1927
        %v2472 = vsel %vm2040, -inf, %v1928
        %v2473 = vsel %vm2041, -inf, %v1929
        %v2474 = vsel %vm2042, -inf, %v1930
        %v2475 = vsel %vm2043, -inf, %v1931
        %v2476 = vsel %vm2044, -inf, %v1932
        %v2477 = vsel %vm2045, -inf, %v1933
        %v2478 = vsel %vm2046, -inf, %v1934
        %v2479 = vsel %vm2047, -inf, %v1935
        %v2480 = vsel %vm2048, -inf, %v1936
        %v2481 = vsel %vm2049, -inf, %v1937
        %v2482 = vsel %vm2050, -inf, %v1938
        %v2483 = vsel %vm2051, -inf, %v1939
        %v2484 = vsel %vm2052, -inf, %v1940
        %v2485 = vsel %vm2053, -inf, %v1941
        %v2486 = vsel %vm2054, -inf, %v1942
        %v2487 = vsel %vm2055, -inf, %v1943
        %v2488 = vsel %vm2056, -inf, %v1944
        %v2489 = vsel %vm2057, -inf, %v1945
        %v2490 = vsel %vm2058, -inf, %v1946
        %v2491 = vmax.f32 %v2443, %v2444
        %v2492 = vmax.f32 %v2491, %v2445
        %2493 = vmax.xlane.f32.xlu0 %v2492
        %v2494 = vpop.xlane.xlu0 %2493
        %v2495 = vmax.f32 %v2446, %v2447
        %v2496 = vmax.f32 %v2495, %v2448
        %2497 = vmax.xlane.f32.xlu0 %v2496
        %v2498 = vpop.xlane.xlu0 %2497
        %v2499 = vmax.f32 %v2449, %v2450
        %v2500 = vmax.f32 %v2499, %v2451
        %2501 = vmax.xlane.f32.xlu0 %v2500
        %v2502 = vpop.xlane.xlu0 %2501
        %v2503 = vmax.f32 %v2452, %v2453
        %v2504 = vmax.f32 %v2503, %v2454
        %2505 = vmax.xlane.f32.xlu0 %v2504
        %v2506 = vpop.xlane.xlu0 %2505
        %v2507 = vmax.f32 %v2455, %v2456
        %v2508 = vmax.f32 %v2507, %v2457
        %2509 = vmax.xlane.f32.xlu0 %v2508
        %v2510 = vpop.xlane.xlu0 %2509
        %v2511 = vmax.f32 %v2458, %v2459
        %v2512 = vmax.f32 %v2511, %v2460
        %2513 = vmax.xlane.f32.xlu0 %v2512
        %v2514 = vpop.xlane.xlu0 %2513
        %v2515 = vmax.f32 %v2461, %v2462
        %v2516 = vmax.f32 %v2515, %v2463
        %2517 = vmax.xlane.f32.xlu0 %v2516
        %v2518 = vpop.xlane.xlu0 %2517
        %v2519 = vmax.f32 %v2464, %v2465
        %v2520 = vmax.f32 %v2519, %v2466
        %2521 = vmax.xlane.f32.xlu0 %v2520
        %v2522 = vpop.xlane.xlu0 %2521
        %v2523 = vmax.f32 %v2467, %v2468
        %v2524 = vmax.f32 %v2523, %v2469
        %2525 = vmax.xlane.f32.xlu0 %v2524
        %v2526 = vpop.xlane.xlu0 %2525
        %v2527 = vmax.f32 %v2470, %v2471
        %v2528 = vmax.f32 %v2527, %v2472
        %2529 = vmax.xlane.f32.xlu0 %v2528
        %v2530 = vpop.xlane.xlu0 %2529
        %v2531 = vmax.f32 %v2473, %v2474
        %v2532 = vmax.f32 %v2531, %v2475
        %2533 = vmax.xlane.f32.xlu0 %v2532
        %v2534 = vpop.xlane.xlu0 %2533
        %v2535 = vmax.f32 %v2476, %v2477
        %v2536 = vmax.f32 %v2535, %v2478
        %2537 = vmax.xlane.f32.xlu0 %v2536
        %v2538 = vpop.xlane.xlu0 %2537
        %v2539 = vmax.f32 %v2479, %v2480
        %v2540 = vmax.f32 %v2539, %v2481
        %2541 = vmax.xlane.f32.xlu0 %v2540
        %v2542 = vpop.xlane.xlu0 %2541
        %v2543 = vmax.f32 %v2482, %v2483
        %v2544 = vmax.f32 %v2543, %v2484
        %2545 = vmax.xlane.f32.xlu0 %v2544
        %v2546 = vpop.xlane.xlu0 %2545
        %v2547 = vmax.f32 %v2485, %v2486
        %v2548 = vmax.f32 %v2547, %v2487
        %2549 = vmax.xlane.f32.xlu0 %v2548
        %v2550 = vpop.xlane.xlu0 %2549
        %v2551 = vmax.f32 %v2488, %v2489
        %v2552 = vmax.f32 %v2551, %v2490
        %2553 = vmax.xlane.f32.xlu0 %v2552
        %v2554 = vpop.xlane.xlu0 %2553
        %vm2555 = vcmp.eq.f32.partialorder %v2443, %v2494
        %vm2556 = vcmp.eq.f32.partialorder %v2444, %v2494
        %vm2557 = vcmp.eq.f32.partialorder %v2445, %v2494
        %vm2558 = vcmp.eq.f32.partialorder %v2446, %v2498
        %vm2559 = vcmp.eq.f32.partialorder %v2447, %v2498
        %vm2560 = vcmp.eq.f32.partialorder %v2448, %v2498
        %vm2561 = vcmp.eq.f32.partialorder %v2449, %v2502
        %vm2562 = vcmp.eq.f32.partialorder %v2450, %v2502
        %vm2563 = vcmp.eq.f32.partialorder %v2451, %v2502
        %vm2564 = vcmp.eq.f32.partialorder %v2452, %v2506
        %vm2565 = vcmp.eq.f32.partialorder %v2453, %v2506
        %vm2566 = vcmp.eq.f32.partialorder %v2454, %v2506
        %vm2567 = vcmp.eq.f32.partialorder %v2455, %v2510
        %vm2568 = vcmp.eq.f32.partialorder %v2456, %v2510
        %vm2569 = vcmp.eq.f32.partialorder %v2457, %v2510
        %vm2570 = vcmp.eq.f32.partialorder %v2458, %v2514
        %vm2571 = vcmp.eq.f32.partialorder %v2459, %v2514
        %vm2572 = vcmp.eq.f32.partialorder %v2460, %v2514
        %vm2573 = vcmp.eq.f32.partialorder %v2461, %v2518
        %vm2574 = vcmp.eq.f32.partialorder %v2462, %v2518
        %vm2575 = vcmp.eq.f32.partialorder %v2463, %v2518
        %vm2576 = vcmp.eq.f32.partialorder %v2464, %v2522
        %vm2577 = vcmp.eq.f32.partialorder %v2465, %v2522
        %vm2578 = vcmp.eq.f32.partialorder %v2466, %v2522
        %vm2579 = vcmp.eq.f32.partialorder %v2467, %v2526
        %vm2580 = vcmp.eq.f32.partialorder %v2468, %v2526
        %vm2581 = vcmp.eq.f32.partialorder %v2469, %v2526
        %vm2582 = vcmp.eq.f32.partialorder %v2470, %v2530
        %vm2583 = vcmp.eq.f32.partialorder %v2471, %v2530
        %vm2584 = vcmp.eq.f32.partialorder %v2472, %v2530
        %vm2585 = vcmp.eq.f32.partialorder %v2473, %v2534
        %vm2586 = vcmp.eq.f32.partialorder %v2474, %v2534
        %vm2587 = vcmp.eq.f32.partialorder %v2475, %v2534
        %vm2588 = vcmp.eq.f32.partialorder %v2476, %v2538
        %vm2589 = vcmp.eq.f32.partialorder %v2477, %v2538
        %vm2590 = vcmp.eq.f32.partialorder %v2478, %v2538
        %vm2591 = vcmp.eq.f32.partialorder %v2479, %v2542
        %vm2592 = vcmp.eq.f32.partialorder %v2480, %v2542
        %vm2593 = vcmp.eq.f32.partialorder %v2481, %v2542
        %vm2594 = vcmp.eq.f32.partialorder %v2482, %v2546
        %vm2595 = vcmp.eq.f32.partialorder %v2483, %v2546
        %vm2596 = vcmp.eq.f32.partialorder %v2484, %v2546
        %vm2597 = vcmp.eq.f32.partialorder %v2485, %v2550
        %vm2598 = vcmp.eq.f32.partialorder %v2486, %v2550
        %vm2599 = vcmp.eq.f32.partialorder %v2487, %v2550
        %vm2600 = vcmp.eq.f32.partialorder %v2488, %v2554
        %vm2601 = vcmp.eq.f32.partialorder %v2489, %v2554
        %vm2602 = vcmp.eq.f32.partialorder %v2490, %v2554
        %v2603 = vsel %vm2555, 1, 0
        %v2604 = vsel %vm2556, 1, 0
        %v2605 = vsel %vm2557, 1, 0
        %v2606 = vsel %vm2558, 1, 0
        %v2607 = vsel %vm2559, 1, 0
        %v2608 = vsel %vm2560, 1, 0
        %v2609 = vsel %vm2561, 1, 0
        %v2610 = vsel %vm2562, 1, 0
        %v2611 = vsel %vm2563, 1, 0
        %v2612 = vsel %vm2564, 1, 0
        %v2613 = vsel %vm2565, 1, 0
        %v2614 = vsel %vm2566, 1, 0
        %v2615 = vsel %vm2567, 1, 0
        %v2616 = vsel %vm2568, 1, 0
        %v2617 = vsel %vm2569, 1, 0
        %v2618 = vsel %vm2570, 1, 0
        %v2619 = vsel %vm2571, 1, 0
        %v2620 = vsel %vm2572, 1, 0
        %v2621 = vsel %vm2573, 1, 0
        %v2622 = vsel %vm2574, 1, 0
        %v2623 = vsel %vm2575, 1, 0
        %v2624 = vsel %vm2576, 1, 0
        %v2625 = vsel %vm2577, 1, 0
        %v2626 = vsel %vm2578, 1, 0
        %v2627 = vsel %vm2579, 1, 0
        %v2628 = vsel %vm2580, 1, 0
        %v2629 = vsel %vm2581, 1, 0
        %v2630 = vsel %vm2582, 1, 0
        %v2631 = vsel %vm2583, 1, 0
        %v2632 = vsel %vm2584, 1, 0
        %v2633 = vsel %vm2585, 1, 0
        %v2634 = vsel %vm2586, 1, 0
        %v2635 = vsel %vm2587, 1, 0
        %v2636 = vsel %vm2588, 1, 0
        %v2637 = vsel %vm2589, 1, 0
        %v2638 = vsel %vm2590, 1, 0
        %v2639 = vsel %vm2591, 1, 0
        %v2640 = vsel %vm2592, 1, 0
        %v2641 = vsel %vm2593, 1, 0
        %v2642 = vsel %vm2594, 1, 0
        %v2643 = vsel %vm2595, 1, 0
        %v2644 = vsel %vm2596, 1, 0
        %v2645 = vsel %vm2597, 1, 0
        %v2646 = vsel %vm2598, 1, 0
        %v2647 = vsel %vm2599, 1, 0
        %v2648 = vsel %vm2600, 1, 0
        %v2649 = vsel %vm2601, 1, 0
        %v2650 = vsel %vm2602, 1, 0
        %v2651 = vadd.s32 %v2603, %v2604
        %v2652 = vadd.s32 %v2651, %v2605
        %v2653 = vand.u32 %v2652, 65535
        %v2654 = vshrl.u32 %v2652, 16
        %v2655 = vcvt.s32.f32 %v2653
        %v2656 = vcvt.s32.f32 %v2654
        %2657 = vadd.xlane.f32.xlu0 %v2655
        %v2658 = vpop.xlane.xlu0 %2657
        %2659 = vadd.xlane.f32.xlu0 %v2656
        %v2660 = vpop.xlane.xlu0 %2659
        %v2661 = vcvt.f32.s32 %v2658
        %v2662 = vcvt.f32.s32 %v2660
        %v2663 = vshll.u32 %v2662, 16
        %v2664 = vadd.s32 %v2663, %v2661
        %v2665 = vadd.s32 %v2606, %v2607
        %v2666 = vadd.s32 %v2665, %v2608
        %v2667 = vand.u32 %v2666, 65535
        %v2668 = vshrl.u32 %v2666, 16
        %v2669 = vcvt.s32.f32 %v2667
        %v2670 = vcvt.s32.f32 %v2668
        %2671 = vadd.xlane.f32.xlu0 %v2669
        %v2672 = vpop.xlane.xlu0 %2671
        %2673 = vadd.xlane.f32.xlu0 %v2670
        %v2674 = vpop.xlane.xlu0 %2673
        %v2675 = vcvt.f32.s32 %v2672
        %v2676 = vcvt.f32.s32 %v2674
        %v2677 = vshll.u32 %v2676, 16
        %v2678 = vadd.s32 %v2677, %v2675
        %v2679 = vadd.s32 %v2609, %v2610
        %v2680 = vadd.s32 %v2679, %v2611
        %v2681 = vand.u32 %v2680, 65535
        %v2682 = vshrl.u32 %v2680, 16
        %v2683 = vcvt.s32.f32 %v2681
        %v2684 = vcvt.s32.f32 %v2682
        %2685 = vadd.xlane.f32.xlu0 %v2683
        %v2686 = vpop.xlane.xlu0 %2685
        %2687 = vadd.xlane.f32.xlu0 %v2684
        %v2688 = vpop.xlane.xlu0 %2687
        %v2689 = vcvt.f32.s32 %v2686
        %v2690 = vcvt.f32.s32 %v2688
        %v2691 = vshll.u32 %v2690, 16
        %v2692 = vadd.s32 %v2691, %v2689
        %v2693 = vadd.s32 %v2612, %v2613
        %v2694 = vadd.s32 %v2693, %v2614
        %v2695 = vand.u32 %v2694, 65535
        %v2696 = vshrl.u32 %v2694, 16
        %v2697 = vcvt.s32.f32 %v2695
        %v2698 = vcvt.s32.f32 %v2696
        %2699 = vadd.xlane.f32.xlu0 %v2697
        %v2700 = vpop.xlane.xlu0 %2699
        %2701 = vadd.xlane.f32.xlu0 %v2698
        %v2702 = vpop.xlane.xlu0 %2701
        %v2703 = vcvt.f32.s32 %v2700
        %v2704 = vcvt.f32.s32 %v2702
        %v2705 = vshll.u32 %v2704, 16
        %v2706 = vadd.s32 %v2705, %v2703
        %v2707 = vadd.s32 %v2615, %v2616
        %v2708 = vadd.s32 %v2707, %v2617
        %v2709 = vand.u32 %v2708, 65535
        %v2710 = vshrl.u32 %v2708, 16
        %v2711 = vcvt.s32.f32 %v2709
        %v2712 = vcvt.s32.f32 %v2710
        %2713 = vadd.xlane.f32.xlu0 %v2711
        %v2714 = vpop.xlane.xlu0 %2713
        %2715 = vadd.xlane.f32.xlu0 %v2712
        %v2716 = vpop.xlane.xlu0 %2715
        %v2717 = vcvt.f32.s32 %v2714
        %v2718 = vcvt.f32.s32 %v2716
        %v2719 = vshll.u32 %v2718, 16
        %v2720 = vadd.s32 %v2719, %v2717
        %v2721 = vadd.s32 %v2618, %v2619
        %v2722 = vadd.s32 %v2721, %v2620
        %v2723 = vand.u32 %v2722, 65535
        %v2724 = vshrl.u32 %v2722, 16
        %v2725 = vcvt.s32.f32 %v2723
        %v2726 = vcvt.s32.f32 %v2724
        %2727 = vadd.xlane.f32.xlu0 %v2725
        %v2728 = vpop.xlane.xlu0 %2727
        %2729 = vadd.xlane.f32.xlu0 %v2726
        %v2730 = vpop.xlane.xlu0 %2729
        %v2731 = vcvt.f32.s32 %v2728
        %v2732 = vcvt.f32.s32 %v2730
        %v2733 = vshll.u32 %v2732, 16
        %v2734 = vadd.s32 %v2733, %v2731
        %v2735 = vadd.s32 %v2621, %v2622
        %v2736 = vadd.s32 %v2735, %v2623
        %v2737 = vand.u32 %v2736, 65535
        %v2738 = vshrl.u32 %v2736, 16
        %v2739 = vcvt.s32.f32 %v2737
        %v2740 = vcvt.s32.f32 %v2738
        %2741 = vadd.xlane.f32.xlu0 %v2739
        %v2742 = vpop.xlane.xlu0 %2741
        %2743 = vadd.xlane.f32.xlu0 %v2740
        %v2744 = vpop.xlane.xlu0 %2743
        %v2745 = vcvt.f32.s32 %v2742
        %v2746 = vcvt.f32.s32 %v2744
        %v2747 = vshll.u32 %v2746, 16
        %v2748 = vadd.s32 %v2747, %v2745
        %v2749 = vadd.s32 %v2624, %v2625
        %v2750 = vadd.s32 %v2749, %v2626
        %v2751 = vand.u32 %v2750, 65535
        %v2752 = vshrl.u32 %v2750, 16
        %v2753 = vcvt.s32.f32 %v2751
        %v2754 = vcvt.s32.f32 %v2752
        %2755 = vadd.xlane.f32.xlu0 %v2753
        %v2756 = vpop.xlane.xlu0 %2755
        %2757 = vadd.xlane.f32.xlu0 %v2754
        %v2758 = vpop.xlane.xlu0 %2757
        %v2759 = vcvt.f32.s32 %v2756
        %v2760 = vcvt.f32.s32 %v2758
        %v2761 = vshll.u32 %v2760, 16
        %v2762 = vadd.s32 %v2761, %v2759
        %v2763 = vadd.s32 %v2627, %v2628
        %v2764 = vadd.s32 %v2763, %v2629
        %v2765 = vand.u32 %v2764, 65535
        %v2766 = vshrl.u32 %v2764, 16
        %v2767 = vcvt.s32.f32 %v2765
        %v2768 = vcvt.s32.f32 %v2766
        %2769 = vadd.xlane.f32.xlu0 %v2767
        %v2770 = vpop.xlane.xlu0 %2769
        %2771 = vadd.xlane.f32.xlu0 %v2768
        %v2772 = vpop.xlane.xlu0 %2771
        %v2773 = vcvt.f32.s32 %v2770
        %v2774 = vcvt.f32.s32 %v2772
        %v2775 = vshll.u32 %v2774, 16
        %v2776 = vadd.s32 %v2775, %v2773
        %v2777 = vadd.s32 %v2630, %v2631
        %v2778 = vadd.s32 %v2777, %v2632
        %v2779 = vand.u32 %v2778, 65535
        %v2780 = vshrl.u32 %v2778, 16
        %v2781 = vcvt.s32.f32 %v2779
        %v2782 = vcvt.s32.f32 %v2780
        %2783 = vadd.xlane.f32.xlu0 %v2781
        %v2784 = vpop.xlane.xlu0 %2783
        %2785 = vadd.xlane.f32.xlu0 %v2782
        %v2786 = vpop.xlane.xlu0 %2785
        %v2787 = vcvt.f32.s32 %v2784
        %v2788 = vcvt.f32.s32 %v2786
        %v2789 = vshll.u32 %v2788, 16
        %v2790 = vadd.s32 %v2789, %v2787
        %v2791 = vadd.s32 %v2633, %v2634
        %v2792 = vadd.s32 %v2791, %v2635
        %v2793 = vand.u32 %v2792, 65535
        %v2794 = vshrl.u32 %v2792, 16
        %v2795 = vcvt.s32.f32 %v2793
        %v2796 = vcvt.s32.f32 %v2794
        %2797 = vadd.xlane.f32.xlu0 %v2795
        %v2798 = vpop.xlane.xlu0 %2797
        %2799 = vadd.xlane.f32.xlu0 %v2796
        %v2800 = vpop.xlane.xlu0 %2799
        %v2801 = vcvt.f32.s32 %v2798
        %v2802 = vcvt.f32.s32 %v2800
        %v2803 = vshll.u32 %v2802, 16
        %v2804 = vadd.s32 %v2803, %v2801
        %v2805 = vadd.s32 %v2636, %v2637
        %v2806 = vadd.s32 %v2805, %v2638
        %v2807 = vand.u32 %v2806, 65535
        %v2808 = vshrl.u32 %v2806, 16
        %v2809 = vcvt.s32.f32 %v2807
        %v2810 = vcvt.s32.f32 %v2808
        %2811 = vadd.xlane.f32.xlu0 %v2809
        %v2812 = vpop.xlane.xlu0 %2811
        %2813 = vadd.xlane.f32.xlu0 %v2810
        %v2814 = vpop.xlane.xlu0 %2813
        %v2815 = vcvt.f32.s32 %v2812
        %v2816 = vcvt.f32.s32 %v2814
        %v2817 = vshll.u32 %v2816, 16
        %v2818 = vadd.s32 %v2817, %v2815
        %v2819 = vadd.s32 %v2639, %v2640
        %v2820 = vadd.s32 %v2819, %v2641
        %v2821 = vand.u32 %v2820, 65535
        %v2822 = vshrl.u32 %v2820, 16
        %v2823 = vcvt.s32.f32 %v2821
        %v2824 = vcvt.s32.f32 %v2822
        %2825 = vadd.xlane.f32.xlu0 %v2823
        %v2826 = vpop.xlane.xlu0 %2825
        %2827 = vadd.xlane.f32.xlu0 %v2824
        %v2828 = vpop.xlane.xlu0 %2827
        %v2829 = vcvt.f32.s32 %v2826
        %v2830 = vcvt.f32.s32 %v2828
        %v2831 = vshll.u32 %v2830, 16
        %v2832 = vadd.s32 %v2831, %v2829
        %v2833 = vadd.s32 %v2642, %v2643
        %v2834 = vadd.s32 %v2833, %v2644
        %v2835 = vand.u32 %v2834, 65535
        %v2836 = vshrl.u32 %v2834, 16
        %v2837 = vcvt.s32.f32 %v2835
        %v2838 = vcvt.s32.f32 %v2836
        %2839 = vadd.xlane.f32.xlu0 %v2837
        %v2840 = vpop.xlane.xlu0 %2839
        %2841 = vadd.xlane.f32.xlu0 %v2838
        %v2842 = vpop.xlane.xlu0 %2841
        %v2843 = vcvt.f32.s32 %v2840
        %v2844 = vcvt.f32.s32 %v2842
        %v2845 = vshll.u32 %v2844, 16
        %v2846 = vadd.s32 %v2845, %v2843
        %v2847 = vadd.s32 %v2645, %v2646
        %v2848 = vadd.s32 %v2847, %v2647
        %v2849 = vand.u32 %v2848, 65535
        %v2850 = vshrl.u32 %v2848, 16
        %v2851 = vcvt.s32.f32 %v2849
        %v2852 = vcvt.s32.f32 %v2850
        %2853 = vadd.xlane.f32.xlu0 %v2851
        %v2854 = vpop.xlane.xlu0 %2853
        %2855 = vadd.xlane.f32.xlu0 %v2852
        %v2856 = vpop.xlane.xlu0 %2855
        %v2857 = vcvt.f32.s32 %v2854
        %v2858 = vcvt.f32.s32 %v2856
        %v2859 = vshll.u32 %v2858, 16
        %v2860 = vadd.s32 %v2859, %v2857
        %v2861 = vadd.s32 %v2648, %v2649
        %v2862 = vadd.s32 %v2861, %v2650
        %v2863 = vand.u32 %v2862, 65535
        %v2864 = vshrl.u32 %v2862, 16
        %v2865 = vcvt.s32.f32 %v2863
        %v2866 = vcvt.s32.f32 %v2864
        %2867 = vadd.xlane.f32.xlu0 %v2865
        %v2868 = vpop.xlane.xlu0 %2867
        %2869 = vadd.xlane.f32.xlu0 %v2866
        %v2870 = vpop.xlane.xlu0 %2869
        %v2871 = vcvt.f32.s32 %v2868
        %v2872 = vcvt.f32.s32 %v2870
        %v2873 = vshll.u32 %v2872, 16
        %v2874 = vadd.s32 %v2873, %v2871
        %vm2875 = vcmp.ge.s32.totalorder %v609, %v2347
        %vm2876 = vcmp.ge.s32.totalorder %v609, %v2348
        %vm2877 = vcmp.ge.s32.totalorder %v609, %v2349
        %vm2878 = vcmp.ge.s32.totalorder %v609, %v2350
        %vm2879 = vcmp.ge.s32.totalorder %v609, %v2351
        %vm2880 = vcmp.ge.s32.totalorder %v609, %v2352
        %vm2881 = vcmp.ge.s32.totalorder %v609, %v2353
        %vm2882 = vcmp.ge.s32.totalorder %v609, %v2354
        %vm2883 = vcmp.ge.s32.totalorder %v609, %v2355
        %vm2884 = vcmp.ge.s32.totalorder %v609, %v2356
        %vm2885 = vcmp.ge.s32.totalorder %v609, %v2357
        %vm2886 = vcmp.ge.s32.totalorder %v609, %v2358
        %vm2887 = vcmp.ge.s32.totalorder %v609, %v2359
        %vm2888 = vcmp.ge.s32.totalorder %v609, %v2360
        %vm2889 = vcmp.ge.s32.totalorder %v609, %v2361
        %vm2890 = vcmp.ge.s32.totalorder %v609, %v2362
        %v2891 = vadd.s32 %v2347, %v2664
        %v2892 = vadd.s32 %v2348, %v2678
        %v2893 = vadd.s32 %v2349, %v2692
        %v2894 = vadd.s32 %v2350, %v2706
        %v2895 = vadd.s32 %v2351, %v2720
        %v2896 = vadd.s32 %v2352, %v2734
        %v2897 = vadd.s32 %v2353, %v2748
        %v2898 = vadd.s32 %v2354, %v2762
        %v2899 = vadd.s32 %v2355, %v2776
        %v2900 = vadd.s32 %v2356, %v2790
        %v2901 = vadd.s32 %v2357, %v2804
        %v2902 = vadd.s32 %v2358, %v2818
        %v2903 = vadd.s32 %v2359, %v2832
        %v2904 = vadd.s32 %v2360, %v2846
        %v2905 = vadd.s32 %v2361, %v2860
        %v2906 = vadd.s32 %v2362, %v2874
        %vm2907 = vcmp.lt.s32.totalorder %v2891, 6
        %v2908 = vsel %vm2907, %v2891, 6
        %vm2909 = vcmp.lt.s32.totalorder %v2892, 6
        %v2910 = vsel %vm2909, %v2892, 6
        %vm2911 = vcmp.lt.s32.totalorder %v2893, 6
        %v2912 = vsel %vm2911, %v2893, 6
        %vm2913 = vcmp.lt.s32.totalorder %v2894, 6
        %v2914 = vsel %vm2913, %v2894, 6
        %vm2915 = vcmp.lt.s32.totalorder %v2895, 6
        %v2916 = vsel %vm2915, %v2895, 6
        %vm2917 = vcmp.lt.s32.totalorder %v2896, 6
        %v2918 = vsel %vm2917, %v2896, 6
        %vm2919 = vcmp.lt.s32.totalorder %v2897, 6
        %v2920 = vsel %vm2919, %v2897, 6
        %vm2921 = vcmp.lt.s32.totalorder %v2898, 6
        %v2922 = vsel %vm2921, %v2898, 6
        %vm2923 = vcmp.lt.s32.totalorder %v2899, 6
        %v2924 = vsel %vm2923, %v2899, 6
        %vm2925 = vcmp.lt.s32.totalorder %v2900, 6
        %v2926 = vsel %vm2925, %v2900, 6
        %vm2927 = vcmp.lt.s32.totalorder %v2901, 6
        %v2928 = vsel %vm2927, %v2901, 6
        %vm2929 = vcmp.lt.s32.totalorder %v2902, 6
        %v2930 = vsel %vm2929, %v2902, 6
        %vm2931 = vcmp.lt.s32.totalorder %v2903, 6
        %v2932 = vsel %vm2931, %v2903, 6
        %vm2933 = vcmp.lt.s32.totalorder %v2904, 6
        %v2934 = vsel %vm2933, %v2904, 6
        %vm2935 = vcmp.lt.s32.totalorder %v2905, 6
        %v2936 = vsel %vm2935, %v2905, 6
        %vm2937 = vcmp.lt.s32.totalorder %v2906, 6
        %v2938 = vsel %vm2937, %v2906, 6
        %vm2939 = vcmp.lt.s32.totalorder %v609, %v2908
        %vm2940 = vcmp.lt.s32.totalorder %v609, %v2910
        %vm2941 = vcmp.lt.s32.totalorder %v609, %v2912
        %vm2942 = vcmp.lt.s32.totalorder %v609, %v2914
        %vm2943 = vcmp.lt.s32.totalorder %v609, %v2916
        %vm2944 = vcmp.lt.s32.totalorder %v609, %v2918
        %vm2945 = vcmp.lt.s32.totalorder %v609, %v2920
        %vm2946 = vcmp.lt.s32.totalorder %v609, %v2922
        %vm2947 = vcmp.lt.s32.totalorder %v609, %v2924
        %vm2948 = vcmp.lt.s32.totalorder %v609, %v2926
        %vm2949 = vcmp.lt.s32.totalorder %v609, %v2928
        %vm2950 = vcmp.lt.s32.totalorder %v609, %v2930
        %vm2951 = vcmp.lt.s32.totalorder %v609, %v2932
        %vm2952 = vcmp.lt.s32.totalorder %v609, %v2934
        %vm2953 = vcmp.lt.s32.totalorder %v609, %v2936
        %vm2954 = vcmp.lt.s32.totalorder %v609, %v2938
        %vm2955 = vmand %vm2875, %vm2939
        %vm2956 = vmand %vm2876, %vm2940
        %vm2957 = vmand %vm2877, %vm2941
        %vm2958 = vmand %vm2878, %vm2942
        %vm2959 = vmand %vm2879, %vm2943
        %vm2960 = vmand %vm2880, %vm2944
        %vm2961 = vmand %vm2881, %vm2945
        %vm2962 = vmand %vm2882, %vm2946
        %vm2963 = vmand %vm2883, %vm2947
        %vm2964 = vmand %vm2884, %vm2948
        %vm2965 = vmand %vm2885, %vm2949
        %vm2966 = vmand %vm2886, %vm2950
        %vm2967 = vmand %vm2887, %vm2951
        %vm2968 = vmand %vm2888, %vm2952
        %vm2969 = vmand %vm2889, %vm2953
        %vm2970 = vmand %vm2890, %vm2954
        %v2971 = vsel %vm2955, %v2494, %v2427
        %v2972 = vsel %vm2956, %v2498, %v2428
        %v2973 = vsel %vm2957, %v2502, %v2429
        %v2974 = vsel %vm2958, %v2506, %v2430
        %v2975 = vsel %vm2959, %v2510, %v2431
        %v2976 = vsel %vm2960, %v2514, %v2432
        %v2977 = vsel %vm2961, %v2518, %v2433
        %v2978 = vsel %vm2962, %v2522, %v2434
        %v2979 = vsel %vm2963, %v2526, %v2435
        %v2980 = vsel %vm2964, %v2530, %v2436
        %v2981 = vsel %vm2965, %v2534, %v2437
        %v2982 = vsel %vm2966, %v2538, %v2438
        %v2983 = vsel %vm2967, %v2542, %v2439
        %v2984 = vsel %vm2968, %v2546, %v2440
        %v2985 = vsel %vm2969, %v2550, %v2441
        %v2986 = vsel %vm2970, %v2554, %v2442
        %v2987 = vsel %vm2555, -inf, %v2443
        %v2988 = vsel %vm2556, -inf, %v2444
        %v2989 = vsel %vm2557, -inf, %v2445
        %v2990 = vsel %vm2558, -inf, %v2446
        %v2991 = vsel %vm2559, -inf, %v2447
        %v2992 = vsel %vm2560, -inf, %v2448
        %v2993 = vsel %vm2561, -inf, %v2449
        %v2994 = vsel %vm2562, -inf, %v2450
        %v2995 = vsel %vm2563, -inf, %v2451
        %v2996 = vsel %vm2564, -inf, %v2452
        %v2997 = vsel %vm2565, -inf, %v2453
        %v2998 = vsel %vm2566, -inf, %v2454
        %v2999 = vsel %vm2567, -inf, %v2455
        %v3000 = vsel %vm2568, -inf, %v2456
        %v3001 = vsel %vm2569, -inf, %v2457
        %v3002 = vsel %vm2570, -inf, %v2458
        %v3003 = vsel %vm2571, -inf, %v2459
        %v3004 = vsel %vm2572, -inf, %v2460
        %v3005 = vsel %vm2573, -inf, %v2461
        %v3006 = vsel %vm2574, -inf, %v2462
        %v3007 = vsel %vm2575, -inf, %v2463
        %v3008 = vsel %vm2576, -inf, %v2464
        %v3009 = vsel %vm2577, -inf, %v2465
        %v3010 = vsel %vm2578, -inf, %v2466
        %v3011 = vsel %vm2579, -inf, %v2467
        %v3012 = vsel %vm2580, -inf, %v2468
        %v3013 = vsel %vm2581, -inf, %v2469
        %v3014 = vsel %vm2582, -inf, %v2470
        %v3015 = vsel %vm2583, -inf, %v2471
        %v3016 = vsel %vm2584, -inf, %v2472
        %v3017 = vsel %vm2585, -inf, %v2473
        %v3018 = vsel %vm2586, -inf, %v2474
        %v3019 = vsel %vm2587, -inf, %v2475
        %v3020 = vsel %vm2588, -inf, %v2476
        %v3021 = vsel %vm2589, -inf, %v2477
        %v3022 = vsel %vm2590, -inf, %v2478
        %v3023 = vsel %vm2591, -inf, %v2479
        %v3024 = vsel %vm2592, -inf, %v2480
        %v3025 = vsel %vm2593, -inf, %v2481
        %v3026 = vsel %vm2594, -inf, %v2482
        %v3027 = vsel %vm2595, -inf, %v2483
        %v3028 = vsel %vm2596, -inf, %v2484
        %v3029 = vsel %vm2597, -inf, %v2485
        %v3030 = vsel %vm2598, -inf, %v2486
        %v3031 = vsel %vm2599, -inf, %v2487
        %v3032 = vsel %vm2600, -inf, %v2488
        %v3033 = vsel %vm2601, -inf, %v2489
        %v3034 = vsel %vm2602, -inf, %v2490
        %v3035 = vmax.f32 %v2987, %v2988
        %v3036 = vmax.f32 %v3035, %v2989
        %3037 = vmax.xlane.f32.xlu0 %v3036
        %v3038 = vpop.xlane.xlu0 %3037
        %v3039 = vmax.f32 %v2990, %v2991
        %v3040 = vmax.f32 %v3039, %v2992
        %3041 = vmax.xlane.f32.xlu0 %v3040
        %v3042 = vpop.xlane.xlu0 %3041
        %v3043 = vmax.f32 %v2993, %v2994
        %v3044 = vmax.f32 %v3043, %v2995
        %3045 = vmax.xlane.f32.xlu0 %v3044
        %v3046 = vpop.xlane.xlu0 %3045
        %v3047 = vmax.f32 %v2996, %v2997
        %v3048 = vmax.f32 %v3047, %v2998
        %3049 = vmax.xlane.f32.xlu0 %v3048
        %v3050 = vpop.xlane.xlu0 %3049
        %v3051 = vmax.f32 %v2999, %v3000
        %v3052 = vmax.f32 %v3051, %v3001
        %3053 = vmax.xlane.f32.xlu0 %v3052
        %v3054 = vpop.xlane.xlu0 %3053
        %v3055 = vmax.f32 %v3002, %v3003
        %v3056 = vmax.f32 %v3055, %v3004
        %3057 = vmax.xlane.f32.xlu0 %v3056
        %v3058 = vpop.xlane.xlu0 %3057
        %v3059 = vmax.f32 %v3005, %v3006
        %v3060 = vmax.f32 %v3059, %v3007
        %3061 = vmax.xlane.f32.xlu0 %v3060
        %v3062 = vpop.xlane.xlu0 %3061
        %v3063 = vmax.f32 %v3008, %v3009
        %v3064 = vmax.f32 %v3063, %v3010
        %3065 = vmax.xlane.f32.xlu0 %v3064
        %v3066 = vpop.xlane.xlu0 %3065
        %v3067 = vmax.f32 %v3011, %v3012
        %v3068 = vmax.f32 %v3067, %v3013
        %3069 = vmax.xlane.f32.xlu0 %v3068
        %v3070 = vpop.xlane.xlu0 %3069
        %v3071 = vmax.f32 %v3014, %v3015
        %v3072 = vmax.f32 %v3071, %v3016
        %3073 = vmax.xlane.f32.xlu0 %v3072
        %v3074 = vpop.xlane.xlu0 %3073
        %v3075 = vmax.f32 %v3017, %v3018
        %v3076 = vmax.f32 %v3075, %v3019
        %3077 = vmax.xlane.f32.xlu0 %v3076
        %v3078 = vpop.xlane.xlu0 %3077
        %v3079 = vmax.f32 %v3020, %v3021
        %v3080 = vmax.f32 %v3079, %v3022
        %3081 = vmax.xlane.f32.xlu0 %v3080
        %v3082 = vpop.xlane.xlu0 %3081
        %v3083 = vmax.f32 %v3023, %v3024
        %v3084 = vmax.f32 %v3083, %v3025
        %3085 = vmax.xlane.f32.xlu0 %v3084
        %v3086 = vpop.xlane.xlu0 %3085
        %v3087 = vmax.f32 %v3026, %v3027
        %v3088 = vmax.f32 %v3087, %v3028
        %3089 = vmax.xlane.f32.xlu0 %v3088
        %v3090 = vpop.xlane.xlu0 %3089
        %v3091 = vmax.f32 %v3029, %v3030
        %v3092 = vmax.f32 %v3091, %v3031
        %3093 = vmax.xlane.f32.xlu0 %v3092
        %v3094 = vpop.xlane.xlu0 %3093
        %v3095 = vmax.f32 %v3032, %v3033
        %v3096 = vmax.f32 %v3095, %v3034
        %3097 = vmax.xlane.f32.xlu0 %v3096
        %v3098 = vpop.xlane.xlu0 %3097
        %vm3099 = vcmp.eq.f32.partialorder %v2987, %v3038
        %vm3100 = vcmp.eq.f32.partialorder %v2988, %v3038
        %vm3101 = vcmp.eq.f32.partialorder %v2989, %v3038
        %vm3102 = vcmp.eq.f32.partialorder %v2990, %v3042
        %vm3103 = vcmp.eq.f32.partialorder %v2991, %v3042
        %vm3104 = vcmp.eq.f32.partialorder %v2992, %v3042
        %vm3105 = vcmp.eq.f32.partialorder %v2993, %v3046
        %vm3106 = vcmp.eq.f32.partialorder %v2994, %v3046
        %vm3107 = vcmp.eq.f32.partialorder %v2995, %v3046
        %vm3108 = vcmp.eq.f32.partialorder %v2996, %v3050
        %vm3109 = vcmp.eq.f32.partialorder %v2997, %v3050
        %vm3110 = vcmp.eq.f32.partialorder %v2998, %v3050
        %vm3111 = vcmp.eq.f32.partialorder %v2999, %v3054
        %vm3112 = vcmp.eq.f32.partialorder %v3000, %v3054
        %vm3113 = vcmp.eq.f32.partialorder %v3001, %v3054
        %vm3114 = vcmp.eq.f32.partialorder %v3002, %v3058
        %vm3115 = vcmp.eq.f32.partialorder %v3003, %v3058
        %vm3116 = vcmp.eq.f32.partialorder %v3004, %v3058
        %vm3117 = vcmp.eq.f32.partialorder %v3005, %v3062
        %vm3118 = vcmp.eq.f32.partialorder %v3006, %v3062
        %vm3119 = vcmp.eq.f32.partialorder %v3007, %v3062
        %vm3120 = vcmp.eq.f32.partialorder %v3008, %v3066
        %vm3121 = vcmp.eq.f32.partialorder %v3009, %v3066
        %vm3122 = vcmp.eq.f32.partialorder %v3010, %v3066
        %vm3123 = vcmp.eq.f32.partialorder %v3011, %v3070
        %vm3124 = vcmp.eq.f32.partialorder %v3012, %v3070
        %vm3125 = vcmp.eq.f32.partialorder %v3013, %v3070
        %vm3126 = vcmp.eq.f32.partialorder %v3014, %v3074
        %vm3127 = vcmp.eq.f32.partialorder %v3015, %v3074
        %vm3128 = vcmp.eq.f32.partialorder %v3016, %v3074
        %vm3129 = vcmp.eq.f32.partialorder %v3017, %v3078
        %vm3130 = vcmp.eq.f32.partialorder %v3018, %v3078
        %vm3131 = vcmp.eq.f32.partialorder %v3019, %v3078
        %vm3132 = vcmp.eq.f32.partialorder %v3020, %v3082
        %vm3133 = vcmp.eq.f32.partialorder %v3021, %v3082
        %vm3134 = vcmp.eq.f32.partialorder %v3022, %v3082
        %vm3135 = vcmp.eq.f32.partialorder %v3023, %v3086
        %vm3136 = vcmp.eq.f32.partialorder %v3024, %v3086
        %vm3137 = vcmp.eq.f32.partialorder %v3025, %v3086
        %vm3138 = vcmp.eq.f32.partialorder %v3026, %v3090
        %vm3139 = vcmp.eq.f32.partialorder %v3027, %v3090
        %vm3140 = vcmp.eq.f32.partialorder %v3028, %v3090
        %vm3141 = vcmp.eq.f32.partialorder %v3029, %v3094
        %vm3142 = vcmp.eq.f32.partialorder %v3030, %v3094
        %vm3143 = vcmp.eq.f32.partialorder %v3031, %v3094
        %vm3144 = vcmp.eq.f32.partialorder %v3032, %v3098
        %vm3145 = vcmp.eq.f32.partialorder %v3033, %v3098
        %vm3146 = vcmp.eq.f32.partialorder %v3034, %v3098
        %v3147 = vsel %vm3099, 1, 0
        %v3148 = vsel %vm3100, 1, 0
        %v3149 = vsel %vm3101, 1, 0
        %v3150 = vsel %vm3102, 1, 0
        %v3151 = vsel %vm3103, 1, 0
        %v3152 = vsel %vm3104, 1, 0
        %v3153 = vsel %vm3105, 1, 0
        %v3154 = vsel %vm3106, 1, 0
        %v3155 = vsel %vm3107, 1, 0
        %v3156 = vsel %vm3108, 1, 0
        %v3157 = vsel %vm3109, 1, 0
        %v3158 = vsel %vm3110, 1, 0
        %v3159 = vsel %vm3111, 1, 0
        %v3160 = vsel %vm3112, 1, 0
        %v3161 = vsel %vm3113, 1, 0
        %v3162 = vsel %vm3114, 1, 0
        %v3163 = vsel %vm3115, 1, 0
        %v3164 = vsel %vm3116, 1, 0
        %v3165 = vsel %vm3117, 1, 0
        %v3166 = vsel %vm3118, 1, 0
        %v3167 = vsel %vm3119, 1, 0
        %v3168 = vsel %vm3120, 1, 0
        %v3169 = vsel %vm3121, 1, 0
        %v3170 = vsel %vm3122, 1, 0
        %v3171 = vsel %vm3123, 1, 0
        %v3172 = vsel %vm3124, 1, 0
        %v3173 = vsel %vm3125, 1, 0
        %v3174 = vsel %vm3126, 1, 0
        %v3175 = vsel %vm3127, 1, 0
        %v3176 = vsel %vm3128, 1, 0
        %v3177 = vsel %vm3129, 1, 0
        %v3178 = vsel %vm3130, 1, 0
        %v3179 = vsel %vm3131, 1, 0
        %v3180 = vsel %vm3132, 1, 0
        %v3181 = vsel %vm3133, 1, 0
        %v3182 = vsel %vm3134, 1, 0
        %v3183 = vsel %vm3135, 1, 0
        %v3184 = vsel %vm3136, 1, 0
        %v3185 = vsel %vm3137, 1, 0
        %v3186 = vsel %vm3138, 1, 0
        %v3187 = vsel %vm3139, 1, 0
        %v3188 = vsel %vm3140, 1, 0
        %v3189 = vsel %vm3141, 1, 0
        %v3190 = vsel %vm3142, 1, 0
        %v3191 = vsel %vm3143, 1, 0
        %v3192 = vsel %vm3144, 1, 0
        %v3193 = vsel %vm3145, 1, 0
        %v3194 = vsel %vm3146, 1, 0
        %v3195 = vadd.s32 %v3147, %v3148
        %v3196 = vadd.s32 %v3195, %v3149
        %v3197 = vand.u32 %v3196, 65535
        %v3198 = vshrl.u32 %v3196, 16
        %v3199 = vcvt.s32.f32 %v3197
        %v3200 = vcvt.s32.f32 %v3198
        %3201 = vadd.xlane.f32.xlu0 %v3199
        %v3202 = vpop.xlane.xlu0 %3201
        %3203 = vadd.xlane.f32.xlu0 %v3200
        %v3204 = vpop.xlane.xlu0 %3203
        %v3205 = vcvt.f32.s32 %v3202
        %v3206 = vcvt.f32.s32 %v3204
        %v3207 = vshll.u32 %v3206, 16
        %v3208 = vadd.s32 %v3207, %v3205
        %v3209 = vadd.s32 %v3150, %v3151
        %v3210 = vadd.s32 %v3209, %v3152
        %v3211 = vand.u32 %v3210, 65535
        %v3212 = vshrl.u32 %v3210, 16
        %v3213 = vcvt.s32.f32 %v3211
        %v3214 = vcvt.s32.f32 %v3212
        %3215 = vadd.xlane.f32.xlu0 %v3213
        %v3216 = vpop.xlane.xlu0 %3215
        %3217 = vadd.xlane.f32.xlu0 %v3214
        %v3218 = vpop.xlane.xlu0 %3217
        %v3219 = vcvt.f32.s32 %v3216
        %v3220 = vcvt.f32.s32 %v3218
        %v3221 = vshll.u32 %v3220, 16
        %v3222 = vadd.s32 %v3221, %v3219
        %v3223 = vadd.s32 %v3153, %v3154
        %v3224 = vadd.s32 %v3223, %v3155
        %v3225 = vand.u32 %v3224, 65535
        %v3226 = vshrl.u32 %v3224, 16
        %v3227 = vcvt.s32.f32 %v3225
        %v3228 = vcvt.s32.f32 %v3226
        %3229 = vadd.xlane.f32.xlu0 %v3227
        %v3230 = vpop.xlane.xlu0 %3229
        %3231 = vadd.xlane.f32.xlu0 %v3228
        %v3232 = vpop.xlane.xlu0 %3231
        %v3233 = vcvt.f32.s32 %v3230
        %v3234 = vcvt.f32.s32 %v3232
        %v3235 = vshll.u32 %v3234, 16
        %v3236 = vadd.s32 %v3235, %v3233
        %v3237 = vadd.s32 %v3156, %v3157
        %v3238 = vadd.s32 %v3237, %v3158
        %v3239 = vand.u32 %v3238, 65535
        %v3240 = vshrl.u32 %v3238, 16
        %v3241 = vcvt.s32.f32 %v3239
        %v3242 = vcvt.s32.f32 %v3240
        %3243 = vadd.xlane.f32.xlu0 %v3241
        %v3244 = vpop.xlane.xlu0 %3243
        %3245 = vadd.xlane.f32.xlu0 %v3242
        %v3246 = vpop.xlane.xlu0 %3245
        %v3247 = vcvt.f32.s32 %v3244
        %v3248 = vcvt.f32.s32 %v3246
        %v3249 = vshll.u32 %v3248, 16
        %v3250 = vadd.s32 %v3249, %v3247
        %v3251 = vadd.s32 %v3159, %v3160
        %v3252 = vadd.s32 %v3251, %v3161
        %v3253 = vand.u32 %v3252, 65535
        %v3254 = vshrl.u32 %v3252, 16
        %v3255 = vcvt.s32.f32 %v3253
        %v3256 = vcvt.s32.f32 %v3254
        %3257 = vadd.xlane.f32.xlu0 %v3255
        %v3258 = vpop.xlane.xlu0 %3257
        %3259 = vadd.xlane.f32.xlu0 %v3256
        %v3260 = vpop.xlane.xlu0 %3259
        %v3261 = vcvt.f32.s32 %v3258
        %v3262 = vcvt.f32.s32 %v3260
        %v3263 = vshll.u32 %v3262, 16
        %v3264 = vadd.s32 %v3263, %v3261
        %v3265 = vadd.s32 %v3162, %v3163
        %v3266 = vadd.s32 %v3265, %v3164
        %v3267 = vand.u32 %v3266, 65535
        %v3268 = vshrl.u32 %v3266, 16
        %v3269 = vcvt.s32.f32 %v3267
        %v3270 = vcvt.s32.f32 %v3268
        %3271 = vadd.xlane.f32.xlu0 %v3269
        %v3272 = vpop.xlane.xlu0 %3271
        %3273 = vadd.xlane.f32.xlu0 %v3270
        %v3274 = vpop.xlane.xlu0 %3273
        %v3275 = vcvt.f32.s32 %v3272
        %v3276 = vcvt.f32.s32 %v3274
        %v3277 = vshll.u32 %v3276, 16
        %v3278 = vadd.s32 %v3277, %v3275
        %v3279 = vadd.s32 %v3165, %v3166
        %v3280 = vadd.s32 %v3279, %v3167
        %v3281 = vand.u32 %v3280, 65535
        %v3282 = vshrl.u32 %v3280, 16
        %v3283 = vcvt.s32.f32 %v3281
        %v3284 = vcvt.s32.f32 %v3282
        %3285 = vadd.xlane.f32.xlu0 %v3283
        %v3286 = vpop.xlane.xlu0 %3285
        %3287 = vadd.xlane.f32.xlu0 %v3284
        %v3288 = vpop.xlane.xlu0 %3287
        %v3289 = vcvt.f32.s32 %v3286
        %v3290 = vcvt.f32.s32 %v3288
        %v3291 = vshll.u32 %v3290, 16
        %v3292 = vadd.s32 %v3291, %v3289
        %v3293 = vadd.s32 %v3168, %v3169
        %v3294 = vadd.s32 %v3293, %v3170
        %v3295 = vand.u32 %v3294, 65535
        %v3296 = vshrl.u32 %v3294, 16
        %v3297 = vcvt.s32.f32 %v3295
        %v3298 = vcvt.s32.f32 %v3296
        %3299 = vadd.xlane.f32.xlu0 %v3297
        %v3300 = vpop.xlane.xlu0 %3299
        %3301 = vadd.xlane.f32.xlu0 %v3298
        %v3302 = vpop.xlane.xlu0 %3301
        %v3303 = vcvt.f32.s32 %v3300
        %v3304 = vcvt.f32.s32 %v3302
        %v3305 = vshll.u32 %v3304, 16
        %v3306 = vadd.s32 %v3305, %v3303
        %v3307 = vadd.s32 %v3171, %v3172
        %v3308 = vadd.s32 %v3307, %v3173
        %v3309 = vand.u32 %v3308, 65535
        %v3310 = vshrl.u32 %v3308, 16
        %v3311 = vcvt.s32.f32 %v3309
        %v3312 = vcvt.s32.f32 %v3310
        %3313 = vadd.xlane.f32.xlu0 %v3311
        %v3314 = vpop.xlane.xlu0 %3313
        %3315 = vadd.xlane.f32.xlu0 %v3312
        %v3316 = vpop.xlane.xlu0 %3315
        %v3317 = vcvt.f32.s32 %v3314
        %v3318 = vcvt.f32.s32 %v3316
        %v3319 = vshll.u32 %v3318, 16
        %v3320 = vadd.s32 %v3319, %v3317
        %v3321 = vadd.s32 %v3174, %v3175
        %v3322 = vadd.s32 %v3321, %v3176
        %v3323 = vand.u32 %v3322, 65535
        %v3324 = vshrl.u32 %v3322, 16
        %v3325 = vcvt.s32.f32 %v3323
        %v3326 = vcvt.s32.f32 %v3324
        %3327 = vadd.xlane.f32.xlu0 %v3325
        %v3328 = vpop.xlane.xlu0 %3327
        %3329 = vadd.xlane.f32.xlu0 %v3326
        %v3330 = vpop.xlane.xlu0 %3329
        %v3331 = vcvt.f32.s32 %v3328
        %v3332 = vcvt.f32.s32 %v3330
        %v3333 = vshll.u32 %v3332, 16
        %v3334 = vadd.s32 %v3333, %v3331
        %v3335 = vadd.s32 %v3177, %v3178
        %v3336 = vadd.s32 %v3335, %v3179
        %v3337 = vand.u32 %v3336, 65535
        %v3338 = vshrl.u32 %v3336, 16
        %v3339 = vcvt.s32.f32 %v3337
        %v3340 = vcvt.s32.f32 %v3338
        %3341 = vadd.xlane.f32.xlu0 %v3339
        %v3342 = vpop.xlane.xlu0 %3341
        %3343 = vadd.xlane.f32.xlu0 %v3340
        %v3344 = vpop.xlane.xlu0 %3343
        %v3345 = vcvt.f32.s32 %v3342
        %v3346 = vcvt.f32.s32 %v3344
        %v3347 = vshll.u32 %v3346, 16
        %v3348 = vadd.s32 %v3347, %v3345
        %v3349 = vadd.s32 %v3180, %v3181
        %v3350 = vadd.s32 %v3349, %v3182
        %v3351 = vand.u32 %v3350, 65535
        %v3352 = vshrl.u32 %v3350, 16
        %v3353 = vcvt.s32.f32 %v3351
        %v3354 = vcvt.s32.f32 %v3352
        %3355 = vadd.xlane.f32.xlu0 %v3353
        %v3356 = vpop.xlane.xlu0 %3355
        %3357 = vadd.xlane.f32.xlu0 %v3354
        %v3358 = vpop.xlane.xlu0 %3357
        %v3359 = vcvt.f32.s32 %v3356
        %v3360 = vcvt.f32.s32 %v3358
        %v3361 = vshll.u32 %v3360, 16
        %v3362 = vadd.s32 %v3361, %v3359
        %v3363 = vadd.s32 %v3183, %v3184
        %v3364 = vadd.s32 %v3363, %v3185
        %v3365 = vand.u32 %v3364, 65535
        %v3366 = vshrl.u32 %v3364, 16
        %v3367 = vcvt.s32.f32 %v3365
        %v3368 = vcvt.s32.f32 %v3366
        %3369 = vadd.xlane.f32.xlu0 %v3367
        %v3370 = vpop.xlane.xlu0 %3369
        %3371 = vadd.xlane.f32.xlu0 %v3368
        %v3372 = vpop.xlane.xlu0 %3371
        %v3373 = vcvt.f32.s32 %v3370
        %v3374 = vcvt.f32.s32 %v3372
        %v3375 = vshll.u32 %v3374, 16
        %v3376 = vadd.s32 %v3375, %v3373
        %v3377 = vadd.s32 %v3186, %v3187
        %v3378 = vadd.s32 %v3377, %v3188
        %v3379 = vand.u32 %v3378, 65535
        %v3380 = vshrl.u32 %v3378, 16
        %v3381 = vcvt.s32.f32 %v3379
        %v3382 = vcvt.s32.f32 %v3380
        %3383 = vadd.xlane.f32.xlu0 %v3381
        %v3384 = vpop.xlane.xlu0 %3383
        %3385 = vadd.xlane.f32.xlu0 %v3382
        %v3386 = vpop.xlane.xlu0 %3385
        %v3387 = vcvt.f32.s32 %v3384
        %v3388 = vcvt.f32.s32 %v3386
        %v3389 = vshll.u32 %v3388, 16
        %v3390 = vadd.s32 %v3389, %v3387
        %v3391 = vadd.s32 %v3189, %v3190
        %v3392 = vadd.s32 %v3391, %v3191
        %v3393 = vand.u32 %v3392, 65535
        %v3394 = vshrl.u32 %v3392, 16
        %v3395 = vcvt.s32.f32 %v3393
        %v3396 = vcvt.s32.f32 %v3394
        %3397 = vadd.xlane.f32.xlu0 %v3395
        %v3398 = vpop.xlane.xlu0 %3397
        %3399 = vadd.xlane.f32.xlu0 %v3396
        %v3400 = vpop.xlane.xlu0 %3399
        %v3401 = vcvt.f32.s32 %v3398
        %v3402 = vcvt.f32.s32 %v3400
        %v3403 = vshll.u32 %v3402, 16
        %v3404 = vadd.s32 %v3403, %v3401
        %v3405 = vadd.s32 %v3192, %v3193
        %v3406 = vadd.s32 %v3405, %v3194
        %v3407 = vand.u32 %v3406, 65535
        %v3408 = vshrl.u32 %v3406, 16
        %v3409 = vcvt.s32.f32 %v3407
        %v3410 = vcvt.s32.f32 %v3408
        %3411 = vadd.xlane.f32.xlu0 %v3409
        %v3412 = vpop.xlane.xlu0 %3411
        %3413 = vadd.xlane.f32.xlu0 %v3410
        %v3414 = vpop.xlane.xlu0 %3413
        %v3415 = vcvt.f32.s32 %v3412
        %v3416 = vcvt.f32.s32 %v3414
        %v3417 = vshll.u32 %v3416, 16
        %v3418 = vadd.s32 %v3417, %v3415
        %vm3419 = vcmp.ge.s32.totalorder %v609, %v2891
        %vm3420 = vcmp.ge.s32.totalorder %v609, %v2892
        %vm3421 = vcmp.ge.s32.totalorder %v609, %v2893
        %vm3422 = vcmp.ge.s32.totalorder %v609, %v2894
        %vm3423 = vcmp.ge.s32.totalorder %v609, %v2895
        %vm3424 = vcmp.ge.s32.totalorder %v609, %v2896
        %vm3425 = vcmp.ge.s32.totalorder %v609, %v2897
        %vm3426 = vcmp.ge.s32.totalorder %v609, %v2898
        %vm3427 = vcmp.ge.s32.totalorder %v609, %v2899
        %vm3428 = vcmp.ge.s32.totalorder %v609, %v2900
        %vm3429 = vcmp.ge.s32.totalorder %v609, %v2901
        %vm3430 = vcmp.ge.s32.totalorder %v609, %v2902
        %vm3431 = vcmp.ge.s32.totalorder %v609, %v2903
        %vm3432 = vcmp.ge.s32.totalorder %v609, %v2904
        %vm3433 = vcmp.ge.s32.totalorder %v609, %v2905
        %vm3434 = vcmp.ge.s32.totalorder %v609, %v2906
        %v3435 = vadd.s32 %v2891, %v3208
        %v3436 = vadd.s32 %v2892, %v3222
        %v3437 = vadd.s32 %v2893, %v3236
        %v3438 = vadd.s32 %v2894, %v3250
        %v3439 = vadd.s32 %v2895, %v3264
        %v3440 = vadd.s32 %v2896, %v3278
        %v3441 = vadd.s32 %v2897, %v3292
        %v3442 = vadd.s32 %v2898, %v3306
        %v3443 = vadd.s32 %v2899, %v3320
        %v3444 = vadd.s32 %v2900, %v3334
        %v3445 = vadd.s32 %v2901, %v3348
        %v3446 = vadd.s32 %v2902, %v3362
        %v3447 = vadd.s32 %v2903, %v3376
        %v3448 = vadd.s32 %v2904, %v3390
        %v3449 = vadd.s32 %v2905, %v3404
        %v3450 = vadd.s32 %v2906, %v3418
        %vm3451 = vcmp.lt.s32.totalorder %v3435, 6
        %v3452 = vsel %vm3451, %v3435, 6
        %vm3453 = vcmp.lt.s32.totalorder %v3436, 6
        %v3454 = vsel %vm3453, %v3436, 6
        %vm3455 = vcmp.lt.s32.totalorder %v3437, 6
        %v3456 = vsel %vm3455, %v3437, 6
        %vm3457 = vcmp.lt.s32.totalorder %v3438, 6
        %v3458 = vsel %vm3457, %v3438, 6
        %vm3459 = vcmp.lt.s32.totalorder %v3439, 6
        %v3460 = vsel %vm3459, %v3439, 6
        %vm3461 = vcmp.lt.s32.totalorder %v3440, 6
        %v3462 = vsel %vm3461, %v3440, 6
        %vm3463 = vcmp.lt.s32.totalorder %v3441, 6
        %v3464 = vsel %vm3463, %v3441, 6
        %vm3465 = vcmp.lt.s32.totalorder %v3442, 6
        %v3466 = vsel %vm3465, %v3442, 6
        %vm3467 = vcmp.lt.s32.totalorder %v3443, 6
        %v3468 = vsel %vm3467, %v3443, 6
        %vm3469 = vcmp.lt.s32.totalorder %v3444, 6
        %v3470 = vsel %vm3469, %v3444, 6
        %vm3471 = vcmp.lt.s32.totalorder %v3445, 6
        %v3472 = vsel %vm3471, %v3445, 6
        %vm3473 = vcmp.lt.s32.totalorder %v3446, 6
        %v3474 = vsel %vm3473, %v3446, 6
        %vm3475 = vcmp.lt.s32.totalorder %v3447, 6
        %v3476 = vsel %vm3475, %v3447, 6
        %vm3477 = vcmp.lt.s32.totalorder %v3448, 6
        %v3478 = vsel %vm3477, %v3448, 6
        %vm3479 = vcmp.lt.s32.totalorder %v3449, 6
        %v3480 = vsel %vm3479, %v3449, 6
        %vm3481 = vcmp.lt.s32.totalorder %v3450, 6
        %v3482 = vsel %vm3481, %v3450, 6
        %vm3483 = vcmp.lt.s32.totalorder %v609, %v3452
        %vm3484 = vcmp.lt.s32.totalorder %v609, %v3454
        %vm3485 = vcmp.lt.s32.totalorder %v609, %v3456
        %vm3486 = vcmp.lt.s32.totalorder %v609, %v3458
        %vm3487 = vcmp.lt.s32.totalorder %v609, %v3460
        %vm3488 = vcmp.lt.s32.totalorder %v609, %v3462
        %vm3489 = vcmp.lt.s32.totalorder %v609, %v3464
        %vm3490 = vcmp.lt.s32.totalorder %v609, %v3466
        %vm3491 = vcmp.lt.s32.totalorder %v609, %v3468
        %vm3492 = vcmp.lt.s32.totalorder %v609, %v3470
        %vm3493 = vcmp.lt.s32.totalorder %v609, %v3472
        %vm3494 = vcmp.lt.s32.totalorder %v609, %v3474
        %vm3495 = vcmp.lt.s32.totalorder %v609, %v3476
        %vm3496 = vcmp.lt.s32.totalorder %v609, %v3478
        %vm3497 = vcmp.lt.s32.totalorder %v609, %v3480
        %vm3498 = vcmp.lt.s32.totalorder %v609, %v3482
        %vm3499 = vmand %vm3419, %vm3483
        %vm3500 = vmand %vm3420, %vm3484
        %vm3501 = vmand %vm3421, %vm3485
        %vm3502 = vmand %vm3422, %vm3486
        %vm3503 = vmand %vm3423, %vm3487
        %vm3504 = vmand %vm3424, %vm3488
        %vm3505 = vmand %vm3425, %vm3489
        %vm3506 = vmand %vm3426, %vm3490
        %vm3507 = vmand %vm3427, %vm3491
        %vm3508 = vmand %vm3428, %vm3492
        %vm3509 = vmand %vm3429, %vm3493
        %vm3510 = vmand %vm3430, %vm3494
        %vm3511 = vmand %vm3431, %vm3495
        %vm3512 = vmand %vm3432, %vm3496
        %vm3513 = vmand %vm3433, %vm3497
        %vm3514 = vmand %vm3434, %vm3498
        %v3515 = vsel %vm3499, %v3038, %v2971
        %v3516 = vsel %vm3500, %v3042, %v2972
        %v3517 = vsel %vm3501, %v3046, %v2973
        %v3518 = vsel %vm3502, %v3050, %v2974
        %v3519 = vsel %vm3503, %v3054, %v2975
        %v3520 = vsel %vm3504, %v3058, %v2976
        %v3521 = vsel %vm3505, %v3062, %v2977
        %v3522 = vsel %vm3506, %v3066, %v2978
        %v3523 = vsel %vm3507, %v3070, %v2979
        %v3524 = vsel %vm3508, %v3074, %v2980
        %v3525 = vsel %vm3509, %v3078, %v2981
        %v3526 = vsel %vm3510, %v3082, %v2982
        %v3527 = vsel %vm3511, %v3086, %v2983
        %v3528 = vsel %vm3512, %v3090, %v2984
        %v3529 = vsel %vm3513, %v3094, %v2985
        %v3530 = vsel %vm3514, %v3098, %v2986
        %v3531 = vsel %vm3099, -inf, %v2987
        %v3532 = vsel %vm3100, -inf, %v2988
        %v3533 = vsel %vm3101, -inf, %v2989
        %v3534 = vsel %vm3102, -inf, %v2990
        %v3535 = vsel %vm3103, -inf, %v2991
        %v3536 = vsel %vm3104, -inf, %v2992
        %v3537 = vsel %vm3105, -inf, %v2993
        %v3538 = vsel %vm3106, -inf, %v2994
        %v3539 = vsel %vm3107, -inf, %v2995
        %v3540 = vsel %vm3108, -inf, %v2996
        %v3541 = vsel %vm3109, -inf, %v2997
        %v3542 = vsel %vm3110, -inf, %v2998
        %v3543 = vsel %vm3111, -inf, %v2999
        %v3544 = vsel %vm3112, -inf, %v3000
        %v3545 = vsel %vm3113, -inf, %v3001
        %v3546 = vsel %vm3114, -inf, %v3002
        %v3547 = vsel %vm3115, -inf, %v3003
        %v3548 = vsel %vm3116, -inf, %v3004
        %v3549 = vsel %vm3117, -inf, %v3005
        %v3550 = vsel %vm3118, -inf, %v3006
        %v3551 = vsel %vm3119, -inf, %v3007
        %v3552 = vsel %vm3120, -inf, %v3008
        %v3553 = vsel %vm3121, -inf, %v3009
        %v3554 = vsel %vm3122, -inf, %v3010
        %v3555 = vsel %vm3123, -inf, %v3011
        %v3556 = vsel %vm3124, -inf, %v3012
        %v3557 = vsel %vm3125, -inf, %v3013
        %v3558 = vsel %vm3126, -inf, %v3014
        %v3559 = vsel %vm3127, -inf, %v3015
        %v3560 = vsel %vm3128, -inf, %v3016
        %v3561 = vsel %vm3129, -inf, %v3017
        %v3562 = vsel %vm3130, -inf, %v3018
        %v3563 = vsel %vm3131, -inf, %v3019
        %v3564 = vsel %vm3132, -inf, %v3020
        %v3565 = vsel %vm3133, -inf, %v3021
        %v3566 = vsel %vm3134, -inf, %v3022
        %v3567 = vsel %vm3135, -inf, %v3023
        %v3568 = vsel %vm3136, -inf, %v3024
        %v3569 = vsel %vm3137, -inf, %v3025
        %v3570 = vsel %vm3138, -inf, %v3026
        %v3571 = vsel %vm3139, -inf, %v3027
        %v3572 = vsel %vm3140, -inf, %v3028
        %v3573 = vsel %vm3141, -inf, %v3029
        %v3574 = vsel %vm3142, -inf, %v3030
        %v3575 = vsel %vm3143, -inf, %v3031
        %v3576 = vsel %vm3144, -inf, %v3032
        %v3577 = vsel %vm3145, -inf, %v3033
        %v3578 = vsel %vm3146, -inf, %v3034
        %v3579 = vmax.f32 %v3531, %v3532
        %v3580 = vmax.f32 %v3579, %v3533
        %3581 = vmax.xlane.f32.xlu0 %v3580
        %v3582 = vpop.xlane.xlu0 %3581
        %v3583 = vmax.f32 %v3534, %v3535
        %v3584 = vmax.f32 %v3583, %v3536
        %3585 = vmax.xlane.f32.xlu0 %v3584
        %v3586 = vpop.xlane.xlu0 %3585
        %v3587 = vmax.f32 %v3537, %v3538
        %v3588 = vmax.f32 %v3587, %v3539
        %3589 = vmax.xlane.f32.xlu0 %v3588
        %v3590 = vpop.xlane.xlu0 %3589
        %v3591 = vmax.f32 %v3540, %v3541
        %v3592 = vmax.f32 %v3591, %v3542
        %3593 = vmax.xlane.f32.xlu0 %v3592
        %v3594 = vpop.xlane.xlu0 %3593
        %v3595 = vmax.f32 %v3543, %v3544
        %v3596 = vmax.f32 %v3595, %v3545
        %3597 = vmax.xlane.f32.xlu0 %v3596
        %v3598 = vpop.xlane.xlu0 %3597
        %v3599 = vmax.f32 %v3546, %v3547
        %v3600 = vmax.f32 %v3599, %v3548
        %3601 = vmax.xlane.f32.xlu0 %v3600
        %v3602 = vpop.xlane.xlu0 %3601
        %v3603 = vmax.f32 %v3549, %v3550
        %v3604 = vmax.f32 %v3603, %v3551
        %3605 = vmax.xlane.f32.xlu0 %v3604
        %v3606 = vpop.xlane.xlu0 %3605
        %v3607 = vmax.f32 %v3552, %v3553
        %v3608 = vmax.f32 %v3607, %v3554
        %3609 = vmax.xlane.f32.xlu0 %v3608
        %v3610 = vpop.xlane.xlu0 %3609
        %v3611 = vmax.f32 %v3555, %v3556
        %v3612 = vmax.f32 %v3611, %v3557
        %3613 = vmax.xlane.f32.xlu0 %v3612
        %v3614 = vpop.xlane.xlu0 %3613
        %v3615 = vmax.f32 %v3558, %v3559
        %v3616 = vmax.f32 %v3615, %v3560
        %3617 = vmax.xlane.f32.xlu0 %v3616
        %v3618 = vpop.xlane.xlu0 %3617
        %v3619 = vmax.f32 %v3561, %v3562
        %v3620 = vmax.f32 %v3619, %v3563
        %3621 = vmax.xlane.f32.xlu0 %v3620
        %v3622 = vpop.xlane.xlu0 %3621
        %v3623 = vmax.f32 %v3564, %v3565
        %v3624 = vmax.f32 %v3623, %v3566
        %3625 = vmax.xlane.f32.xlu0 %v3624
        %v3626 = vpop.xlane.xlu0 %3625
        %v3627 = vmax.f32 %v3567, %v3568
        %v3628 = vmax.f32 %v3627, %v3569
        %3629 = vmax.xlane.f32.xlu0 %v3628
        %v3630 = vpop.xlane.xlu0 %3629
        %v3631 = vmax.f32 %v3570, %v3571
        %v3632 = vmax.f32 %v3631, %v3572
        %3633 = vmax.xlane.f32.xlu0 %v3632
        %v3634 = vpop.xlane.xlu0 %3633
        %v3635 = vmax.f32 %v3573, %v3574
        %v3636 = vmax.f32 %v3635, %v3575
        %3637 = vmax.xlane.f32.xlu0 %v3636
        %v3638 = vpop.xlane.xlu0 %3637
        %v3639 = vmax.f32 %v3576, %v3577
        %v3640 = vmax.f32 %v3639, %v3578
        %3641 = vmax.xlane.f32.xlu0 %v3640
        %v3642 = vpop.xlane.xlu0 %3641
        %vm3643 = vcmp.eq.f32.partialorder %v3531, %v3582
        %vm3644 = vcmp.eq.f32.partialorder %v3532, %v3582
        %vm3645 = vcmp.eq.f32.partialorder %v3533, %v3582
        %vm3646 = vcmp.eq.f32.partialorder %v3534, %v3586
        %vm3647 = vcmp.eq.f32.partialorder %v3535, %v3586
        %vm3648 = vcmp.eq.f32.partialorder %v3536, %v3586
        %vm3649 = vcmp.eq.f32.partialorder %v3537, %v3590
        %vm3650 = vcmp.eq.f32.partialorder %v3538, %v3590
        %vm3651 = vcmp.eq.f32.partialorder %v3539, %v3590
        %vm3652 = vcmp.eq.f32.partialorder %v3540, %v3594
        %vm3653 = vcmp.eq.f32.partialorder %v3541, %v3594
        %vm3654 = vcmp.eq.f32.partialorder %v3542, %v3594
        %vm3655 = vcmp.eq.f32.partialorder %v3543, %v3598
        %vm3656 = vcmp.eq.f32.partialorder %v3544, %v3598
        %vm3657 = vcmp.eq.f32.partialorder %v3545, %v3598
        %vm3658 = vcmp.eq.f32.partialorder %v3546, %v3602
        %vm3659 = vcmp.eq.f32.partialorder %v3547, %v3602
        %vm3660 = vcmp.eq.f32.partialorder %v3548, %v3602
        %vm3661 = vcmp.eq.f32.partialorder %v3549, %v3606
        %vm3662 = vcmp.eq.f32.partialorder %v3550, %v3606
        %vm3663 = vcmp.eq.f32.partialorder %v3551, %v3606
        %vm3664 = vcmp.eq.f32.partialorder %v3552, %v3610
        %vm3665 = vcmp.eq.f32.partialorder %v3553, %v3610
        %vm3666 = vcmp.eq.f32.partialorder %v3554, %v3610
        %vm3667 = vcmp.eq.f32.partialorder %v3555, %v3614
        %vm3668 = vcmp.eq.f32.partialorder %v3556, %v3614
        %vm3669 = vcmp.eq.f32.partialorder %v3557, %v3614
        %vm3670 = vcmp.eq.f32.partialorder %v3558, %v3618
        %vm3671 = vcmp.eq.f32.partialorder %v3559, %v3618
        %vm3672 = vcmp.eq.f32.partialorder %v3560, %v3618
        %vm3673 = vcmp.eq.f32.partialorder %v3561, %v3622
        %vm3674 = vcmp.eq.f32.partialorder %v3562, %v3622
        %vm3675 = vcmp.eq.f32.partialorder %v3563, %v3622
        %vm3676 = vcmp.eq.f32.partialorder %v3564, %v3626
        %vm3677 = vcmp.eq.f32.partialorder %v3565, %v3626
        %vm3678 = vcmp.eq.f32.partialorder %v3566, %v3626
        %vm3679 = vcmp.eq.f32.partialorder %v3567, %v3630
        %vm3680 = vcmp.eq.f32.partialorder %v3568, %v3630
        %vm3681 = vcmp.eq.f32.partialorder %v3569, %v3630
        %vm3682 = vcmp.eq.f32.partialorder %v3570, %v3634
        %vm3683 = vcmp.eq.f32.partialorder %v3571, %v3634
        %vm3684 = vcmp.eq.f32.partialorder %v3572, %v3634
        %vm3685 = vcmp.eq.f32.partialorder %v3573, %v3638
        %vm3686 = vcmp.eq.f32.partialorder %v3574, %v3638
        %vm3687 = vcmp.eq.f32.partialorder %v3575, %v3638
        %vm3688 = vcmp.eq.f32.partialorder %v3576, %v3642
        %vm3689 = vcmp.eq.f32.partialorder %v3577, %v3642
        %vm3690 = vcmp.eq.f32.partialorder %v3578, %v3642
        %v3691 = vsel %vm3643, 1, 0
        %v3692 = vsel %vm3644, 1, 0
        %v3693 = vsel %vm3645, 1, 0
        %v3694 = vsel %vm3646, 1, 0
        %v3695 = vsel %vm3647, 1, 0
        %v3696 = vsel %vm3648, 1, 0
        %v3697 = vsel %vm3649, 1, 0
        %v3698 = vsel %vm3650, 1, 0
        %v3699 = vsel %vm3651, 1, 0
        %v3700 = vsel %vm3652, 1, 0
        %v3701 = vsel %vm3653, 1, 0
        %v3702 = vsel %vm3654, 1, 0
        %v3703 = vsel %vm3655, 1, 0
        %v3704 = vsel %vm3656, 1, 0
        %v3705 = vsel %vm3657, 1, 0
        %v3706 = vsel %vm3658, 1, 0
        %v3707 = vsel %vm3659, 1, 0
        %v3708 = vsel %vm3660, 1, 0
        %v3709 = vsel %vm3661, 1, 0
        %v3710 = vsel %vm3662, 1, 0
        %v3711 = vsel %vm3663, 1, 0
        %v3712 = vsel %vm3664, 1, 0
        %v3713 = vsel %vm3665, 1, 0
        %v3714 = vsel %vm3666, 1, 0
        %v3715 = vsel %vm3667, 1, 0
        %v3716 = vsel %vm3668, 1, 0
        %v3717 = vsel %vm3669, 1, 0
        %v3718 = vsel %vm3670, 1, 0
        %v3719 = vsel %vm3671, 1, 0
        %v3720 = vsel %vm3672, 1, 0
        %v3721 = vsel %vm3673, 1, 0
        %v3722 = vsel %vm3674, 1, 0
        %v3723 = vsel %vm3675, 1, 0
        %v3724 = vsel %vm3676, 1, 0
        %v3725 = vsel %vm3677, 1, 0
        %v3726 = vsel %vm3678, 1, 0
        %v3727 = vsel %vm3679, 1, 0
        %v3728 = vsel %vm3680, 1, 0
        %v3729 = vsel %vm3681, 1, 0
        %v3730 = vsel %vm3682, 1, 0
        %v3731 = vsel %vm3683, 1, 0
        %v3732 = vsel %vm3684, 1, 0
        %v3733 = vsel %vm3685, 1, 0
        %v3734 = vsel %vm3686, 1, 0
        %v3735 = vsel %vm3687, 1, 0
        %v3736 = vsel %vm3688, 1, 0
        %v3737 = vsel %vm3689, 1, 0
        %v3738 = vsel %vm3690, 1, 0
        %v3739 = vadd.s32 %v3691, %v3692
        %v3740 = vadd.s32 %v3739, %v3693
        %v3741 = vand.u32 %v3740, 65535
        %v3742 = vshrl.u32 %v3740, 16
        %v3743 = vcvt.s32.f32 %v3741
        %v3744 = vcvt.s32.f32 %v3742
        %3745 = vadd.xlane.f32.xlu0 %v3743
        %v3746 = vpop.xlane.xlu0 %3745
        %3747 = vadd.xlane.f32.xlu0 %v3744
        %v3748 = vpop.xlane.xlu0 %3747
        %v3749 = vcvt.f32.s32 %v3746
        %v3750 = vcvt.f32.s32 %v3748
        %v3751 = vshll.u32 %v3750, 16
        %v3752 = vadd.s32 %v3751, %v3749
        %v3753 = vadd.s32 %v3694, %v3695
        %v3754 = vadd.s32 %v3753, %v3696
        %v3755 = vand.u32 %v3754, 65535
        %v3756 = vshrl.u32 %v3754, 16
        %v3757 = vcvt.s32.f32 %v3755
        %v3758 = vcvt.s32.f32 %v3756
        %3759 = vadd.xlane.f32.xlu0 %v3757
        %v3760 = vpop.xlane.xlu0 %3759
        %3761 = vadd.xlane.f32.xlu0 %v3758
        %v3762 = vpop.xlane.xlu0 %3761
        %v3763 = vcvt.f32.s32 %v3760
        %v3764 = vcvt.f32.s32 %v3762
        %v3765 = vshll.u32 %v3764, 16
        %v3766 = vadd.s32 %v3765, %v3763
        %v3767 = vadd.s32 %v3697, %v3698
        %v3768 = vadd.s32 %v3767, %v3699
        %v3769 = vand.u32 %v3768, 65535
        %v3770 = vshrl.u32 %v3768, 16
        %v3771 = vcvt.s32.f32 %v3769
        %v3772 = vcvt.s32.f32 %v3770
        %3773 = vadd.xlane.f32.xlu0 %v3771
        %v3774 = vpop.xlane.xlu0 %3773
        %3775 = vadd.xlane.f32.xlu0 %v3772
        %v3776 = vpop.xlane.xlu0 %3775
        %v3777 = vcvt.f32.s32 %v3774
        %v3778 = vcvt.f32.s32 %v3776
        %v3779 = vshll.u32 %v3778, 16
        %v3780 = vadd.s32 %v3779, %v3777
        %v3781 = vadd.s32 %v3700, %v3701
        %v3782 = vadd.s32 %v3781, %v3702
        %v3783 = vand.u32 %v3782, 65535
        %v3784 = vshrl.u32 %v3782, 16
        %v3785 = vcvt.s32.f32 %v3783
        %v3786 = vcvt.s32.f32 %v3784
        %3787 = vadd.xlane.f32.xlu0 %v3785
        %v3788 = vpop.xlane.xlu0 %3787
        %3789 = vadd.xlane.f32.xlu0 %v3786
        %v3790 = vpop.xlane.xlu0 %3789
        %v3791 = vcvt.f32.s32 %v3788
        %v3792 = vcvt.f32.s32 %v3790
        %v3793 = vshll.u32 %v3792, 16
        %v3794 = vadd.s32 %v3793, %v3791
        %v3795 = vadd.s32 %v3703, %v3704
        %v3796 = vadd.s32 %v3795, %v3705
        %v3797 = vand.u32 %v3796, 65535
        %v3798 = vshrl.u32 %v3796, 16
        %v3799 = vcvt.s32.f32 %v3797
        %v3800 = vcvt.s32.f32 %v3798
        %3801 = vadd.xlane.f32.xlu0 %v3799
        %v3802 = vpop.xlane.xlu0 %3801
        %3803 = vadd.xlane.f32.xlu0 %v3800
        %v3804 = vpop.xlane.xlu0 %3803
        %v3805 = vcvt.f32.s32 %v3802
        %v3806 = vcvt.f32.s32 %v3804
        %v3807 = vshll.u32 %v3806, 16
        %v3808 = vadd.s32 %v3807, %v3805
        %v3809 = vadd.s32 %v3706, %v3707
        %v3810 = vadd.s32 %v3809, %v3708
        %v3811 = vand.u32 %v3810, 65535
        %v3812 = vshrl.u32 %v3810, 16
        %v3813 = vcvt.s32.f32 %v3811
        %v3814 = vcvt.s32.f32 %v3812
        %3815 = vadd.xlane.f32.xlu0 %v3813
        %v3816 = vpop.xlane.xlu0 %3815
        %3817 = vadd.xlane.f32.xlu0 %v3814
        %v3818 = vpop.xlane.xlu0 %3817
        %v3819 = vcvt.f32.s32 %v3816
        %v3820 = vcvt.f32.s32 %v3818
        %v3821 = vshll.u32 %v3820, 16
        %v3822 = vadd.s32 %v3821, %v3819
        %v3823 = vadd.s32 %v3709, %v3710
        %v3824 = vadd.s32 %v3823, %v3711
        %v3825 = vand.u32 %v3824, 65535
        %v3826 = vshrl.u32 %v3824, 16
        %v3827 = vcvt.s32.f32 %v3825
        %v3828 = vcvt.s32.f32 %v3826
        %3829 = vadd.xlane.f32.xlu0 %v3827
        %v3830 = vpop.xlane.xlu0 %3829
        %3831 = vadd.xlane.f32.xlu0 %v3828
        %v3832 = vpop.xlane.xlu0 %3831
        %v3833 = vcvt.f32.s32 %v3830
        %v3834 = vcvt.f32.s32 %v3832
        %v3835 = vshll.u32 %v3834, 16
        %v3836 = vadd.s32 %v3835, %v3833
        %v3837 = vadd.s32 %v3712, %v3713
        %v3838 = vadd.s32 %v3837, %v3714
        %v3839 = vand.u32 %v3838, 65535
        %v3840 = vshrl.u32 %v3838, 16
        %v3841 = vcvt.s32.f32 %v3839
        %v3842 = vcvt.s32.f32 %v3840
        %3843 = vadd.xlane.f32.xlu0 %v3841
        %v3844 = vpop.xlane.xlu0 %3843
        %3845 = vadd.xlane.f32.xlu0 %v3842
        %v3846 = vpop.xlane.xlu0 %3845
        %v3847 = vcvt.f32.s32 %v3844
        %v3848 = vcvt.f32.s32 %v3846
        %v3849 = vshll.u32 %v3848, 16
        %v3850 = vadd.s32 %v3849, %v3847
        %v3851 = vadd.s32 %v3715, %v3716
        %v3852 = vadd.s32 %v3851, %v3717
        %v3853 = vand.u32 %v3852, 65535
        %v3854 = vshrl.u32 %v3852, 16
        %v3855 = vcvt.s32.f32 %v3853
        %v3856 = vcvt.s32.f32 %v3854
        %3857 = vadd.xlane.f32.xlu0 %v3855
        %v3858 = vpop.xlane.xlu0 %3857
        %3859 = vadd.xlane.f32.xlu0 %v3856
        %v3860 = vpop.xlane.xlu0 %3859
        %v3861 = vcvt.f32.s32 %v3858
        %v3862 = vcvt.f32.s32 %v3860
        %v3863 = vshll.u32 %v3862, 16
        %v3864 = vadd.s32 %v3863, %v3861
        %v3865 = vadd.s32 %v3718, %v3719
        %v3866 = vadd.s32 %v3865, %v3720
        %v3867 = vand.u32 %v3866, 65535
        %v3868 = vshrl.u32 %v3866, 16
        %v3869 = vcvt.s32.f32 %v3867
        %v3870 = vcvt.s32.f32 %v3868
        %3871 = vadd.xlane.f32.xlu0 %v3869
        %v3872 = vpop.xlane.xlu0 %3871
        %3873 = vadd.xlane.f32.xlu0 %v3870
        %v3874 = vpop.xlane.xlu0 %3873
        %v3875 = vcvt.f32.s32 %v3872
        %v3876 = vcvt.f32.s32 %v3874
        %v3877 = vshll.u32 %v3876, 16
        %v3878 = vadd.s32 %v3877, %v3875
        %v3879 = vadd.s32 %v3721, %v3722
        %v3880 = vadd.s32 %v3879, %v3723
        %v3881 = vand.u32 %v3880, 65535
        %v3882 = vshrl.u32 %v3880, 16
        %v3883 = vcvt.s32.f32 %v3881
        %v3884 = vcvt.s32.f32 %v3882
        %3885 = vadd.xlane.f32.xlu0 %v3883
        %v3886 = vpop.xlane.xlu0 %3885
        %3887 = vadd.xlane.f32.xlu0 %v3884
        %v3888 = vpop.xlane.xlu0 %3887
        %v3889 = vcvt.f32.s32 %v3886
        %v3890 = vcvt.f32.s32 %v3888
        %v3891 = vshll.u32 %v3890, 16
        %v3892 = vadd.s32 %v3891, %v3889
        %v3893 = vadd.s32 %v3724, %v3725
        %v3894 = vadd.s32 %v3893, %v3726
        %v3895 = vand.u32 %v3894, 65535
        %v3896 = vshrl.u32 %v3894, 16
        %v3897 = vcvt.s32.f32 %v3895
        %v3898 = vcvt.s32.f32 %v3896
        %3899 = vadd.xlane.f32.xlu0 %v3897
        %v3900 = vpop.xlane.xlu0 %3899
        %3901 = vadd.xlane.f32.xlu0 %v3898
        %v3902 = vpop.xlane.xlu0 %3901
        %v3903 = vcvt.f32.s32 %v3900
        %v3904 = vcvt.f32.s32 %v3902
        %v3905 = vshll.u32 %v3904, 16
        %v3906 = vadd.s32 %v3905, %v3903
        %v3907 = vadd.s32 %v3727, %v3728
        %v3908 = vadd.s32 %v3907, %v3729
        %v3909 = vand.u32 %v3908, 65535
        %v3910 = vshrl.u32 %v3908, 16
        %v3911 = vcvt.s32.f32 %v3909
        %v3912 = vcvt.s32.f32 %v3910
        %3913 = vadd.xlane.f32.xlu0 %v3911
        %v3914 = vpop.xlane.xlu0 %3913
        %3915 = vadd.xlane.f32.xlu0 %v3912
        %v3916 = vpop.xlane.xlu0 %3915
        %v3917 = vcvt.f32.s32 %v3914
        %v3918 = vcvt.f32.s32 %v3916
        %v3919 = vshll.u32 %v3918, 16
        %v3920 = vadd.s32 %v3919, %v3917
        %v3921 = vadd.s32 %v3730, %v3731
        %v3922 = vadd.s32 %v3921, %v3732
        %v3923 = vand.u32 %v3922, 65535
        %v3924 = vshrl.u32 %v3922, 16
        %v3925 = vcvt.s32.f32 %v3923
        %v3926 = vcvt.s32.f32 %v3924
        %3927 = vadd.xlane.f32.xlu0 %v3925
        %v3928 = vpop.xlane.xlu0 %3927
        %3929 = vadd.xlane.f32.xlu0 %v3926
        %v3930 = vpop.xlane.xlu0 %3929
        %v3931 = vcvt.f32.s32 %v3928
        %v3932 = vcvt.f32.s32 %v3930
        %v3933 = vshll.u32 %v3932, 16
        %v3934 = vadd.s32 %v3933, %v3931
        %v3935 = vadd.s32 %v3733, %v3734
        %v3936 = vadd.s32 %v3935, %v3735
        %v3937 = vand.u32 %v3936, 65535
        %v3938 = vshrl.u32 %v3936, 16
        %v3939 = vcvt.s32.f32 %v3937
        %v3940 = vcvt.s32.f32 %v3938
        %3941 = vadd.xlane.f32.xlu0 %v3939
        %v3942 = vpop.xlane.xlu0 %3941
        %3943 = vadd.xlane.f32.xlu0 %v3940
        %v3944 = vpop.xlane.xlu0 %3943
        %v3945 = vcvt.f32.s32 %v3942
        %v3946 = vcvt.f32.s32 %v3944
        %v3947 = vshll.u32 %v3946, 16
        %v3948 = vadd.s32 %v3947, %v3945
        %v3949 = vadd.s32 %v3736, %v3737
        %v3950 = vadd.s32 %v3949, %v3738
        %v3951 = vand.u32 %v3950, 65535
        %v3952 = vshrl.u32 %v3950, 16
        %v3953 = vcvt.s32.f32 %v3951
        %v3954 = vcvt.s32.f32 %v3952
        %3955 = vadd.xlane.f32.xlu0 %v3953
        %v3956 = vpop.xlane.xlu0 %3955
        %3957 = vadd.xlane.f32.xlu0 %v3954
        %v3958 = vpop.xlane.xlu0 %3957
        %v3959 = vcvt.f32.s32 %v3956
        %v3960 = vcvt.f32.s32 %v3958
        %v3961 = vshll.u32 %v3960, 16
        %v3962 = vadd.s32 %v3961, %v3959
        %vm3963 = vcmp.ge.s32.totalorder %v609, %v3435
        %vm3964 = vcmp.ge.s32.totalorder %v609, %v3436
        %vm3965 = vcmp.ge.s32.totalorder %v609, %v3437
        %vm3966 = vcmp.ge.s32.totalorder %v609, %v3438
        %vm3967 = vcmp.ge.s32.totalorder %v609, %v3439
        %vm3968 = vcmp.ge.s32.totalorder %v609, %v3440
        %vm3969 = vcmp.ge.s32.totalorder %v609, %v3441
        %vm3970 = vcmp.ge.s32.totalorder %v609, %v3442
        %vm3971 = vcmp.ge.s32.totalorder %v609, %v3443
        %vm3972 = vcmp.ge.s32.totalorder %v609, %v3444
        %vm3973 = vcmp.ge.s32.totalorder %v609, %v3445
        %vm3974 = vcmp.ge.s32.totalorder %v609, %v3446
        %vm3975 = vcmp.ge.s32.totalorder %v609, %v3447
        %vm3976 = vcmp.ge.s32.totalorder %v609, %v3448
        %vm3977 = vcmp.ge.s32.totalorder %v609, %v3449
        %vm3978 = vcmp.ge.s32.totalorder %v609, %v3450
        %v3979 = vadd.s32 %v3435, %v3752
        %v3980 = vadd.s32 %v3436, %v3766
        %v3981 = vadd.s32 %v3437, %v3780
        %v3982 = vadd.s32 %v3438, %v3794
        %v3983 = vadd.s32 %v3439, %v3808
        %v3984 = vadd.s32 %v3440, %v3822
        %v3985 = vadd.s32 %v3441, %v3836
        %v3986 = vadd.s32 %v3442, %v3850
        %v3987 = vadd.s32 %v3443, %v3864
        %v3988 = vadd.s32 %v3444, %v3878
        %v3989 = vadd.s32 %v3445, %v3892
        %v3990 = vadd.s32 %v3446, %v3906
        %v3991 = vadd.s32 %v3447, %v3920
        %v3992 = vadd.s32 %v3448, %v3934
        %v3993 = vadd.s32 %v3449, %v3948
        %v3994 = vadd.s32 %v3450, %v3962
        %vm3995 = vcmp.lt.s32.totalorder %v3979, 6
        %v3996 = vsel %vm3995, %v3979, 6
        %vm3997 = vcmp.lt.s32.totalorder %v3980, 6
        %v3998 = vsel %vm3997, %v3980, 6
        %vm3999 = vcmp.lt.s32.totalorder %v3981, 6
        %v4000 = vsel %vm3999, %v3981, 6
        %vm4001 = vcmp.lt.s32.totalorder %v3982, 6
        %v4002 = vsel %vm4001, %v3982, 6
        %vm4003 = vcmp.lt.s32.totalorder %v3983, 6
        %v4004 = vsel %vm4003, %v3983, 6
        %vm4005 = vcmp.lt.s32.totalorder %v3984, 6
        %v4006 = vsel %vm4005, %v3984, 6
        %vm4007 = vcmp.lt.s32.totalorder %v3985, 6
        %v4008 = vsel %vm4007, %v3985, 6
        %vm4009 = vcmp.lt.s32.totalorder %v3986, 6
        %v4010 = vsel %vm4009, %v3986, 6
        %vm4011 = vcmp.lt.s32.totalorder %v3987, 6
        %v4012 = vsel %vm4011, %v3987, 6
        %vm4013 = vcmp.lt.s32.totalorder %v3988, 6
        %v4014 = vsel %vm4013, %v3988, 6
        %vm4015 = vcmp.lt.s32.totalorder %v3989, 6
        %v4016 = vsel %vm4015, %v3989, 6
        %vm4017 = vcmp.lt.s32.totalorder %v3990, 6
        %v4018 = vsel %vm4017, %v3990, 6
        %vm4019 = vcmp.lt.s32.totalorder %v3991, 6
        %v4020 = vsel %vm4019, %v3991, 6
        %vm4021 = vcmp.lt.s32.totalorder %v3992, 6
        %v4022 = vsel %vm4021, %v3992, 6
        %vm4023 = vcmp.lt.s32.totalorder %v3993, 6
        %v4024 = vsel %vm4023, %v3993, 6
        %vm4025 = vcmp.lt.s32.totalorder %v3994, 6
        %v4026 = vsel %vm4025, %v3994, 6
        %vm4027 = vcmp.lt.s32.totalorder %v609, %v3996
        %vm4028 = vcmp.lt.s32.totalorder %v609, %v3998
        %vm4029 = vcmp.lt.s32.totalorder %v609, %v4000
        %vm4030 = vcmp.lt.s32.totalorder %v609, %v4002
        %vm4031 = vcmp.lt.s32.totalorder %v609, %v4004
        %vm4032 = vcmp.lt.s32.totalorder %v609, %v4006
        %vm4033 = vcmp.lt.s32.totalorder %v609, %v4008
        %vm4034 = vcmp.lt.s32.totalorder %v609, %v4010
        %vm4035 = vcmp.lt.s32.totalorder %v609, %v4012
        %vm4036 = vcmp.lt.s32.totalorder %v609, %v4014
        %vm4037 = vcmp.lt.s32.totalorder %v609, %v4016
        %vm4038 = vcmp.lt.s32.totalorder %v609, %v4018
        %vm4039 = vcmp.lt.s32.totalorder %v609, %v4020
        %vm4040 = vcmp.lt.s32.totalorder %v609, %v4022
        %vm4041 = vcmp.lt.s32.totalorder %v609, %v4024
        %vm4042 = vcmp.lt.s32.totalorder %v609, %v4026
        %vm4043 = vmand %vm3963, %vm4027
        %vm4044 = vmand %vm3964, %vm4028
        %vm4045 = vmand %vm3965, %vm4029
        %vm4046 = vmand %vm3966, %vm4030
        %vm4047 = vmand %vm3967, %vm4031
        %vm4048 = vmand %vm3968, %vm4032
        %vm4049 = vmand %vm3969, %vm4033
        %vm4050 = vmand %vm3970, %vm4034
        %vm4051 = vmand %vm3971, %vm4035
        %vm4052 = vmand %vm3972, %vm4036
        %vm4053 = vmand %vm3973, %vm4037
        %vm4054 = vmand %vm3974, %vm4038
        %vm4055 = vmand %vm3975, %vm4039
        %vm4056 = vmand %vm3976, %vm4040
        %vm4057 = vmand %vm3977, %vm4041
        %vm4058 = vmand %vm3978, %vm4042
        %v4059 = vsel %vm4043, %v3582, %v3515
        %v4060 = vsel %vm4044, %v3586, %v3516
        %v4061 = vsel %vm4045, %v3590, %v3517
        %v4062 = vsel %vm4046, %v3594, %v3518
        %v4063 = vsel %vm4047, %v3598, %v3519
        %v4064 = vsel %vm4048, %v3602, %v3520
        %v4065 = vsel %vm4049, %v3606, %v3521
        %v4066 = vsel %vm4050, %v3610, %v3522
        %v4067 = vsel %vm4051, %v3614, %v3523
        %v4068 = vsel %vm4052, %v3618, %v3524
        %v4069 = vsel %vm4053, %v3622, %v3525
        %v4070 = vsel %vm4054, %v3626, %v3526
        %v4071 = vsel %vm4055, %v3630, %v3527
        %v4072 = vsel %vm4056, %v3634, %v3528
        %v4073 = vsel %vm4057, %v3638, %v3529
        %v4074 = vsel %vm4058, %v3642, %v3530
        %4075 = vst [vmem:[#allocation2] sm:$0xff] %v4059
        %4076 = vst [vmem:[#allocation2 + $0x8] sm:$0xff] %v4060
        %4077 = vst [vmem:[#allocation2 + $0x10] sm:$0xff] %v4061
        %4078 = vst [vmem:[#allocation2 + $0x18] sm:$0xff] %v4062
        %4079 = vst [vmem:[#allocation2 + $0x20] sm:$0xff] %v4063
        %4080 = vst [vmem:[#allocation2 + $0x28] sm:$0xff] %v4064
        %4081 = vst [vmem:[#allocation2 + $0x30] sm:$0xff] %v4065
        %4082 = vst [vmem:[#allocation2 + $0x38] sm:$0xff] %v4066
        %4083 = vst [vmem:[#allocation2 + $0x40] sm:$0xff] %v4067
        %4084 = vst [vmem:[#allocation2 + $0x48] sm:$0xff] %v4068
        %4085 = vst [vmem:[#allocation2 + $0x50] sm:$0xff] %v4069
        %4086 = vst [vmem:[#allocation2 + $0x58] sm:$0xff] %v4070
        %4087 = vst [vmem:[#allocation2 + $0x60] sm:$0xff] %v4071
        %4088 = vst [vmem:[#allocation2 + $0x68] sm:$0xff] %v4072
        %4089 = vst [vmem:[#allocation2 + $0x70] sm:$0xff] %v4073
        %4090 = vst [vmem:[#allocation2 + $0x78] sm:$0xff] %v4074
        %v4091 = vld [vmem:[#allocation3] sm:$0xff]
        %v4092 = vld [vmem:[#allocation3 + $0x8] sm:$0xff]
        %v4093 = vld [vmem:[#allocation3 + $0x10] sm:$0xff]
        %v4094 = vld [vmem:[#allocation3 + $0x18] sm:$0xff]
        %v4095 = vld [vmem:[#allocation3 + $0x20] sm:$0xff]
        %v4096 = vld [vmem:[#allocation3 + $0x28] sm:$0xff]
        %v4097 = vld [vmem:[#allocation3 + $0x30] sm:$0xff]
        %v4098 = vld [vmem:[#allocation3 + $0x38] sm:$0xff]
        %v4099 = vld [vmem:[#allocation3 + $0x40] sm:$0xff]
        %v4100 = vld [vmem:[#allocation3 + $0x48] sm:$0xff]
        %v4101 = vld [vmem:[#allocation3 + $0x50] sm:$0xff]
        %v4102 = vld [vmem:[#allocation3 + $0x58] sm:$0xff]
        %v4103 = vld [vmem:[#allocation3 + $0x60] sm:$0xff]
        %v4104 = vld [vmem:[#allocation3 + $0x68] sm:$0xff]
        %v4105 = vld [vmem:[#allocation3 + $0x70] sm:$0xff]
        %v4106 = vld [vmem:[#allocation3 + $0x78] sm:$0xff]
        %v4107 = vsub.f32 %v874, %v893
        %v4108 = vsub.f32 %v875, %v897
        %v4109 = vsub.f32 %v876, %v901
        %v4110 = vsub.f32 %v877, %v905
        %v4111 = vsub.f32 %v878, %v909
        %v4112 = vsub.f32 %v879, %v913
        %v4113 = vsub.f32 %v880, %v917
        %v4114 = vsub.f32 %v881, %v921
        %v4115 = vsub.f32 %v882, %v925
        %v4116 = vsub.f32 %v883, %v929
        %v4117 = vsub.f32 %v884, %v933
        %v4118 = vsub.f32 %v885, %v937
        %v4119 = vsub.f32 %v886, %v941
        %v4120 = vsub.f32 %v887, %v945
        %v4121 = vsub.f32 %v888, %v949
        %v4122 = vsub.f32 %v889, %v953
        %v4123 = vmul.f32 %v4107, 1.442695
        %v4124 = vpow.pop %v4123
        %v4125 = vmul.f32 %v4108, 1.442695
        %v4126 = vpow.pop %v4125
        %v4127 = vmul.f32 %v4109, 1.442695
        %v4128 = vpow.pop %v4127
        %v4129 = vmul.f32 %v4110, 1.442695
        %v4130 = vpow.pop %v4129
        %v4131 = vmul.f32 %v4111, 1.442695
        %v4132 = vpow.pop %v4131
        %v4133 = vmul.f32 %v4112, 1.442695
        %v4134 = vpow.pop %v4133
        %v4135 = vmul.f32 %v4113, 1.442695
        %v4136 = vpow.pop %v4135
        %v4137 = vmul.f32 %v4114, 1.442695
        %v4138 = vpow.pop %v4137
        %v4139 = vmul.f32 %v4115, 1.442695
        %v4140 = vpow.pop %v4139
        %v4141 = vmul.f32 %v4116, 1.442695
        %v4142 = vpow.pop %v4141
        %v4143 = vmul.f32 %v4117, 1.442695
        %v4144 = vpow.pop %v4143
        %v4145 = vmul.f32 %v4118, 1.442695
        %v4146 = vpow.pop %v4145
        %v4147 = vmul.f32 %v4119, 1.442695
        %v4148 = vpow.pop %v4147
        %v4149 = vmul.f32 %v4120, 1.442695
        %v4150 = vpow.pop %v4149
        %v4151 = vmul.f32 %v4121, 1.442695
        %v4152 = vpow.pop %v4151
        %v4153 = vmul.f32 %v4122, 1.442695
        %v4154 = vpow.pop %v4153
        %v4155 = vmul.f32 %v4091, %v4124
        %v4156 = vmul.f32 %v4092, %v4126
        %v4157 = vmul.f32 %v4093, %v4128
        %v4158 = vmul.f32 %v4094, %v4130
        %v4159 = vmul.f32 %v4095, %v4132
        %v4160 = vmul.f32 %v4096, %v4134
        %v4161 = vmul.f32 %v4097, %v4136
        %v4162 = vmul.f32 %v4098, %v4138
        %v4163 = vmul.f32 %v4099, %v4140
        %v4164 = vmul.f32 %v4100, %v4142
        %v4165 = vmul.f32 %v4101, %v4144
        %v4166 = vmul.f32 %v4102, %v4146
        %v4167 = vmul.f32 %v4103, %v4148
        %v4168 = vmul.f32 %v4104, %v4150
        %v4169 = vmul.f32 %v4105, %v4152
        %v4170 = vmul.f32 %v4106, %v4154
        %v4171 = vsub.f32 %v617, %v893
        %v4172 = vsub.f32 %v618, %v893
        %v4173 = vsub.f32 %v619, %v897
        %v4174 = vsub.f32 %v620, %v897
        %v4175 = vsub.f32 %v621, %v901
        %v4176 = vsub.f32 %v622, %v901
        %v4177 = vsub.f32 %v623, %v905
        %v4178 = vsub.f32 %v624, %v905
        %v4179 = vsub.f32 %v625, %v909
        %v4180 = vsub.f32 %v626, %v909
        %v4181 = vsub.f32 %v627, %v913
        %v4182 = vsub.f32 %v628, %v913
        %v4183 = vsub.f32 %v629, %v917
        %v4184 = vsub.f32 %v630, %v917
        %v4185 = vsub.f32 %v631, %v921
        %v4186 = vsub.f32 %v632, %v921
        %v4187 = vsub.f32 %v633, %v925
        %v4188 = vsub.f32 %v634, %v925
        %v4189 = vsub.f32 %v635, %v929
        %v4190 = vsub.f32 %v636, %v929
        %v4191 = vsub.f32 %v637, %v933
        %v4192 = vsub.f32 %v638, %v933
        %v4193 = vsub.f32 %v639, %v937
        %v4194 = vsub.f32 %v640, %v937
        %v4195 = vsub.f32 %v641, %v941
        %v4196 = vsub.f32 %v642, %v941
        %v4197 = vsub.f32 %v643, %v945
        %v4198 = vsub.f32 %v644, %v945
        %v4199 = vsub.f32 %v645, %v949
        %v4200 = vsub.f32 %v646, %v949
        %v4201 = vsub.f32 %v647, %v953
        %v4202 = vsub.f32 %v648, %v953
        %v4203 = vmul.f32 %v4171, 1.442695
        %v4204 = vpow.pop %v4203
        %v4205 = vmul.f32 %v4172, 1.442695
        %v4206 = vpow.pop %v4205
        %v4207 = vmul.f32 %v4173, 1.442695
        %v4208 = vpow.pop %v4207
        %v4209 = vmul.f32 %v4174, 1.442695
        %v4210 = vpow.pop %v4209
        %v4211 = vmul.f32 %v4175, 1.442695
        %v4212 = vpow.pop %v4211
        %v4213 = vmul.f32 %v4176, 1.442695
        %v4214 = vpow.pop %v4213
        %v4215 = vmul.f32 %v4177, 1.442695
        %v4216 = vpow.pop %v4215
        %v4217 = vmul.f32 %v4178, 1.442695
        %v4218 = vpow.pop %v4217
        %v4219 = vmul.f32 %v4179, 1.442695
        %v4220 = vpow.pop %v4219
        %v4221 = vmul.f32 %v4180, 1.442695
        %v4222 = vpow.pop %v4221
        %v4223 = vmul.f32 %v4181, 1.442695
        %v4224 = vpow.pop %v4223
        %v4225 = vmul.f32 %v4182, 1.442695
        %v4226 = vpow.pop %v4225
        %v4227 = vmul.f32 %v4183, 1.442695
        %v4228 = vpow.pop %v4227
        %v4229 = vmul.f32 %v4184, 1.442695
        %v4230 = vpow.pop %v4229
        %v4231 = vmul.f32 %v4185, 1.442695
        %v4232 = vpow.pop %v4231
        %v4233 = vmul.f32 %v4186, 1.442695
        %v4234 = vpow.pop %v4233
        %v4235 = vmul.f32 %v4187, 1.442695
        %v4236 = vpow.pop %v4235
        %v4237 = vmul.f32 %v4188, 1.442695
        %v4238 = vpow.pop %v4237
        %v4239 = vmul.f32 %v4189, 1.442695
        %v4240 = vpow.pop %v4239
        %v4241 = vmul.f32 %v4190, 1.442695
        %v4242 = vpow.pop %v4241
        %v4243 = vmul.f32 %v4191, 1.442695
        %v4244 = vpow.pop %v4243
        %v4245 = vmul.f32 %v4192, 1.442695
        %v4246 = vpow.pop %v4245
        %v4247 = vmul.f32 %v4193, 1.442695
        %v4248 = vpow.pop %v4247
        %v4249 = vmul.f32 %v4194, 1.442695
        %v4250 = vpow.pop %v4249
        %v4251 = vmul.f32 %v4195, 1.442695
        %v4252 = vpow.pop %v4251
        %v4253 = vmul.f32 %v4196, 1.442695
        %v4254 = vpow.pop %v4253
        %v4255 = vmul.f32 %v4197, 1.442695
        %v4256 = vpow.pop %v4255
        %v4257 = vmul.f32 %v4198, 1.442695
        %v4258 = vpow.pop %v4257
        %v4259 = vmul.f32 %v4199, 1.442695
        %v4260 = vpow.pop %v4259
        %v4261 = vmul.f32 %v4200, 1.442695
        %v4262 = vpow.pop %v4261
        %v4263 = vmul.f32 %v4201, 1.442695
        %v4264 = vpow.pop %v4263
        %v4265 = vmul.f32 %v4202, 1.442695
        %v4266 = vpow.pop %v4265
        %v4267 = vadd.f32 %v4204, %v4206
        %4268 = vadd.xlane.f32.xlu0 %v4267
        %v4269 = vpop.xlane.xlu0 %4268
        %v4270 = vadd.f32 %v4208, %v4210
        %4271 = vadd.xlane.f32.xlu0 %v4270
        %v4272 = vpop.xlane.xlu0 %4271
        %v4273 = vadd.f32 %v4212, %v4214
        %4274 = vadd.xlane.f32.xlu0 %v4273
        %v4275 = vpop.xlane.xlu0 %4274
        %v4276 = vadd.f32 %v4216, %v4218
        %4277 = vadd.xlane.f32.xlu0 %v4276
        %v4278 = vpop.xlane.xlu0 %4277
        %v4279 = vadd.f32 %v4220, %v4222
        %4280 = vadd.xlane.f32.xlu0 %v4279
        %v4281 = vpop.xlane.xlu0 %4280
        %v4282 = vadd.f32 %v4224, %v4226
        %4283 = vadd.xlane.f32.xlu0 %v4282
        %v4284 = vpop.xlane.xlu0 %4283
        %v4285 = vadd.f32 %v4228, %v4230
        %4286 = vadd.xlane.f32.xlu0 %v4285
        %v4287 = vpop.xlane.xlu0 %4286
        %v4288 = vadd.f32 %v4232, %v4234
        %4289 = vadd.xlane.f32.xlu0 %v4288
        %v4290 = vpop.xlane.xlu0 %4289
        %v4291 = vadd.f32 %v4236, %v4238
        %4292 = vadd.xlane.f32.xlu0 %v4291
        %v4293 = vpop.xlane.xlu0 %4292
        %v4294 = vadd.f32 %v4240, %v4242
        %4295 = vadd.xlane.f32.xlu0 %v4294
        %v4296 = vpop.xlane.xlu0 %4295
        %v4297 = vadd.f32 %v4244, %v4246
        %4298 = vadd.xlane.f32.xlu0 %v4297
        %v4299 = vpop.xlane.xlu0 %4298
        %v4300 = vadd.f32 %v4248, %v4250
        %4301 = vadd.xlane.f32.xlu0 %v4300
        %v4302 = vpop.xlane.xlu0 %4301
        %v4303 = vadd.f32 %v4252, %v4254
        %4304 = vadd.xlane.f32.xlu0 %v4303
        %v4305 = vpop.xlane.xlu0 %4304
        %v4306 = vadd.f32 %v4256, %v4258
        %4307 = vadd.xlane.f32.xlu0 %v4306
        %v4308 = vpop.xlane.xlu0 %4307
        %v4309 = vadd.f32 %v4260, %v4262
        %4310 = vadd.xlane.f32.xlu0 %v4309
        %v4311 = vpop.xlane.xlu0 %4310
        %v4312 = vadd.f32 %v4264, %v4266
        %4313 = vadd.xlane.f32.xlu0 %v4312
        %v4314 = vpop.xlane.xlu0 %4313
        %v4315 = vadd.f32 %v4155, %v4269
        %v4316 = vadd.f32 %v4156, %v4272
        %v4317 = vadd.f32 %v4157, %v4275
        %v4318 = vadd.f32 %v4158, %v4278
        %v4319 = vadd.f32 %v4159, %v4281
        %v4320 = vadd.f32 %v4160, %v4284
        %v4321 = vadd.f32 %v4161, %v4287
        %v4322 = vadd.f32 %v4162, %v4290
        %v4323 = vadd.f32 %v4163, %v4293
        %v4324 = vadd.f32 %v4164, %v4296
        %v4325 = vadd.f32 %v4165, %v4299
        %v4326 = vadd.f32 %v4166, %v4302
        %v4327 = vadd.f32 %v4167, %v4305
        %v4328 = vadd.f32 %v4168, %v4308
        %v4329 = vadd.f32 %v4169, %v4311
        %v4330 = vadd.f32 %v4170, %v4314
        %4331 = vst.msk [vmem:[#allocation3] sm:$0xff] %vm857, %v4315
        %4332 = vst.msk [vmem:[#allocation3 + $0x8] sm:$0xff] %vm857, %v4316
        %4333 = vst.msk [vmem:[#allocation3 + $0x10] sm:$0xff] %vm857, %v4317
        %4334 = vst.msk [vmem:[#allocation3 + $0x18] sm:$0xff] %vm857, %v4318
        %4335 = vst.msk [vmem:[#allocation3 + $0x20] sm:$0xff] %vm857, %v4319
        %4336 = vst.msk [vmem:[#allocation3 + $0x28] sm:$0xff] %vm857, %v4320
        %4337 = vst.msk [vmem:[#allocation3 + $0x30] sm:$0xff] %vm857, %v4321
        %4338 = vst.msk [vmem:[#allocation3 + $0x38] sm:$0xff] %vm857, %v4322
        %4339 = vst.msk [vmem:[#allocation3 + $0x40] sm:$0xff] %vm857, %v4323
        %4340 = vst.msk [vmem:[#allocation3 + $0x48] sm:$0xff] %vm857, %v4324
        %4341 = vst.msk [vmem:[#allocation3 + $0x50] sm:$0xff] %vm857, %v4325
        %4342 = vst.msk [vmem:[#allocation3 + $0x58] sm:$0xff] %vm857, %v4326
        %4343 = vst.msk [vmem:[#allocation3 + $0x60] sm:$0xff] %vm857, %v4327
        %4344 = vst.msk [vmem:[#allocation3 + $0x68] sm:$0xff] %vm857, %v4328
        %4345 = vst.msk [vmem:[#allocation3 + $0x70] sm:$0xff] %vm857, %v4329
        %4346 = vst.msk [vmem:[#allocation3 + $0x78] sm:$0xff] %vm857, %v4330
        %p4347 = scmp.eq.s32.totalorder %s22, 1
        // Predicated region
        $region41: #{tpu_custom_call.1} parent=31 // pred_check
          %p4348 = pneg %p4347
        $region42: #{tpu_custom_call.1} parent=31 // pred_check_branch
          %4350 = sbr.rel (%p4348) target = $region44
        $region43: #{tpu_custom_call.1} parent=31 // pred_region
          %v4351 = vld [vmem:[#allocation2] sm:$0xff]
          %v4352 = vld [vmem:[#allocation2 + $0x8] sm:$0xff]
          %v4353 = vld [vmem:[#allocation2 + $0x10] sm:$0xff]
          %v4354 = vld [vmem:[#allocation2 + $0x18] sm:$0xff]
          %v4355 = vld [vmem:[#allocation2 + $0x20] sm:$0xff]
          %v4356 = vld [vmem:[#allocation2 + $0x28] sm:$0xff]
          %v4357 = vld [vmem:[#allocation2 + $0x30] sm:$0xff]
          %v4358 = vld [vmem:[#allocation2 + $0x38] sm:$0xff]
          %v4359 = vld [vmem:[#allocation2 + $0x40] sm:$0xff]
          %v4360 = vld [vmem:[#allocation2 + $0x48] sm:$0xff]
          %v4361 = vld [vmem:[#allocation2 + $0x50] sm:$0xff]
          %v4362 = vld [vmem:[#allocation2 + $0x58] sm:$0xff]
          %v4363 = vld [vmem:[#allocation2 + $0x60] sm:$0xff]
          %v4364 = vld [vmem:[#allocation2 + $0x68] sm:$0xff]
          %v4365 = vld [vmem:[#allocation2 + $0x70] sm:$0xff]
          %v4366 = vld [vmem:[#allocation2 + $0x78] sm:$0xff]
          %vm4367 = vcmp.lt.s32.totalorder %v609, 6
          %v4368 = vsel %vm4367, %v4351, 0.0
          %v4369 = vsel %vm4367, %v4352, 0.0
          %v4370 = vsel %vm4367, %v4353, 0.0
          %v4371 = vsel %vm4367, %v4354, 0.0
          %v4372 = vsel %vm4367, %v4355, 0.0
          %v4373 = vsel %vm4367, %v4356, 0.0
          %v4374 = vsel %vm4367, %v4357, 0.0
          %v4375 = vsel %vm4367, %v4358, 0.0
          %v4376 = vsel %vm4367, %v4359, 0.0
          %v4377 = vsel %vm4367, %v4360, 0.0
          %v4378 = vsel %vm4367, %v4361, 0.0
          %v4379 = vsel %vm4367, %v4362, 0.0
          %v4380 = vsel %vm4367, %v4363, 0.0
          %v4381 = vsel %vm4367, %v4364, 0.0
          %v4382 = vsel %vm4367, %v4365, 0.0
          %v4383 = vsel %vm4367, %v4366, 0.0
          %4384 = vadd.xlane.f32.xlu0 %v4368
          %v4385 = vpop.xlane.xlu0 %4384
          %4386 = vadd.xlane.f32.xlu0 %v4369
          %v4387 = vpop.xlane.xlu0 %4386
          %4388 = vadd.xlane.f32.xlu0 %v4370
          %v4389 = vpop.xlane.xlu0 %4388
          %4390 = vadd.xlane.f32.xlu0 %v4371
          %v4391 = vpop.xlane.xlu0 %4390
          %4392 = vadd.xlane.f32.xlu0 %v4372
          %v4393 = vpop.xlane.xlu0 %4392
          %4394 = vadd.xlane.f32.xlu0 %v4373
          %v4395 = vpop.xlane.xlu0 %4394
          %4396 = vadd.xlane.f32.xlu0 %v4374
          %v4397 = vpop.xlane.xlu0 %4396
          %4398 = vadd.xlane.f32.xlu0 %v4375
          %v4399 = vpop.xlane.xlu0 %4398
          %4400 = vadd.xlane.f32.xlu0 %v4376
          %v4401 = vpop.xlane.xlu0 %4400
          %4402 = vadd.xlane.f32.xlu0 %v4377
          %v4403 = vpop.xlane.xlu0 %4402
          %4404 = vadd.xlane.f32.xlu0 %v4378
          %v4405 = vpop.xlane.xlu0 %4404
          %4406 = vadd.xlane.f32.xlu0 %v4379
          %v4407 = vpop.xlane.xlu0 %4406
          %4408 = vadd.xlane.f32.xlu0 %v4380
          %v4409 = vpop.xlane.xlu0 %4408
          %4410 = vadd.xlane.f32.xlu0 %v4381
          %v4411 = vpop.xlane.xlu0 %4410
          %4412 = vadd.xlane.f32.xlu0 %v4382
          %v4413 = vpop.xlane.xlu0 %4412
          %4414 = vadd.xlane.f32.xlu0 %v4383
          %v4415 = vpop.xlane.xlu0 %4414
          %v4416 = vld [vmem:[#allocation3] sm:$0xff]
          %v4417 = vld [vmem:[#allocation3 + $0x8] sm:$0xff]
          %v4418 = vld [vmem:[#allocation3 + $0x10] sm:$0xff]
          %v4419 = vld [vmem:[#allocation3 + $0x18] sm:$0xff]
          %v4420 = vld [vmem:[#allocation3 + $0x20] sm:$0xff]
          %v4421 = vld [vmem:[#allocation3 + $0x28] sm:$0xff]
          %v4422 = vld [vmem:[#allocation3 + $0x30] sm:$0xff]
          %v4423 = vld [vmem:[#allocation3 + $0x38] sm:$0xff]
          %v4424 = vld [vmem:[#allocation3 + $0x40] sm:$0xff]
          %v4425 = vld [vmem:[#allocation3 + $0x48] sm:$0xff]
          %v4426 = vld [vmem:[#allocation3 + $0x50] sm:$0xff]
          %v4427 = vld [vmem:[#allocation3 + $0x58] sm:$0xff]
          %v4428 = vld [vmem:[#allocation3 + $0x60] sm:$0xff]
          %v4429 = vld [vmem:[#allocation3 + $0x68] sm:$0xff]
          %v4430 = vld [vmem:[#allocation3 + $0x70] sm:$0xff]
          %v4431 = vld [vmem:[#allocation3 + $0x78] sm:$0xff]
          %v4432 = vlog2.pop %v4416
          %v4433 = vmul.f32 %v4432, 0.6931472
          %v4434 = vlog2.pop %v4417
          %v4435 = vmul.f32 %v4434, 0.6931472
          %v4436 = vlog2.pop %v4418
          %v4437 = vmul.f32 %v4436, 0.6931472
          %v4438 = vlog2.pop %v4419
          %v4439 = vmul.f32 %v4438, 0.6931472
          %v4440 = vlog2.pop %v4420
          %v4441 = vmul.f32 %v4440, 0.6931472
          %v4442 = vlog2.pop %v4421
          %v4443 = vmul.f32 %v4442, 0.6931472
          %v4444 = vlog2.pop %v4422
          %v4445 = vmul.f32 %v4444, 0.6931472
          %v4446 = vlog2.pop %v4423
          %v4447 = vmul.f32 %v4446, 0.6931472
          %v4448 = vlog2.pop %v4424
          %v4449 = vmul.f32 %v4448, 0.6931472
          %v4450 = vlog2.pop %v4425
          %v4451 = vmul.f32 %v4450, 0.6931472
          %v4452 = vlog2.pop %v4426
          %v4453 = vmul.f32 %v4452, 0.6931472
          %v4454 = vlog2.pop %v4427
          %v4455 = vmul.f32 %v4454, 0.6931472
          %v4456 = vlog2.pop %v4428
          %v4457 = vmul.f32 %v4456, 0.6931472
          %v4458 = vlog2.pop %v4429
          %v4459 = vmul.f32 %v4458, 0.6931472
          %v4460 = vlog2.pop %v4430
          %v4461 = vmul.f32 %v4460, 0.6931472
          %v4462 = vlog2.pop %v4431
          %v4463 = vmul.f32 %v4462, 0.6931472
          %v4464 = vadd.f32 %v4351, %v4433
          %v4465 = vadd.f32 %v4352, %v4435
          %v4466 = vadd.f32 %v4353, %v4437
          %v4467 = vadd.f32 %v4354, %v4439
          %v4468 = vadd.f32 %v4355, %v4441
          %v4469 = vadd.f32 %v4356, %v4443
          %v4470 = vadd.f32 %v4357, %v4445
          %v4471 = vadd.f32 %v4358, %v4447
          %v4472 = vadd.f32 %v4359, %v4449
          %v4473 = vadd.f32 %v4360, %v4451
          %v4474 = vadd.f32 %v4361, %v4453
          %v4475 = vadd.f32 %v4362, %v4455
          %v4476 = vadd.f32 %v4363, %v4457
          %v4477 = vadd.f32 %v4364, %v4459
          %v4478 = vadd.f32 %v4365, %v4461
          %v4479 = vadd.f32 %v4366, %v4463
          %v4480 = vld [vmem:[#allocation4] sm:$0xff]
          %v4481 = vld [vmem:[#allocation4 + $0x8] sm:$0xff]
          %v4482 = vld [vmem:[#allocation4 + $0x10] sm:$0xff]
          %v4483 = vld [vmem:[#allocation4 + $0x18] sm:$0xff]
          %v4484 = vld [vmem:[#allocation4 + $0x20] sm:$0xff]
          %v4485 = vld [vmem:[#allocation4 + $0x28] sm:$0xff]
          %v4486 = vld [vmem:[#allocation4 + $0x30] sm:$0xff]
          %v4487 = vld [vmem:[#allocation4 + $0x38] sm:$0xff]
          %v4488 = vld [vmem:[#allocation4 + $0x40] sm:$0xff]
          %v4489 = vld [vmem:[#allocation4 + $0x48] sm:$0xff]
          %v4490 = vld [vmem:[#allocation4 + $0x50] sm:$0xff]
          %v4491 = vld [vmem:[#allocation4 + $0x58] sm:$0xff]
          %v4492 = vld [vmem:[#allocation4 + $0x60] sm:$0xff]
          %v4493 = vld [vmem:[#allocation4 + $0x68] sm:$0xff]
          %v4494 = vld [vmem:[#allocation4 + $0x70] sm:$0xff]
          %v4495 = vld [vmem:[#allocation4 + $0x78] sm:$0xff]
          %4512 = vrot.lane.b32.xlu0 %v4351, 123
          %v4513 = vpop.permute.xlu0 %4512
          %4514 = vrot.lane.b32.xlu0 %v4352, 123
          %v4515 = vpop.permute.xlu0 %4514
          %4516 = vrot.lane.b32.xlu0 %v4353, 123
          %v4517 = vpop.permute.xlu0 %4516
          %4518 = vrot.lane.b32.xlu0 %v4354, 123
          %v4519 = vpop.permute.xlu0 %4518
          %4520 = vrot.lane.b32.xlu0 %v4355, 123
          %v4521 = vpop.permute.xlu0 %4520
          %4522 = vrot.lane.b32.xlu0 %v4356, 123
          %v4523 = vpop.permute.xlu0 %4522
          %4524 = vrot.lane.b32.xlu0 %v4357, 123
          %v4525 = vpop.permute.xlu0 %4524
          %4526 = vrot.lane.b32.xlu0 %v4358, 123
          %v4527 = vpop.permute.xlu0 %4526
          %4528 = vrot.lane.b32.xlu0 %v4359, 123
          %v4529 = vpop.permute.xlu0 %4528
          %4530 = vrot.lane.b32.xlu0 %v4360, 123
          %v4531 = vpop.permute.xlu0 %4530
          %4532 = vrot.lane.b32.xlu0 %v4361, 123
          %v4533 = vpop.permute.xlu0 %4532
          %4534 = vrot.lane.b32.xlu0 %v4362, 123
          %v4535 = vpop.permute.xlu0 %4534
          %4536 = vrot.lane.b32.xlu0 %v4363, 123
          %v4537 = vpop.permute.xlu0 %4536
          %4538 = vrot.lane.b32.xlu0 %v4364, 123
          %v4539 = vpop.permute.xlu0 %4538
          %4540 = vrot.lane.b32.xlu0 %v4365, 123
          %v4541 = vpop.permute.xlu0 %4540
          %4542 = vrot.lane.b32.xlu0 %v4366, 123
          %v4543 = vpop.permute.xlu0 %4542
          %vm4560 = vcmp.ge.f32.partialorder %v4480, %v4513
          %vm4561 = vcmp.ge.f32.partialorder %v4481, %v4515
          %vm4562 = vcmp.ge.f32.partialorder %v4482, %v4517
          %vm4563 = vcmp.ge.f32.partialorder %v4483, %v4519
          %vm4564 = vcmp.ge.f32.partialorder %v4484, %v4521
          %vm4565 = vcmp.ge.f32.partialorder %v4485, %v4523
          %vm4566 = vcmp.ge.f32.partialorder %v4486, %v4525
          %vm4567 = vcmp.ge.f32.partialorder %v4487, %v4527
          %vm4568 = vcmp.ge.f32.partialorder %v4488, %v4529
          %vm4569 = vcmp.ge.f32.partialorder %v4489, %v4531
          %vm4570 = vcmp.ge.f32.partialorder %v4490, %v4533
          %vm4571 = vcmp.ge.f32.partialorder %v4491, %v4535
          %vm4572 = vcmp.ge.f32.partialorder %v4492, %v4537
          %vm4573 = vcmp.ge.f32.partialorder %v4493, %v4539
          %vm4574 = vcmp.ge.f32.partialorder %v4494, %v4541
          %vm4575 = vcmp.ge.f32.partialorder %v4495, %v4543
          %v4576 = vsel %vm4560, 1, 0
          %v4577 = vsel %vm4561, 1, 0
          %v4578 = vsel %vm4562, 1, 0
          %v4579 = vsel %vm4563, 1, 0
          %v4580 = vsel %vm4564, 1, 0
          %v4581 = vsel %vm4565, 1, 0
          %v4582 = vsel %vm4566, 1, 0
          %v4583 = vsel %vm4567, 1, 0
          %v4584 = vsel %vm4568, 1, 0
          %v4585 = vsel %vm4569, 1, 0
          %v4586 = vsel %vm4570, 1, 0
          %v4587 = vsel %vm4571, 1, 0
          %v4588 = vsel %vm4572, 1, 0
          %v4589 = vsel %vm4573, 1, 0
          %v4590 = vsel %vm4574, 1, 0
          %v4591 = vsel %vm4575, 1, 0
          %v4592 = vcvt.s32.f32 %v4576
          %v4593 = vcvt.s32.f32 %v4577
          %v4594 = vcvt.s32.f32 %v4578
          %v4595 = vcvt.s32.f32 %v4579
          %v4596 = vcvt.s32.f32 %v4580
          %v4597 = vcvt.s32.f32 %v4581
          %v4598 = vcvt.s32.f32 %v4582
          %v4599 = vcvt.s32.f32 %v4583
          %v4600 = vcvt.s32.f32 %v4584
          %v4601 = vcvt.s32.f32 %v4585
          %v4602 = vcvt.s32.f32 %v4586
          %v4603 = vcvt.s32.f32 %v4587
          %v4604 = vcvt.s32.f32 %v4588
          %v4605 = vcvt.s32.f32 %v4589
          %v4606 = vcvt.s32.f32 %v4590
          %v4607 = vcvt.s32.f32 %v4591
          %v4608 = vmul.f32 %v4464, 6.0
          %v4609 = vmul.f32 %v4465, 6.0
          %v4610 = vmul.f32 %v4466, 6.0
          %v4611 = vmul.f32 %v4467, 6.0
          %v4612 = vmul.f32 %v4468, 6.0
          %v4613 = vmul.f32 %v4469, 6.0
          %v4614 = vmul.f32 %v4470, 6.0
          %v4615 = vmul.f32 %v4471, 6.0
          %v4616 = vmul.f32 %v4472, 6.0
          %v4617 = vmul.f32 %v4473, 6.0
          %v4618 = vmul.f32 %v4474, 6.0
          %v4619 = vmul.f32 %v4475, 6.0
          %v4620 = vmul.f32 %v4476, 6.0
          %v4621 = vmul.f32 %v4477, 6.0
          %v4622 = vmul.f32 %v4478, 6.0
          %v4623 = vmul.f32 %v4479, 6.0
          %v4624 = vsub.f32 %v4385, %v4608
          %v4625 = vsub.f32 %v4387, %v4609
          %v4626 = vsub.f32 %v4389, %v4610
          %v4627 = vsub.f32 %v4391, %v4611
          %v4628 = vsub.f32 %v4393, %v4612
          %v4629 = vsub.f32 %v4395, %v4613
          %v4630 = vsub.f32 %v4397, %v4614
          %v4631 = vsub.f32 %v4399, %v4615
          %v4632 = vsub.f32 %v4401, %v4616
          %v4633 = vsub.f32 %v4403, %v4617
          %v4634 = vsub.f32 %v4405, %v4618
          %v4635 = vsub.f32 %v4407, %v4619
          %v4636 = vsub.f32 %v4409, %v4620
          %v4637 = vsub.f32 %v4411, %v4621
          %v4638 = vsub.f32 %v4413, %v4622
          %v4639 = vsub.f32 %v4415, %v4623
          %v4640 = vsub.f32 %v4480, %v4464
          %v4641 = vsub.f32 %v4481, %v4465
          %v4642 = vsub.f32 %v4482, %v4466
          %v4643 = vsub.f32 %v4483, %v4467
          %v4644 = vsub.f32 %v4484, %v4468
          %v4645 = vsub.f32 %v4485, %v4469
          %v4646 = vsub.f32 %v4486, %v4470
          %v4647 = vsub.f32 %v4487, %v4471
          %v4648 = vsub.f32 %v4488, %v4472
          %v4649 = vsub.f32 %v4489, %v4473
          %v4650 = vsub.f32 %v4490, %v4474
          %v4651 = vsub.f32 %v4491, %v4475
          %v4652 = vsub.f32 %v4492, %v4476
          %v4653 = vsub.f32 %v4493, %v4477
          %v4654 = vsub.f32 %v4494, %v4478
          %v4655 = vsub.f32 %v4495, %v4479
          %v4656 = vmul.f32 %v4592, %v4640
          %v4657 = vmul.f32 %v4593, %v4641
          %v4658 = vmul.f32 %v4594, %v4642
          %v4659 = vmul.f32 %v4595, %v4643
          %v4660 = vmul.f32 %v4596, %v4644
          %v4661 = vmul.f32 %v4597, %v4645
          %v4662 = vmul.f32 %v4598, %v4646
          %v4663 = vmul.f32 %v4599, %v4647
          %v4664 = vmul.f32 %v4600, %v4648
          %v4665 = vmul.f32 %v4601, %v4649
          %v4666 = vmul.f32 %v4602, %v4650
          %v4667 = vmul.f32 %v4603, %v4651
          %v4668 = vmul.f32 %v4604, %v4652
          %v4669 = vmul.f32 %v4605, %v4653
          %v4670 = vmul.f32 %v4606, %v4654
          %v4671 = vmul.f32 %v4607, %v4655
          %v4672 = vsub.f32 %v4624, %v4656
          %v4673 = vsub.f32 %v4625, %v4657
          %v4674 = vsub.f32 %v4626, %v4658
          %v4675 = vsub.f32 %v4627, %v4659
          %v4676 = vsub.f32 %v4628, %v4660
          %v4677 = vsub.f32 %v4629, %v4661
          %v4678 = vsub.f32 %v4630, %v4662
          %v4679 = vsub.f32 %v4631, %v4663
          %v4680 = vsub.f32 %v4632, %v4664
          %v4681 = vsub.f32 %v4633, %v4665
          %v4682 = vsub.f32 %v4634, %v4666
          %v4683 = vsub.f32 %v4635, %v4667
          %v4684 = vsub.f32 %v4636, %v4668
          %v4685 = vsub.f32 %v4637, %v4669
          %v4686 = vsub.f32 %v4638, %v4670
          %v4687 = vsub.f32 %v4639, %v4671
          %v4688 = vsub.f32 0.0, %v4672
          %v4689 = vsub.f32 0.0, %v4673
          %v4690 = vsub.f32 0.0, %v4674
          %v4691 = vsub.f32 0.0, %v4675
          %v4692 = vsub.f32 0.0, %v4676
          %v4693 = vsub.f32 0.0, %v4677
          %v4694 = vsub.f32 0.0, %v4678
          %v4695 = vsub.f32 0.0, %v4679
          %v4696 = vsub.f32 0.0, %v4680
          %v4697 = vsub.f32 0.0, %v4681
          %v4698 = vsub.f32 0.0, %v4682
          %v4699 = vsub.f32 0.0, %v4683
          %v4700 = vsub.f32 0.0, %v4684
          %v4701 = vsub.f32 0.0, %v4685
          %v4702 = vsub.f32 0.0, %v4686
          %v4703 = vsub.f32 0.0, %v4687
          %v4704 = vmul.f32 %v4640, 2.0
          %v4705 = vmul.f32 %v4641, 2.0
          %v4706 = vmul.f32 %v4642, 2.0
          %v4707 = vmul.f32 %v4643, 2.0
          %v4708 = vmul.f32 %v4644, 2.0
          %v4709 = vmul.f32 %v4645, 2.0
          %v4710 = vmul.f32 %v4646, 2.0
          %v4711 = vmul.f32 %v4647, 2.0
          %v4712 = vmul.f32 %v4648, 2.0
          %v4713 = vmul.f32 %v4649, 2.0
          %v4714 = vmul.f32 %v4650, 2.0
          %v4715 = vmul.f32 %v4651, 2.0
          %v4716 = vmul.f32 %v4652, 2.0
          %v4717 = vmul.f32 %v4653, 2.0
          %v4718 = vmul.f32 %v4654, 2.0
          %v4719 = vmul.f32 %v4655, 2.0
          %v4720 = vsub.f32 %v4688, %v4704
          %v4721 = vsub.f32 %v4689, %v4705
          %v4722 = vsub.f32 %v4690, %v4706
          %v4723 = vsub.f32 %v4691, %v4707
          %v4724 = vsub.f32 %v4692, %v4708
          %v4725 = vsub.f32 %v4693, %v4709
          %v4726 = vsub.f32 %v4694, %v4710
          %v4727 = vsub.f32 %v4695, %v4711
          %v4728 = vsub.f32 %v4696, %v4712
          %v4729 = vsub.f32 %v4697, %v4713
          %v4730 = vsub.f32 %v4698, %v4714
          %v4731 = vsub.f32 %v4699, %v4715
          %v4732 = vsub.f32 %v4700, %v4716
          %v4733 = vsub.f32 %v4701, %v4717
          %v4734 = vsub.f32 %v4702, %v4718
          %v4735 = vsub.f32 %v4703, %v4719
          %4736 = vst.msk [vmem:[%s247] sm:$0xff] %vm857, %v4720
          %4737 = vst.msk [vmem:[%s247 + $0x8] sm:$0xff] %vm857, %v4721
          %4738 = vst.msk [vmem:[%s247 + $0x10] sm:$0xff] %vm857, %v4722
          %4739 = vst.msk [vmem:[%s247 + $0x18] sm:$0xff] %vm857, %v4723
          %4740 = vst.msk [vmem:[%s247 + $0x20] sm:$0xff] %vm857, %v4724
          %4741 = vst.msk [vmem:[%s247 + $0x28] sm:$0xff] %vm857, %v4725
          %4742 = vst.msk [vmem:[%s247 + $0x30] sm:$0xff] %vm857, %v4726
          %4743 = vst.msk [vmem:[%s247 + $0x38] sm:$0xff] %vm857, %v4727
          %4744 = vst.msk [vmem:[%s247 + $0x40] sm:$0xff] %vm857, %v4728
          %4745 = vst.msk [vmem:[%s247 + $0x48] sm:$0xff] %vm857, %v4729
          %4746 = vst.msk [vmem:[%s247 + $0x50] sm:$0xff] %vm857, %v4730
          %4747 = vst.msk [vmem:[%s247 + $0x58] sm:$0xff] %vm857, %v4731
          %4748 = vst.msk [vmem:[%s247 + $0x60] sm:$0xff] %vm857, %v4732
          %4749 = vst.msk [vmem:[%s247 + $0x68] sm:$0xff] %vm857, %v4733
          %4750 = vst.msk [vmem:[%s247 + $0x70] sm:$0xff] %vm857, %v4734
          %4751 = vst.msk [vmem:[%s247 + $0x78] sm:$0xff] %vm857, %v4735
        $region44: #{tpu_custom_call.1} parent=31 // pred_fallthru
          _
        %s4752 = smul.u32 16, %s21
        %p4753 = scmp.lt.s32.totalorder %s4752, 15
        %s4754 = scalar_select %p4753, %s4752, 15
        %s4755 = smul.addr %s4754, 8
        %s4756 = scalar_lea.vmem %s3, %s4755
        // Predicated region
        $region45: #{tpu_custom_call.1} parent=31 // pred_check
          %p4757 = pneg %p125
        $region46: #{tpu_custom_call.1} parent=31 // pred_check_branch
          %4759 = sbr.rel (%p4757) target = $region48
        $region47: #{tpu_custom_call.1} parent=31 // pred_region
          %s4760 = smul.u32 16, %s21
        $region48: #{tpu_custom_call.1} parent=31 // pred_fallthru
          _
        // Predicated region
        $region49: #{tpu_custom_call.1} parent=31 // pred_check
          %p4761 = pneg %p125
        $region50: #{tpu_custom_call.1} parent=31 // pred_check_branch
          %4763 = sbr.rel (%p4761) target = $region52
        $region51: #{tpu_custom_call.1} parent=31 // pred_region
          %s4764 = smul.u32 16, %s21
          %p4765 = scmp.lt.s32.totalorder %s4764, 15
          %s4766 = scalar_select %p4765, %s4764, 15
          %s4767 = smul.addr %s4766, 8
          %s4768 = scalar_lea.vmem %s3, %s4767
        $region52: #{tpu_custom_call.1} parent=31 // pred_fallthru
          _
      $region32: #{tpu_custom_call.1} parent=5 // pred_fallthru
        _
      %p4769 = scmp.le.s32.totalorder 2, %s12
      // Predicated region
      $region53: #{tpu_custom_call.1} parent=5 // pred_check
        %p4770 = pneg %p4769
      $region54: #{tpu_custom_call.1} parent=5 // pred_check_branch
        %4772 = sbr.rel (%p4770) target = $region56
      $region55: #{tpu_custom_call.1} parent=5 // pred_region
        %s4773 = ssub.s32 %s12, 2
      $region56: #{tpu_custom_call.1} parent=5 // pred_fallthru
        _
    $region6: #{tpu_custom_call.1} parent=1 // loop_footer
      %s16 = sadd.s32 1, %s12
    $region7: #{tpu_custom_call.1} parent=1 // loop_footer_branch
      %11 = sbr.rel target = $region3
    $region8: #{tpu_custom_call.1} parent=1 // loop_exit
      _
    %4774 = vsyncpa [#allocation6], 1
    %s4775 = scalar_lea.sflag [#allocation6], 1
    %4776 = vsyncpa %s4775, 1

</llo_original>
